<compile_context>
chip_gen: v5e
topology: v5e:2x2
jax: 0.10.0
libtpu: 0.0.40
codegen_flags: <defaults>
</compile_context>

<pallas_src>
import functools

import jax
import jax.numpy as jnp
from jax.experimental import pallas as pl
from jax.experimental.pallas import tpu as pltpu


def _skip_ae_kernel(x_ref, w0_ref, b0_ref, wb_ref, bb_ref, wf_ref, bf_ref,
                    o_ref, *, depth, neg_slope):
    """One batch tile of the full SkipAutoEncoder forward."""
    mm_dtype = w0_ref.dtype  # bf16 (or f32) matmul-operand dtype

    # Initial linear: (TM, D_in) @ (D_in, C) -> f32 (TM, C).
    # x arrives f32 from HBM; cast to the matmul dtype in-kernel (VPU op,
    # hidden under the MXU) instead of a wrapper-side HBM round-trip.
    h = jnp.dot(x_ref[...].astype(mm_dtype), w0_ref[...],
                preferred_element_type=jnp.float32) + b0_ref[...]

    # Residual blocks: h = h + leaky_relu(h @ Wd + bd).
    # `depth` is a static Python int -> fully unrolled (fine for small depth).
    for d in range(depth):
        z = jnp.dot(h.astype(mm_dtype), wb_ref[d],
                    preferred_element_type=jnp.float32) + bb_ref[d]
        h = h + jnp.maximum(z, neg_slope * z)   # LeakyReLU, 0 < slope < 1

    # Final linear: (TM, C) @ (C, D_out) -> (TM, D_out), single f32 store.
    y = jnp.dot(h.astype(mm_dtype), wf_ref[...],
                preferred_element_type=jnp.float32) + bf_ref[...]
    o_ref[...] = y.astype(o_ref.dtype)


def _round_up(v, m):
    return -(-v // m) * m


def skip_autoencoder_forward(x, params, *, depth, block_m=256, neg_slope=0.01):
    """Fused SkipAutoEncoder forward.

    x      : (B, D_in) float32
    params : (w0 (D_in, C), b0 (1, C),
              wb (depth, C, C), bb (depth, 1, C),
              wf (C, D_out), bf (1, D_out))      -- weights (in, out), bf16;
                                                    biases f32.
    """
    w0, b0, wb, bb, wf, bf = params
    B, d_in = x.shape
    c = w0.shape[1]
    d_out = wf.shape[1]
    assert wb.shape == (depth, c, c) and bb.shape == (depth, 1, c)

    # Batch tile: as large as requested (multiple of 8), adapted down for
    # small batches.  Ragged last tile handled by Pallas (rows independent).
    tm = max(8, min(_round_up(block_m, 8), _round_up(B, 8)))
    grid = (pl.cdiv(B, tm),)

    # VMEM budget: single-buffered resident weights/biases + double-buffered
    # x / out pipeline tiles + working set for h, plus margin.
    w_bytes = sum(a.size * a.dtype.itemsize for a in (w0, wb, wf))
    bias_bytes = sum(a.size * a.dtype.itemsize for a in (b0, bb, bf))
    pipe_bytes = 2 * tm * d_in * x.dtype.itemsize + 2 * tm * d_out * 4
    work_bytes = 4 * tm * c * 4
    vmem_limit = int(min(max(w_bytes + bias_bytes + pipe_bytes + work_bytes
                             + (4 << 20), 32 << 20), 100 << 20))

    flops = 2 * B * (d_in * c + depth * c * c + c * d_out)
    bytes_accessed = (x.size * x.dtype.itemsize + w_bytes + bias_bytes
                      + B * d_out * 4)

    kernel = functools.partial(_skip_ae_kernel, depth=depth,
                               neg_slope=neg_slope)

    # Whole-array, single-buffered VMEM residency for every weight/bias.
    resident = pl.BlockSpec(memory_space=pltpu.MemorySpace.VMEM)

    return pl.pallas_call(
        kernel,
        out_shape=jax.ShapeDtypeStruct((B, d_out), jnp.float32),
        grid=grid,
        in_specs=[
            pl.BlockSpec((tm, d_in), lambda i: (i, 0)),   # x: one tile / step
            resident,   # w0
            resident,   # b0
            resident,   # block weights (depth, C, C)
            resident,   # block biases  (depth, 1, C)
            resident,   # wf
            resident,   # bf
        ],
        out_specs=pl.BlockSpec((tm, d_out), lambda i: (i, 0)),
        compiler_params=pltpu.CompilerParams(
            dimension_semantics=("parallel",),
            vmem_limit_bytes=vmem_limit),
        cost_estimate=pl.CostEstimate(
            flops=flops, transcendentals=0, bytes_accessed=bytes_accessed),
    )(x, w0, b0, wb, bb, wf, bf)


def init_params(key, input_dim, channel_dim, depth, output_dim,
                weight_dtype=jnp.bfloat16):
    """nn.Linear-style uniform init; weights stored (in, out) and cast to the
    matmul dtype ONCE here (outside the hot path); biases stay f32."""
    assert depth >= 1

    def linear(k, fan_in, fan_out):
        kw, kb = jax.random.split(k)
        bound = 1.0 / float(fan_in) ** 0.5
        w = jax.random.uniform(kw, (fan_in, fan_out), jnp.float32, -bound, bound)
        b = jax.random.uniform(kb, (fan_out,), jnp.float32, -bound, bound)
        return w, b

    keys = jax.random.split(key, depth + 2)
    w0, b0 = linear(keys[0], input_dim, channel_dim)
    wbs, bbs = [], []
    for d in range(depth):
        w, b = linear(keys[1 + d], channel_dim, channel_dim)
        wbs.append(w)
        bbs.append(b)
    wf, bf = linear(keys[-1], channel_dim, output_dim)
    return (w0.astype(weight_dtype), b0.reshape(1, channel_dim),
            jnp.stack(wbs).astype(weight_dtype),
            jnp.stack(bbs).reshape(depth, 1, channel_dim),
            wf.astype(weight_dtype), bf.reshape(1, output_dim))


def reference_forward(x, params, *, depth, neg_slope=0.01):
    """Pure-JAX reference with identical cast/accumulation structure."""
    w0, b0, wb, bb, wf, bf = params
    cd = w0.dtype
    h = jnp.dot(x.astype(cd), w0, preferred_element_type=jnp.float32) + b0
    for d in range(depth):
        z = jnp.dot(h.astype(cd), wb[d],
                    preferred_element_type=jnp.float32) + bb[d]
        h = h + jnp.maximum(z, neg_slope * z)
    return jnp.dot(h.astype(cd), wf, preferred_element_type=jnp.float32) + bf


if __name__ == "__main__":
    key = jax.random.PRNGKey(0)
    k_x, k_p = jax.random.split(key)

    batch = 384          # 1.5 tiles at TM=256 -> exercises grid + ragged tail
    input_dim = 128      # LazyLinear's inferred input dim, made explicit
    channel_dim = 256    # init_channel_dim
    depth = 3
    output_dim = 128     # 128-lane output -> unmasked stores

    x = jax.random.normal(k_x, (batch, input_dim), jnp.float32)
    params = init_params(k_p, input_dim, channel_dim, depth, output_dim)

    out = skip_autoencoder_forward(x, params, depth=depth)
    out = jax.block_until_ready(out)

    ref = reference_forward(x, params, depth=depth)
    assert out.shape == (batch, output_dim)
    max_err = float(jnp.max(jnp.abs(out - ref)))
    assert jnp.allclose(out, ref, atol=2e-2, rtol=2e-2), max_err

    print("KERNEL_OK")
</pallas_src>

<mosaic_0001>
module attributes {stable_mosaic.version = 11 : i64} {
  func.func @_skip_ae_kernel(%arg0: i32, %arg1: memref<256x128xf32, #tpu.memory_space<vmem>>, %arg2: memref<128x256xbf16, #tpu.memory_space<vmem>>, %arg3: memref<1x256xf32, #tpu.memory_space<vmem>>, %arg4: memref<3x256x256xbf16, #tpu.memory_space<vmem>>, %arg5: memref<3x1x256xf32, #tpu.memory_space<vmem>>, %arg6: memref<256x128xbf16, #tpu.memory_space<vmem>>, %arg7: memref<1x128xf32, #tpu.memory_space<vmem>>, %arg8: memref<256x128xf32, #tpu.memory_space<vmem>>) attributes {dimension_semantics = [#tpu.dimension_semantics<parallel>], iteration_bounds = array<i64: 2>, scalar_prefetch = 0 : i64, scratch_operands = 0 : i64, tpu.core_type = #tpu.core_type<tc>, window_params = [{transform_indices = @transform_0, window_bounds = array<i64: 256, 128>}, {pipeline_mode = #tpu.pipeline_mode<synchronous>, transform_indices = @transform_1, window_bounds = array<i64: 128, 256>}, {pipeline_mode = #tpu.pipeline_mode<synchronous>, transform_indices = @transform_2, window_bounds = array<i64: 1, 256>}, {pipeline_mode = #tpu.pipeline_mode<synchronous>, transform_indices = @transform_3, window_bounds = array<i64: 3, 256, 256>}, {pipeline_mode = #tpu.pipeline_mode<synchronous>, transform_indices = @transform_4, window_bounds = array<i64: 3, 1, 256>}, {pipeline_mode = #tpu.pipeline_mode<synchronous>, transform_indices = @transform_5, window_bounds = array<i64: 256, 128>}, {pipeline_mode = #tpu.pipeline_mode<synchronous>, transform_indices = @transform_6, window_bounds = array<i64: 1, 128>}, {transform_indices = @transform_7, window_bounds = array<i64: 256, 128>}]} {
    %c0 = arith.constant 0 : index
    %c0_0 = arith.constant 0 : index
    %0 = vector.load %arg1[%c0, %c0_0] : memref<256x128xf32, #tpu.memory_space<vmem>>, vector<256x128xf32>
    %1 = arith.truncf %0 : vector<256x128xf32> to vector<256x128xbf16>
    %c0_1 = arith.constant 0 : index
    %c0_2 = arith.constant 0 : index
    %2 = vector.load %arg2[%c0_1, %c0_2] : memref<128x256xbf16, #tpu.memory_space<vmem>>, vector<128x256xbf16>
    %cst = arith.constant dense<0.000000e+00> : vector<256x256xf32>
    %3 = tpu.matmul %1, %2, %cst {dimension_numbers = #tpu.dot_dimension_numbers<[1], [0], [0], [1], [0, 0, 1, 1], [], []>} : vector<256x128xbf16>, vector<128x256xbf16>, vector<256x256xf32> -> vector<256x256xf32>
    %c0_3 = arith.constant 0 : index
    %c0_4 = arith.constant 0 : index
    %4 = vector.load %arg3[%c0_3, %c0_4] : memref<1x256xf32, #tpu.memory_space<vmem>>, vector<1x256xf32>
    %5 = vector.broadcast %4 : vector<1x256xf32> to vector<256x256xf32>
    %6 = arith.addf %3, %5 : vector<256x256xf32>
    %7 = arith.truncf %6 : vector<256x256xf32> to vector<256x256xbf16>
    %c0_5 = arith.constant 0 : index
    %c0_6 = arith.constant 0 : index
    %c0_7 = arith.constant 0 : index
    %8 = vector.load %arg4[%c0_5, %c0_6, %c0_7] : memref<3x256x256xbf16, #tpu.memory_space<vmem>>, vector<1x256x256xbf16>
    %9 = vector.shape_cast %8 : vector<1x256x256xbf16> to vector<256x256xbf16>
    %cst_8 = arith.constant dense<0.000000e+00> : vector<256x256xf32>
    %10 = tpu.matmul %7, %9, %cst_8 {dimension_numbers = #tpu.dot_dimension_numbers<[1], [0], [0], [1], [0, 0, 1, 1], [], []>} : vector<256x256xbf16>, vector<256x256xbf16>, vector<256x256xf32> -> vector<256x256xf32>
    %c0_9 = arith.constant 0 : index
    %c0_10 = arith.constant 0 : index
    %c0_11 = arith.constant 0 : index
    %11 = vector.load %arg5[%c0_9, %c0_10, %c0_11] : memref<3x1x256xf32, #tpu.memory_space<vmem>>, vector<1x1x256xf32>
    %12 = vector.shape_cast %11 : vector<1x1x256xf32> to vector<1x256xf32>
    %13 = vector.broadcast %12 : vector<1x256xf32> to vector<256x256xf32>
    %14 = arith.addf %10, %13 : vector<256x256xf32>
    %cst_12 = arith.constant 0.00999999977 : f32
    %15 = vector.broadcast %cst_12 : f32 to vector<256x256xf32>
    %16 = arith.mulf %15, %14 : vector<256x256xf32>
    %17 = arith.maximumf %14, %16 : vector<256x256xf32>
    %18 = arith.addf %6, %17 : vector<256x256xf32>
    %19 = arith.truncf %18 : vector<256x256xf32> to vector<256x256xbf16>
    %c1 = arith.constant 1 : index
    %c0_13 = arith.constant 0 : index
    %c0_14 = arith.constant 0 : index
    %20 = vector.load %arg4[%c1, %c0_13, %c0_14] : memref<3x256x256xbf16, #tpu.memory_space<vmem>>, vector<1x256x256xbf16>
    %21 = vector.shape_cast %20 : vector<1x256x256xbf16> to vector<256x256xbf16>
    %cst_15 = arith.constant dense<0.000000e+00> : vector<256x256xf32>
    %22 = tpu.matmul %19, %21, %cst_15 {dimension_numbers = #tpu.dot_dimension_numbers<[1], [0], [0], [1], [0, 0, 1, 1], [], []>} : vector<256x256xbf16>, vector<256x256xbf16>, vector<256x256xf32> -> vector<256x256xf32>
    %c1_16 = arith.constant 1 : index
    %c0_17 = arith.constant 0 : index
    %c0_18 = arith.constant 0 : index
    %23 = vector.load %arg5[%c1_16, %c0_17, %c0_18] : memref<3x1x256xf32, #tpu.memory_space<vmem>>, vector<1x1x256xf32>
    %24 = vector.shape_cast %23 : vector<1x1x256xf32> to vector<1x256xf32>
    %25 = vector.broadcast %24 : vector<1x256xf32> to vector<256x256xf32>
    %26 = arith.addf %22, %25 : vector<256x256xf32>
    %cst_19 = arith.constant 0.00999999977 : f32
    %27 = vector.broadcast %cst_19 : f32 to vector<256x256xf32>
    %28 = arith.mulf %27, %26 : vector<256x256xf32>
    %29 = arith.maximumf %26, %28 : vector<256x256xf32>
    %30 = arith.addf %18, %29 : vector<256x256xf32>
    %31 = arith.truncf %30 : vector<256x256xf32> to vector<256x256xbf16>
    %c2 = arith.constant 2 : index
    %c0_20 = arith.constant 0 : index
    %c0_21 = arith.constant 0 : index
    %32 = vector.load %arg4[%c2, %c0_20, %c0_21] : memref<3x256x256xbf16, #tpu.memory_space<vmem>>, vector<1x256x256xbf16>
    %33 = vector.shape_cast %32 : vector<1x256x256xbf16> to vector<256x256xbf16>
    %cst_22 = arith.constant dense<0.000000e+00> : vector<256x256xf32>
    %34 = tpu.matmul %31, %33, %cst_22 {dimension_numbers = #tpu.dot_dimension_numbers<[1], [0], [0], [1], [0, 0, 1, 1], [], []>} : vector<256x256xbf16>, vector<256x256xbf16>, vector<256x256xf32> -> vector<256x256xf32>
    %c2_23 = arith.constant 2 : index
    %c0_24 = arith.constant 0 : index
    %c0_25 = arith.constant 0 : index
    %35 = vector.load %arg5[%c2_23, %c0_24, %c0_25] : memref<3x1x256xf32, #tpu.memory_space<vmem>>, vector<1x1x256xf32>
    %36 = vector.shape_cast %35 : vector<1x1x256xf32> to vector<1x256xf32>
    %37 = vector.broadcast %36 : vector<1x256xf32> to vector<256x256xf32>
    %38 = arith.addf %34, %37 : vector<256x256xf32>
    %cst_26 = arith.constant 0.00999999977 : f32
    %39 = vector.broadcast %cst_26 : f32 to vector<256x256xf32>
    %40 = arith.mulf %39, %38 : vector<256x256xf32>
    %41 = arith.maximumf %38, %40 : vector<256x256xf32>
    %42 = arith.addf %30, %41 : vector<256x256xf32>
    %43 = arith.truncf %42 : vector<256x256xf32> to vector<256x256xbf16>
    %c0_27 = arith.constant 0 : index
    %c0_28 = arith.constant 0 : index
    %44 = vector.load %arg6[%c0_27, %c0_28] : memref<256x128xbf16, #tpu.memory_space<vmem>>, vector<256x128xbf16>
    %cst_29 = arith.constant dense<0.000000e+00> : vector<256x128xf32>
    %45 = tpu.matmul %43, %44, %cst_29 {dimension_numbers = #tpu.dot_dimension_numbers<[1], [0], [0], [1], [0, 0, 1, 1], [], []>} : vector<256x256xbf16>, vector<256x128xbf16>, vector<256x128xf32> -> vector<256x128xf32>
    %c0_30 = arith.constant 0 : index
    %c0_31 = arith.constant 0 : index
    %46 = vector.load %arg7[%c0_30, %c0_31] : memref<1x128xf32, #tpu.memory_space<vmem>>, vector<1x128xf32>
    %47 = vector.broadcast %46 : vector<1x128xf32> to vector<256x128xf32>
    %48 = arith.addf %45, %47 : vector<256x128xf32>
    %c0_32 = arith.constant 0 : index
    %c0_33 = arith.constant 0 : index
    %49 = vector.load %arg8[%c0_32, %c0_33] : memref<256x128xf32, #tpu.memory_space<vmem>>, vector<256x128xf32>
    tpu.vector_store %arg8[%c0_32, %c0_33], %48 {strides = array<i32>} : memref<256x128xf32, #tpu.memory_space<vmem>>, vector<256x128xf32>,
    return
  }
  func.func @transform_0(%arg0: i32) -> (i32, i32) {
    %c0_i32 = arith.constant 0 : i32
    %c0_i32_0 = arith.constant 0 : i32
    return %arg0, %c0_i32 : i32, i32
  }
  func.func @transform_1(%arg0: i32) -> (i32, i32) {
    %c0_i32 = arith.constant 0 : i32
    %c0_i32_0 = arith.constant 0 : i32
    %c0_i32_1 = arith.constant 0 : i32
    return %c0_i32, %c0_i32_0 : i32, i32
  }
  func.func @transform_2(%arg0: i32) -> (i32, i32) {
    %c0_i32 = arith.constant 0 : i32
    %c0_i32_0 = arith.constant 0 : i32
    %c0_i32_1 = arith.constant 0 : i32
    return %c0_i32, %c0_i32_0 : i32, i32
  }
  func.func @transform_3(%arg0: i32) -> (i32, i32, i32) {
    %c0_i32 = arith.constant 0 : i32
    %c0_i32_0 = arith.constant 0 : i32
    %c0_i32_1 = arith.constant 0 : i32
    %c0_i32_2 = arith.constant 0 : i32
    return %c0_i32, %c0_i32_0, %c0_i32_1 : i32, i32, i32
  }
  func.func @transform_4(%arg0: i32) -> (i32, i32, i32) {
    %c0_i32 = arith.constant 0 : i32
    %c0_i32_0 = arith.constant 0 : i32
    %c0_i32_1 = arith.constant 0 : i32
    %c0_i32_2 = arith.constant 0 : i32
    return %c0_i32, %c0_i32_0, %c0_i32_1 : i32, i32, i32
  }
  func.func @transform_5(%arg0: i32) -> (i32, i32) {
    %c0_i32 = arith.constant 0 : i32
    %c0_i32_0 = arith.constant 0 : i32
    %c0_i32_1 = arith.constant 0 : i32
    return %c0_i32, %c0_i32_0 : i32, i32
  }
  func.func @transform_6(%arg0: i32) -> (i32, i32) {
    %c0_i32 = arith.constant 0 : i32
    %c0_i32_0 = arith.constant 0 : i32
    %c0_i32_1 = arith.constant 0 : i32
    return %c0_i32, %c0_i32_0 : i32, i32
  }
  func.func @transform_7(%arg0: i32) -> (i32, i32) {
    %c0_i32 = arith.constant 0 : i32
    %c0_i32_0 = arith.constant 0 : i32
    return %arg0, %c0_i32 : i32, i32
  }
}

</mosaic_0001>

<llo_original>
// kernel: tpu_custom_call.1
$region0: #{tpu_custom_call.1}
  #allocation0 [shape = 'u32[]', space=smem, size = 0x4, offset = 0x4, fixed_abs, tag = 'smem constant byte address 0x4 - core index']
  #allocation1 [shape = 'u32[72,128]{1,0:T(1,128)}', space=vmem, size = 0x9000, scoped, tag = 'internal scratch']
  %s0 = inlined_call_operand.hbm [shape: f32[384,128], index: 0, kind: input, shape index: {}]
  %s1 = inlined_call_operand.hbm [shape: bf16[128,256], index: 1, kind: input, shape index: {}]
  %s2 = inlined_call_operand.hbm [shape: f32[1,256], index: 2, kind: input, shape index: {}]
  %s3 = inlined_call_operand.hbm [shape: bf16[3,256,256], index: 3, kind: input, shape index: {}]
  %s4 = inlined_call_operand.hbm [shape: f32[3,1,256], index: 4, kind: input, shape index: {}]
  %s5 = inlined_call_operand.hbm [shape: bf16[256,128], index: 5, kind: input, shape index: {}]
  %s6 = inlined_call_operand.vmem [shape: f32[1,128], index: 6, kind: input, shape index: {}]
  %s7 = inlined_call_operand.hbm [shape: f32[384,128], index: 7, kind: output, shape index: {}]
  %s8 = sld [smem:[#allocation0]]
  $region85: #{tpu_custom_call.1} parent=0
    _
  %s10 = ssub.s32 1, %s8
  %s11 = scalar_select 0, %s10, %s8
  $region1: #{tpu_custom_call.1} parent=0
    #allocation2 [shape = 'u8[262144]{0}', space=vmem, size = 0x40000, scoped, tag = 'input window, operand 0']
    #allocation3 [shape = 's32[2]{0}', space=sflag, size = 0x8, scoped, tag = 'scoped memory for tpu_custom_call.1']
    #allocation4 [shape = 's32[2]{0}', space=sflag, size = 0x8, scoped, tag = 'scoped memory for tpu_custom_call.1']
    #allocation5 [shape = 'u8[65536]{0}', space=vmem, size = 0x10000, scoped, tag = 'input window, operand 1, single buffered']
    #allocation6 [shape = 's32[1]{0}', space=sflag, size = 0x4, scoped, tag = 'scoped memory for tpu_custom_call.1']
    #allocation7 [shape = 'u8[1024]{0}', space=vmem, size = 0x400, scoped, tag = 'input window, operand 2, single buffered']
    #allocation8 [shape = 'u8[393216]{0}', space=vmem, size = 0x60000, scoped, tag = 'input window, operand 3, single buffered']
    #allocation9 [shape = 's32[1]{0}', space=sflag, size = 0x4, scoped, tag = 'scoped memory for tpu_custom_call.1']
    #allocation10 [shape = 'u8[3072]{0}', space=vmem, size = 0xc00, scoped, tag = 'input window, operand 4, single buffered']
    #allocation11 [shape = 'u8[65536]{0}', space=vmem, size = 0x10000, scoped, tag = 'input window, operand 5, single buffered']
    #allocation12 [shape = 's32[1]{0}', space=sflag, size = 0x4, scoped, tag = 'scoped memory for tpu_custom_call.1']
    #allocation13 [shape = 'u8[262144]{0}', space=vmem, size = 0x40000, scoped, tag = 'output window, operand 0']
    %12 = vsyncpa [#allocation3], 0
    %s13 = scalar_lea.sflag [#allocation3], 1
    %14 = vsyncpa %s13, 0
    %15 = vsyncpa [#allocation6], 0
    %16 = vsyncpa [#allocation9], 0
    %17 = vsyncpa [#allocation12], 0
    %18 = vsyncpa [#allocation4], 0
    %s19 = scalar_lea.sflag [#allocation4], 1
    %20 = vsyncpa %s19, 0
    loop: start=0, step=1, limit=4
    $region2: #{tpu_custom_call.1} parent=1 // loop_pre_header
      _
    $region3: #{tpu_custom_call.1} parent=1 // loop_header
      %s22 = sphi 0, %s26
      %p23 = scmp.ge.s32.totalorder %s22, 4
      %s32 = sphi 0, %s34
      %s35 = sphi 0, %s32
      %s36 = sphi 0, %s35
      %s52 = sphi 0, %s36
      %s56 = sphi 0, %s56
      %s58 = sphi 0, %s56
      %s59 = sphi 0, %s58
      %s73 = sphi 0, %s59
      %s77 = sphi 0, %s77
      %s79 = sphi 0, %s77
      %s80 = sphi 0, %s79
      %s94 = sphi 0, %s80
      %s98 = sphi 0, %s98
      %s100 = sphi 0, %s98
      %s101 = sphi 0, %s100
      %s115 = sphi 0, %s101
      %s119 = sphi 0, %s119
      %s121 = sphi 0, %s119
      %s122 = sphi 0, %s121
      %s136 = sphi 0, %s122
      %s140 = sphi 0, %s140
      %s142 = sphi 0, %s140
      %s143 = sphi 0, %s142
      %s157 = sphi 0, %s143
      %s161 = sphi 0, %s161
      %s163 = sphi 0, %s161
      %s164 = sphi 0, %s163
      %s178 = sphi 0, %s164
      %s184 = sphi 0, %s186
      %s187 = sphi 0, %s184
      %s188 = sphi 0, %s187
      %s204 = sphi 0, %s188
    $region4: #{tpu_custom_call.1} parent=1 // loop_header_branch
      %25 = sbr.rel (%p23) target = $region8
    $region5: #{tpu_custom_call.1} parent=1 // loop_body
      %s27 = ssub.s32 %s22, 1
      %s28 = ssub.s32 %s22, 2
      %s29 = sadd.s32 %s22, 1
      %s30 = ssub.s32 %s22, %s29
      %p31 = scmp.eq.s32.totalorder %s30, 0
      %s33 = sadd.s32 %s32, 1
      %s34 = scalar_select %p31, %s32, %s33
      %p37 = pneg %p31
      %p38 = scmp.eq.s32.totalorder %s22, 1
      %p39 = por %p37, %p38
      %p40 = scmp.ne.s32.totalorder %s32, %s35
      %p41 = scmp.eq.s32.totalorder %s22, 0
      %p42 = por %p40, %p41
      %p43 = scmp.ne.s32.totalorder %s32, %s35
      %p44 = scmp.eq.s32.totalorder %s27, 1
      %p45 = por %p43, %p44
      %p46 = scmp.ne.s32.totalorder %s35, %s36
      %p47 = scmp.eq.s32.totalorder %s27, 0
      %p48 = por %p46, %p47
      %p49 = scmp.ne.s32.totalorder %s35, %s36
      %p50 = scmp.eq.s32.totalorder %s28, 1
      %p51 = por %p49, %p50
      %p53 = scmp.ne.s32.totalorder %s36, %s52
      %p54 = scmp.eq.s32.totalorder %s28, 0
      %p55 = por %p53, %p54
      %s57 = sadd.s32 %s56, 1
      %p60 = scmp.eq.s32.totalorder %s22, 1
      %p61 = scmp.ne.s32.totalorder %s56, %s58
      %p62 = scmp.eq.s32.totalorder %s22, 0
      %p63 = por %p61, %p62
      %p64 = scmp.ne.s32.totalorder %s56, %s58
      %p65 = scmp.eq.s32.totalorder %s27, 1
      %p66 = por %p64, %p65
      %p67 = scmp.ne.s32.totalorder %s58, %s59
      %p68 = scmp.eq.s32.totalorder %s27, 0
      %p69 = por %p67, %p68
      %p70 = scmp.ne.s32.totalorder %s58, %s59
      %p71 = scmp.eq.s32.totalorder %s28, 1
      %p72 = por %p70, %p71
      %p74 = scmp.ne.s32.totalorder %s59, %s73
      %p75 = scmp.eq.s32.totalorder %s28, 0
      %p76 = por %p74, %p75
      %s78 = sadd.s32 %s77, 1
      %p81 = scmp.eq.s32.totalorder %s22, 1
      %p82 = scmp.ne.s32.totalorder %s77, %s79
      %p83 = scmp.eq.s32.totalorder %s22, 0
      %p84 = por %p82, %p83
      %p85 = scmp.ne.s32.totalorder %s77, %s79
      %p86 = scmp.eq.s32.totalorder %s27, 1
      %p87 = por %p85, %p86
      %p88 = scmp.ne.s32.totalorder %s79, %s80
      %p89 = scmp.eq.s32.totalorder %s27, 0
      %p90 = por %p88, %p89
      %p91 = scmp.ne.s32.totalorder %s79, %s80
      %p92 = scmp.eq.s32.totalorder %s28, 1
      %p93 = por %p91, %p92
      %p95 = scmp.ne.s32.totalorder %s80, %s94
      %p96 = scmp.eq.s32.totalorder %s28, 0
      %p97 = por %p95, %p96
      %s99 = sadd.s32 %s98, 1
      %p102 = scmp.eq.s32.totalorder %s22, 1
      %p103 = scmp.ne.s32.totalorder %s98, %s100
      %p104 = scmp.eq.s32.totalorder %s22, 0
      %p105 = por %p103, %p104
      %p106 = scmp.ne.s32.totalorder %s98, %s100
      %p107 = scmp.eq.s32.totalorder %s27, 1
      %p108 = por %p106, %p107
      %p109 = scmp.ne.s32.totalorder %s100, %s101
      %p110 = scmp.eq.s32.totalorder %s27, 0
      %p111 = por %p109, %p110
      %p112 = scmp.ne.s32.totalorder %s100, %s101
      %p113 = scmp.eq.s32.totalorder %s28, 1
      %p114 = por %p112, %p113
      %p116 = scmp.ne.s32.totalorder %s101, %s115
      %p117 = scmp.eq.s32.totalorder %s28, 0
      %p118 = por %p116, %p117
      %s120 = sadd.s32 %s119, 1
      %p123 = scmp.eq.s32.totalorder %s22, 1
      %p124 = scmp.ne.s32.totalorder %s119, %s121
      %p125 = scmp.eq.s32.totalorder %s22, 0
      %p126 = por %p124, %p125
      %p127 = scmp.ne.s32.totalorder %s119, %s121
      %p128 = scmp.eq.s32.totalorder %s27, 1
      %p129 = por %p127, %p128
      %p130 = scmp.ne.s32.totalorder %s121, %s122
      %p131 = scmp.eq.s32.totalorder %s27, 0
      %p132 = por %p130, %p131
      %p133 = scmp.ne.s32.totalorder %s121, %s122
      %p134 = scmp.eq.s32.totalorder %s28, 1
      %p135 = por %p133, %p134
      %p137 = scmp.ne.s32.totalorder %s122, %s136
      %p138 = scmp.eq.s32.totalorder %s28, 0
      %p139 = por %p137, %p138
      %s141 = sadd.s32 %s140, 1
      %p144 = scmp.eq.s32.totalorder %s22, 1
      %p145 = scmp.ne.s32.totalorder %s140, %s142
      %p146 = scmp.eq.s32.totalorder %s22, 0
      %p147 = por %p145, %p146
      %p148 = scmp.ne.s32.totalorder %s140, %s142
      %p149 = scmp.eq.s32.totalorder %s27, 1
      %p150 = por %p148, %p149
      %p151 = scmp.ne.s32.totalorder %s142, %s143
      %p152 = scmp.eq.s32.totalorder %s27, 0
      %p153 = por %p151, %p152
      %p154 = scmp.ne.s32.totalorder %s142, %s143
      %p155 = scmp.eq.s32.totalorder %s28, 1
      %p156 = por %p154, %p155
      %p158 = scmp.ne.s32.totalorder %s143, %s157
      %p159 = scmp.eq.s32.totalorder %s28, 0
      %p160 = por %p158, %p159
      %s162 = sadd.s32 %s161, 1
      %p165 = scmp.eq.s32.totalorder %s22, 1
      %p166 = scmp.ne.s32.totalorder %s161, %s163
      %p167 = scmp.eq.s32.totalorder %s22, 0
      %p168 = por %p166, %p167
      %p169 = scmp.ne.s32.totalorder %s161, %s163
      %p170 = scmp.eq.s32.totalorder %s27, 1
      %p171 = por %p169, %p170
      %p172 = scmp.ne.s32.totalorder %s163, %s164
      %p173 = scmp.eq.s32.totalorder %s27, 0
      %p174 = por %p172, %p173
      %p175 = scmp.ne.s32.totalorder %s163, %s164
      %p176 = scmp.eq.s32.totalorder %s28, 1
      %p177 = por %p175, %p176
      %p179 = scmp.ne.s32.totalorder %s164, %s178
      %p180 = scmp.eq.s32.totalorder %s28, 0
      %p181 = por %p179, %p180
      %s182 = ssub.s32 %s22, %s29
      %p183 = scmp.eq.s32.totalorder %s182, 0
      %s185 = sadd.s32 %s184, 1
      %s186 = scalar_select %p183, %s184, %s185
      %p189 = pneg %p183
      %p190 = scmp.eq.s32.totalorder %s22, 1
      %p191 = por %p189, %p190
      %p192 = scmp.ne.s32.totalorder %s184, %s187
      %p193 = scmp.eq.s32.totalorder %s22, 0
      %p194 = por %p192, %p193
      %p195 = scmp.ne.s32.totalorder %s184, %s187
      %p196 = scmp.eq.s32.totalorder %s27, 1
      %p197 = por %p195, %p196
      %p198 = scmp.ne.s32.totalorder %s187, %s188
      %p199 = scmp.eq.s32.totalorder %s27, 0
      %p200 = por %p198, %p199
      %p201 = scmp.ne.s32.totalorder %s187, %s188
      %p202 = scmp.eq.s32.totalorder %s28, 1
      %p203 = por %p201, %p202
      %p205 = scmp.ne.s32.totalorder %s188, %s204
      %p206 = scmp.eq.s32.totalorder %s28, 0
      %p207 = por %p205, %p206
      %p208 = scmp.le.s32.totalorder 1, %s22
      %p209 = scmp.lt.s32.totalorder %s22, 3
      %p210 = pnand %p208, %p209
      %p211 = pneg %p210
      // Predicated region
      $region9: #{tpu_custom_call.1} parent=5 // pred_check
        _
      $region10: #{tpu_custom_call.1} parent=5 // pred_check_branch
        %213 = sbr.rel (%p210) target = $region12
      $region11: #{tpu_custom_call.1} parent=5 // pred_region
        %s214 = ssub.s32 %s22, 1
        // Predicated region
        $region13: #{tpu_custom_call.1} parent=11 // pred_check
          %p215 = pneg %p69
        $region14: #{tpu_custom_call.1} parent=11 // pred_check_branch
          %217 = sbr.rel (%p215) target = $region16
        $region15: #{tpu_custom_call.1} parent=11 // pred_region
          %219 = vsyncadd [#allocation6], 0
          %s220 = sshll.u32 %s1, 4
          %s221 = int_to_ptr.hbm [resolvable:$true] %s220
          %s222 = sshll.u32 [#allocation5], 4
          %s223 = int_to_ptr.vmem [resolvable:$true] %s222
          %228 = dma.hbm_to_vmem [thread:$0]  %s221, 2048, %s223, [#allocation6], 128, 128, 8
        $region16: #{tpu_custom_call.1} parent=11 // pred_fallthru
          _
        // Predicated region
        $region17: #{tpu_custom_call.1} parent=11 // pred_check
          %p229 = pneg %p90
        $region18: #{tpu_custom_call.1} parent=11 // pred_check_branch
          %231 = sbr.rel (%p229) target = $region20
        $region19: #{tpu_custom_call.1} parent=11 // pred_region
          %233 = vsyncadd [#allocation6], 0
          %s235 = sshll.u32 %s2, 4
          %s236 = int_to_ptr.hbm [resolvable:$true] %s235
          %s237 = sshll.u32 [#allocation7], 4
          %s238 = int_to_ptr.vmem [resolvable:$true] %s237
          %240 = dma.hbm_to_vmem [thread:$0]  %s236, 32, %s238, [#allocation6]
        $region20: #{tpu_custom_call.1} parent=11 // pred_fallthru
          _
        // Predicated region
        $region21: #{tpu_custom_call.1} parent=11 // pred_check
          %p241 = pneg %p111
        $region22: #{tpu_custom_call.1} parent=11 // pred_check_branch
          %243 = sbr.rel (%p241) target = $region24
        $region23: #{tpu_custom_call.1} parent=11 // pred_region
          %245 = vsyncadd [#allocation9], 0
          %s246 = sshll.u32 %s3, 4
          %s247 = int_to_ptr.hbm [resolvable:$true] %s246
          %s248 = sshll.u32 [#allocation8], 4
          %s249 = int_to_ptr.vmem [resolvable:$true] %s248
          %254 = dma.hbm_to_vmem [thread:$0]  %s247, 12288, %s249, [#allocation9], 128, 128, 8
        $region24: #{tpu_custom_call.1} parent=11 // pred_fallthru
          _
        // Predicated region
        $region25: #{tpu_custom_call.1} parent=11 // pred_check
          %p255 = pneg %p132
        $region26: #{tpu_custom_call.1} parent=11 // pred_check_branch
          %257 = sbr.rel (%p255) target = $region28
        $region27: #{tpu_custom_call.1} parent=11 // pred_region
          %259 = vsyncadd [#allocation9], 0
          %s260 = sshll.u32 %s4, 4
          %s261 = int_to_ptr.hbm [resolvable:$true] %s260
          %s262 = sshll.u32 [#allocation10], 4
          %s263 = int_to_ptr.vmem [resolvable:$true] %s262
          %268 = dma.hbm_to_vmem [thread:$0]  %s261, 96, %s263, [#allocation9], 32, 32, 2
        $region28: #{tpu_custom_call.1} parent=11 // pred_fallthru
          _
        // Predicated region
        $region29: #{tpu_custom_call.1} parent=11 // pred_check
          %p269 = pneg %p153
        $region30: #{tpu_custom_call.1} parent=11 // pred_check_branch
          %271 = sbr.rel (%p269) target = $region32
        $region31: #{tpu_custom_call.1} parent=11 // pred_region
          %273 = vsyncadd [#allocation12], 0
          %s274 = sshll.u32 %s5, 4
          %s275 = int_to_ptr.hbm [resolvable:$true] %s274
          %s276 = sshll.u32 [#allocation11], 4
          %s277 = int_to_ptr.vmem [resolvable:$true] %s276
          %282 = dma.hbm_to_vmem [thread:$0]  %s275, 2048, %s277, [#allocation12], 64, 64, 4
        $region32: #{tpu_custom_call.1} parent=11 // pred_fallthru
          _
        // Predicated region
        $region33: #{tpu_custom_call.1} parent=11 // pred_check
          %p283 = pneg %p174
        $region34: #{tpu_custom_call.1} parent=11 // pred_check_branch
          %285 = sbr.rel (%p283) target = $region36
        $region35: #{tpu_custom_call.1} parent=11 // pred_region
          _
        $region36: #{tpu_custom_call.1} parent=11 // pred_fallthru
          _
      $region12: #{tpu_custom_call.1} parent=5 // pred_fallthru
        _
      %p286 = scmp.lt.s32.totalorder %s22, 2
      // Predicated region
      $region37: #{tpu_custom_call.1} parent=5 // pred_check
        %p287 = pneg %p286
      $region38: #{tpu_custom_call.1} parent=5 // pred_check_branch
        %289 = sbr.rel (%p287) target = $region40
      $region39: #{tpu_custom_call.1} parent=5 // pred_region
        // Predicated region
        $region41: #{tpu_custom_call.1} parent=39 // pred_check
          %p290 = pneg %p42
        $region42: #{tpu_custom_call.1} parent=39 // pred_check_branch
          %292 = sbr.rel (%p290) target = $region44
        $region43: #{tpu_custom_call.1} parent=39 // pred_region
          %s293 = sand.u32 %s32, 1
          %s294 = scalar_lea.sflag [#allocation3], %s293
          %s295 = sand.u32 %s32, 1
          %s296 = smul.addr %s295, 256
          %s297 = scalar_lea.vmem [#allocation2], %s296
          %s298 = smul.u32 32, %s22
          %s299 = ssub.s32 48, %s298
          %p300 = scmp.lt.s32.totalorder %s299, 32
          %s301 = scalar_select %p300, %s299, 32
          %s302 = smul.u32 8, %s301
          %s303 = ssub.s32 256, %s302
          %s304 = sshll.u32 %s303, 4
          %305 = vsyncadd %s294, %s304
          %p306 = scmp.ne.s32.totalorder 0, %s302
          %s307 = smul.addr %s298, 8
          %s308 = scalar_lea.hbm %s0, %s307
          %s309 = smul.u32 8, %s301
          %s310 = sshll.u32 %s308, 4
          %s311 = int_to_ptr.hbm [resolvable:$true] %s310
          %s312 = sshll.u32 %s297, 4
          %s313 = int_to_ptr.vmem [resolvable:$true] %s312
          %s314 = sshll.u32 %s309, 4
          %318 = dma.hbm_to_vmem [thread:$0]  (%p306), %s311, %s314, %s313, %s294, 128, 128, 8
        $region44: #{tpu_custom_call.1} parent=39 // pred_fallthru
          _
      $region40: #{tpu_custom_call.1} parent=5 // pred_fallthru
        _
      %p319 = scmp.le.s32.totalorder 1, %s22
      %p320 = scmp.lt.s32.totalorder %s22, 3
      %p321 = pnand %p319, %p320
      %p322 = pneg %p321
      // Predicated region
      $region45: #{tpu_custom_call.1} parent=5 // pred_check
        _
      $region46: #{tpu_custom_call.1} parent=5 // pred_check_branch
        %324 = sbr.rel (%p321) target = $region48
      $region47: #{tpu_custom_call.1} parent=5 // pred_region
        %s325 = ssub.s32 %s22, 1
        %s326 = sand.u32 %s35, 1
        %s327 = scalar_lea.sflag [#allocation3], %s326
        %s328 = sand.u32 %s35, 1
        %s329 = smul.addr %s328, 256
        %s330 = scalar_lea.vmem [#allocation2], %s329
        // Predicated region
        $region49: #{tpu_custom_call.1} parent=47 // pred_check
          %p331 = pneg %p48
        $region50: #{tpu_custom_call.1} parent=47 // pred_check_branch
          %333 = sbr.rel (%p331) target = $region52
        $region51: #{tpu_custom_call.1} parent=47 // pred_region
          %335 = dma.done %s327, 4096
        $region52: #{tpu_custom_call.1} parent=47 // pred_fallthru
          _
        // Predicated region
        $region53: #{tpu_custom_call.1} parent=47 // pred_check
          %p336 = pneg %p69
        $region54: #{tpu_custom_call.1} parent=47 // pred_check_branch
          %338 = sbr.rel (%p336) target = $region56
        $region55: #{tpu_custom_call.1} parent=47 // pred_region
          %340 = dma.done [#allocation6], 2048
        $region56: #{tpu_custom_call.1} parent=47 // pred_fallthru
          _
        // Predicated region
        $region57: #{tpu_custom_call.1} parent=47 // pred_check
          %p341 = pneg %p90
        $region58: #{tpu_custom_call.1} parent=47 // pred_check_branch
          %343 = sbr.rel (%p341) target = $region60
        $region59: #{tpu_custom_call.1} parent=47 // pred_region
          %345 = dma.done [#allocation6], 32
        $region60: #{tpu_custom_call.1} parent=47 // pred_fallthru
          _
        // Predicated region
        $region61: #{tpu_custom_call.1} parent=47 // pred_check
          %p346 = pneg %p111
        $region62: #{tpu_custom_call.1} parent=47 // pred_check_branch
          %348 = sbr.rel (%p346) target = $region64
        $region63: #{tpu_custom_call.1} parent=47 // pred_region
          %350 = dma.done [#allocation9], 12288
        $region64: #{tpu_custom_call.1} parent=47 // pred_fallthru
          _
        // Predicated region
        $region65: #{tpu_custom_call.1} parent=47 // pred_check
          %p351 = pneg %p132
        $region66: #{tpu_custom_call.1} parent=47 // pred_check_branch
          %353 = sbr.rel (%p351) target = $region68
        $region67: #{tpu_custom_call.1} parent=47 // pred_region
          %355 = dma.done [#allocation9], 96
        $region68: #{tpu_custom_call.1} parent=47 // pred_fallthru
          _
        // Predicated region
        $region69: #{tpu_custom_call.1} parent=47 // pred_check
          %p356 = pneg %p153
        $region70: #{tpu_custom_call.1} parent=47 // pred_check_branch
          %358 = sbr.rel (%p356) target = $region72
        $region71: #{tpu_custom_call.1} parent=47 // pred_region
          %360 = dma.done [#allocation12], 2048
        $region72: #{tpu_custom_call.1} parent=47 // pred_fallthru
          _
        %s361 = sand.u32 %s35, 1
        %s362 = scalar_lea.sflag [#allocation3], %s361
        %s363 = sand.u32 %s35, 1
        %s364 = smul.addr %s363, 256
        %s365 = scalar_lea.vmem [#allocation2], %s364
        %p366 = pneg %p48
        %p367 = pneg %p45
        %p368 = pneg %p69
        %p369 = pneg %p66
        %p370 = pneg %p90
        %p371 = pneg %p87
        %p372 = pneg %p111
        %p373 = pneg %p108
        %p374 = pneg %p132
        %p375 = pneg %p129
        %p376 = pneg %p153
        %p377 = pneg %p150
        %p378 = pneg %p174
        %p379 = pneg %p171
        %p380 = pneg %p200
        %p381 = pneg %p197
        %s382 = sand.u32 %s187, 1
        %s383 = scalar_lea.sflag [#allocation4], %s382
        %s384 = sand.u32 %s187, 1
        %s385 = smul.addr %s384, 256
        %s386 = scalar_lea.vmem [#allocation13], %s385
        %s387 = smul.u32 32, %s27
        %s388 = ssub.s32 48, %s387
        %p389 = scmp.lt.s32.totalorder %s388, 32
        %s390 = scalar_select %p389, %s388, 32
        %s391 = smul.u32 8, %s390
        %s392 = smul.u32 32, %s27
        %s393 = ssub.s32 48, %s392
        %p394 = scmp.lt.s32.totalorder %s393, 32
        %s395 = scalar_select %p394, %s393, 32
        %s396 = smul.u32 8, %s395
        %v397 = vld [vmem:[%s330] sm:$0xff]
        %v398 = vld [vmem:[%s330 + $0x8] sm:$0xff]
        %v399 = vld [vmem:[%s330 + $0x10] sm:$0xff]
        %v400 = vld [vmem:[%s330 + $0x18] sm:$0xff]
        %v401 = vld [vmem:[%s330 + $0x20] sm:$0xff]
        %v402 = vld [vmem:[%s330 + $0x28] sm:$0xff]
        %v403 = vld [vmem:[%s330 + $0x30] sm:$0xff]
        %v404 = vld [vmem:[%s330 + $0x38] sm:$0xff]
        %v405 = vld [vmem:[%s330 + $0x40] sm:$0xff]
        %v406 = vld [vmem:[%s330 + $0x48] sm:$0xff]
        %v407 = vld [vmem:[%s330 + $0x50] sm:$0xff]
        %v408 = vld [vmem:[%s330 + $0x58] sm:$0xff]
        %v409 = vld [vmem:[%s330 + $0x60] sm:$0xff]
        %v410 = vld [vmem:[%s330 + $0x68] sm:$0xff]
        %v411 = vld [vmem:[%s330 + $0x70] sm:$0xff]
        %v412 = vld [vmem:[%s330 + $0x78] sm:$0xff]
        %v413 = vld [vmem:[%s330 + $0x80] sm:$0xff]
        %v414 = vld [vmem:[%s330 + $0x88] sm:$0xff]
        %v415 = vld [vmem:[%s330 + $0x90] sm:$0xff]
        %v416 = vld [vmem:[%s330 + $0x98] sm:$0xff]
        %v417 = vld [vmem:[%s330 + $0xa0] sm:$0xff]
        %v418 = vld [vmem:[%s330 + $0xa8] sm:$0xff]
        %v419 = vld [vmem:[%s330 + $0xb0] sm:$0xff]
        %v420 = vld [vmem:[%s330 + $0xb8] sm:$0xff]
        %v421 = vld [vmem:[%s330 + $0xc0] sm:$0xff]
        %v422 = vld [vmem:[%s330 + $0xc8] sm:$0xff]
        %v423 = vld [vmem:[%s330 + $0xd0] sm:$0xff]
        %v424 = vld [vmem:[%s330 + $0xd8] sm:$0xff]
        %v425 = vld [vmem:[%s330 + $0xe0] sm:$0xff]
        %v426 = vld [vmem:[%s330 + $0xe8] sm:$0xff]
        %v427 = vld [vmem:[%s330 + $0xf0] sm:$0xff]
        %v428 = vld [vmem:[%s330 + $0xf8] sm:$0xff]
        %v429 = vpack.c.bf16 %v398, %v397
        %v430 = vpack.c.bf16 %v400, %v399
        %v431 = vpack.c.bf16 %v402, %v401
        %v432 = vpack.c.bf16 %v404, %v403
        %v433 = vpack.c.bf16 %v406, %v405
        %v434 = vpack.c.bf16 %v408, %v407
        %v435 = vpack.c.bf16 %v410, %v409
        %v436 = vpack.c.bf16 %v412, %v411
        %v437 = vpack.c.bf16 %v414, %v413
        %v438 = vpack.c.bf16 %v416, %v415
        %v439 = vpack.c.bf16 %v418, %v417
        %v440 = vpack.c.bf16 %v420, %v419
        %v441 = vpack.c.bf16 %v422, %v421
        %v442 = vpack.c.bf16 %v424, %v423
        %v443 = vpack.c.bf16 %v426, %v425
        %v444 = vpack.c.bf16 %v428, %v427
        %v445 = vld [vmem:[#allocation5] sm:$0xff]
        %v446 = vld [vmem:[#allocation5 + $0x8] sm:$0xff]
        %v447 = vld [vmem:[#allocation5 + $0x10] sm:$0xff]
        %v448 = vld [vmem:[#allocation5 + $0x18] sm:$0xff]
        %v449 = vld [vmem:[#allocation5 + $0x20] sm:$0xff]
        %v450 = vld [vmem:[#allocation5 + $0x28] sm:$0xff]
        %v451 = vld [vmem:[#allocation5 + $0x30] sm:$0xff]
        %v452 = vld [vmem:[#allocation5 + $0x38] sm:$0xff]
        %v453 = vld [vmem:[#allocation5 + $0x40] sm:$0xff]
        %v454 = vld [vmem:[#allocation5 + $0x48] sm:$0xff]
        %v455 = vld [vmem:[#allocation5 + $0x50] sm:$0xff]
        %v456 = vld [vmem:[#allocation5 + $0x58] sm:$0xff]
        %v457 = vld [vmem:[#allocation5 + $0x60] sm:$0xff]
        %v458 = vld [vmem:[#allocation5 + $0x68] sm:$0xff]
        %v459 = vld [vmem:[#allocation5 + $0x70] sm:$0xff]
        %v460 = vld [vmem:[#allocation5 + $0x78] sm:$0xff]
        %v461 = vld [vmem:[#allocation7] sm:$0x3]
        %v463 = vperm.slane %v461, 0
        %v464 = vperm.slane %v461, 1
        %v483 = vunpack.c.l.b16 %v445
        %v484 = vunpack.c.h.b16 %v445
        %v485 = vunpack.c.l.b16 %v446
        %v486 = vunpack.c.h.b16 %v446
        %v487 = vunpack.c.l.b16 %v447
        %v488 = vunpack.c.h.b16 %v447
        %v489 = vunpack.c.l.b16 %v448
        %v490 = vunpack.c.h.b16 %v448
        %v491 = vunpack.c.l.b16 %v449
        %v492 = vunpack.c.h.b16 %v449
        %v493 = vunpack.c.l.b16 %v450
        %v494 = vunpack.c.h.b16 %v450
        %v495 = vunpack.c.l.b16 %v451
        %v496 = vunpack.c.h.b16 %v451
        %v497 = vunpack.c.l.b16 %v452
        %v498 = vunpack.c.h.b16 %v452
        %v499 = vunpack.c.l.b16 %v453
        %v500 = vunpack.c.h.b16 %v453
        %v501 = vunpack.c.l.b16 %v454
        %v502 = vunpack.c.h.b16 %v454
        %v503 = vunpack.c.l.b16 %v455
        %v504 = vunpack.c.h.b16 %v455
        %v505 = vunpack.c.l.b16 %v456
        %v506 = vunpack.c.h.b16 %v456
        %v507 = vunpack.c.l.b16 %v457
        %v508 = vunpack.c.h.b16 %v457
        %v509 = vunpack.c.l.b16 %v458
        %v510 = vunpack.c.h.b16 %v458
        %v511 = vunpack.c.l.b16 %v459
        %v512 = vunpack.c.h.b16 %v459
        %v513 = vunpack.c.l.b16 %v460
        %v514 = vunpack.c.h.b16 %v460
        %v515 = vpack.c.b16 %v485, %v483
        %v516 = vpack.c.b16 %v486, %v484
        %v517 = vpack.c.b16 %v489, %v487
        %v518 = vpack.c.b16 %v490, %v488
        %v519 = vpack.c.b16 %v493, %v491
        %v520 = vpack.c.b16 %v494, %v492
        %v521 = vpack.c.b16 %v497, %v495
        %v522 = vpack.c.b16 %v498, %v496
        %v523 = vpack.c.b16 %v501, %v499
        %v524 = vpack.c.b16 %v502, %v500
        %v525 = vpack.c.b16 %v505, %v503
        %v526 = vpack.c.b16 %v506, %v504
        %v527 = vpack.c.b16 %v509, %v507
        %v528 = vpack.c.b16 %v510, %v508
        %v529 = vpack.c.b16 %v513, %v511
        %v530 = vpack.c.b16 %v514, %v512
        %547 = vmatpush.bf16.msra.mxu0 %v529
        %548 = vmatpush.bf16.msra.mxu0 %v527
        %549 = vmatpush.bf16.msra.mxu0 %v525
        %550 = vmatpush.bf16.msra.mxu0 %v523
        %551 = vmatpush.bf16.msra.mxu0 %v521
        %552 = vmatpush.bf16.msra.mxu0 %v519
        %553 = vmatpush.bf16.msra.mxu0 %v517
        %554 = vmatpush.bf16.msra.mxu0 %v515
        %555 = vmatmul.bf16.gmra.mxu0 %v429
        %v556 = vpop.f32.mrf.mxu0
        %v557 = vadd.f32 %v463, %v556
        %v558 = vpop.f32.mrf.mxu0
        %v559 = vadd.f32 %v463, %v558
        %560 = vmatmul.bf16.gmra.mxu0 %v430
        %v561 = vpop.f32.mrf.mxu0
        %v562 = vadd.f32 %v463, %v561
        %v563 = vpop.f32.mrf.mxu0
        %v564 = vadd.f32 %v463, %v563
        %565 = vmatmul.bf16.gmra.mxu0 %v431
        %v566 = vpop.f32.mrf.mxu0
        %v567 = vadd.f32 %v463, %v566
        %v568 = vpop.f32.mrf.mxu0
        %v569 = vadd.f32 %v463, %v568
        %570 = vmatmul.bf16.gmra.mxu0 %v432
        %v571 = vpop.f32.mrf.mxu0
        %v572 = vadd.f32 %v463, %v571
        %v573 = vpop.f32.mrf.mxu0
        %v574 = vadd.f32 %v463, %v573
        %575 = vmatmul.bf16.gmra.mxu0 %v433
        %v576 = vpop.f32.mrf.mxu0
        %v577 = vadd.f32 %v463, %v576
        %v578 = vpop.f32.mrf.mxu0
        %v579 = vadd.f32 %v463, %v578
        %580 = vmatmul.bf16.gmra.mxu0 %v434
        %v581 = vpop.f32.mrf.mxu0
        %v582 = vadd.f32 %v463, %v581
        %v583 = vpop.f32.mrf.mxu0
        %v584 = vadd.f32 %v463, %v583
        %585 = vmatmul.bf16.gmra.mxu0 %v435
        %v586 = vpop.f32.mrf.mxu0
        %v587 = vadd.f32 %v463, %v586
        %v588 = vpop.f32.mrf.mxu0
        %v589 = vadd.f32 %v463, %v588
        %590 = vmatmul.bf16.gmra.mxu0 %v436
        %v591 = vpop.f32.mrf.mxu0
        %v592 = vadd.f32 %v463, %v591
        %v593 = vpop.f32.mrf.mxu0
        %v594 = vadd.f32 %v463, %v593
        %595 = vmatmul.bf16.gmra.mxu0 %v437
        %v596 = vpop.f32.mrf.mxu0
        %v597 = vadd.f32 %v463, %v596
        %v598 = vpop.f32.mrf.mxu0
        %v599 = vadd.f32 %v463, %v598
        %600 = vmatmul.bf16.gmra.mxu0 %v438
        %v601 = vpop.f32.mrf.mxu0
        %v602 = vadd.f32 %v463, %v601
        %v603 = vpop.f32.mrf.mxu0
        %v604 = vadd.f32 %v463, %v603
        %605 = vmatmul.bf16.gmra.mxu0 %v439
        %v606 = vpop.f32.mrf.mxu0
        %v607 = vadd.f32 %v463, %v606
        %v608 = vpop.f32.mrf.mxu0
        %v609 = vadd.f32 %v463, %v608
        %610 = vmatmul.bf16.gmra.mxu0 %v440
        %v611 = vpop.f32.mrf.mxu0
        %v612 = vadd.f32 %v463, %v611
        %v613 = vpop.f32.mrf.mxu0
        %v614 = vadd.f32 %v463, %v613
        %615 = vmatmul.bf16.gmra.mxu0 %v441
        %v616 = vpop.f32.mrf.mxu0
        %v617 = vadd.f32 %v463, %v616
        %v618 = vpop.f32.mrf.mxu0
        %v619 = vadd.f32 %v463, %v618
        %620 = vmatmul.bf16.gmra.mxu0 %v442
        %v621 = vpop.f32.mrf.mxu0
        %v622 = vadd.f32 %v463, %v621
        %v623 = vpop.f32.mrf.mxu0
        %v624 = vadd.f32 %v463, %v623
        %625 = vmatmul.bf16.gmra.mxu0 %v443
        %v626 = vpop.f32.mrf.mxu0
        %v627 = vadd.f32 %v463, %v626
        %v628 = vpop.f32.mrf.mxu0
        %v629 = vadd.f32 %v463, %v628
        %630 = vmatmul.bf16.gmra.mxu0 %v444
        %v631 = vpop.f32.mrf.mxu0
        %v632 = vadd.f32 %v463, %v631
        %v633 = vpop.f32.mrf.mxu0
        %v634 = vadd.f32 %v463, %v633
        %635 = vdwg.mxu0
        %636 = vmatpush.bf16.msra.mxu0 %v530
        %637 = vmatpush.bf16.msra.mxu0 %v528
        %638 = vmatpush.bf16.msra.mxu0 %v526
        %639 = vmatpush.bf16.msra.mxu0 %v524
        %640 = vmatpush.bf16.msra.mxu0 %v522
        %641 = vmatpush.bf16.msra.mxu0 %v520
        %642 = vmatpush.bf16.msra.mxu0 %v518
        %643 = vmatpush.bf16.msra.mxu0 %v516
        %644 = vmatmul.bf16.gmra.mxu0 %v429
        %v645 = vpop.f32.mrf.mxu0
        %v646 = vadd.f32 %v464, %v645
        %v647 = vpop.f32.mrf.mxu0
        %v648 = vadd.f32 %v464, %v647
        %649 = vmatmul.bf16.gmra.mxu0 %v430
        %v650 = vpop.f32.mrf.mxu0
        %v651 = vadd.f32 %v464, %v650
        %v652 = vpop.f32.mrf.mxu0
        %v653 = vadd.f32 %v464, %v652
        %654 = vmatmul.bf16.gmra.mxu0 %v431
        %v655 = vpop.f32.mrf.mxu0
        %v656 = vadd.f32 %v464, %v655
        %v657 = vpop.f32.mrf.mxu0
        %v658 = vadd.f32 %v464, %v657
        %659 = vmatmul.bf16.gmra.mxu0 %v432
        %v660 = vpop.f32.mrf.mxu0
        %v661 = vadd.f32 %v464, %v660
        %v662 = vpop.f32.mrf.mxu0
        %v663 = vadd.f32 %v464, %v662
        %664 = vmatmul.bf16.gmra.mxu0 %v433
        %v665 = vpop.f32.mrf.mxu0
        %v666 = vadd.f32 %v464, %v665
        %v667 = vpop.f32.mrf.mxu0
        %v668 = vadd.f32 %v464, %v667
        %669 = vmatmul.bf16.gmra.mxu0 %v434
        %v670 = vpop.f32.mrf.mxu0
        %v671 = vadd.f32 %v464, %v670
        %v672 = vpop.f32.mrf.mxu0
        %v673 = vadd.f32 %v464, %v672
        %674 = vmatmul.bf16.gmra.mxu0 %v435
        %v675 = vpop.f32.mrf.mxu0
        %v676 = vadd.f32 %v464, %v675
        %v677 = vpop.f32.mrf.mxu0
        %v678 = vadd.f32 %v464, %v677
        %679 = vmatmul.bf16.gmra.mxu0 %v436
        %v680 = vpop.f32.mrf.mxu0
        %v681 = vadd.f32 %v464, %v680
        %v682 = vpop.f32.mrf.mxu0
        %v683 = vadd.f32 %v464, %v682
        %684 = vmatmul.bf16.gmra.mxu0 %v437
        %v685 = vpop.f32.mrf.mxu0
        %v686 = vadd.f32 %v464, %v685
        %v687 = vpop.f32.mrf.mxu0
        %v688 = vadd.f32 %v464, %v687
        %689 = vmatmul.bf16.gmra.mxu0 %v438
        %v690 = vpop.f32.mrf.mxu0
        %v691 = vadd.f32 %v464, %v690
        %v692 = vpop.f32.mrf.mxu0
        %v693 = vadd.f32 %v464, %v692
        %694 = vmatmul.bf16.gmra.mxu0 %v439
        %v695 = vpop.f32.mrf.mxu0
        %v696 = vadd.f32 %v464, %v695
        %v697 = vpop.f32.mrf.mxu0
        %v698 = vadd.f32 %v464, %v697
        %699 = vmatmul.bf16.gmra.mxu0 %v440
        %v700 = vpop.f32.mrf.mxu0
        %v701 = vadd.f32 %v464, %v700
        %v702 = vpop.f32.mrf.mxu0
        %v703 = vadd.f32 %v464, %v702
        %704 = vmatmul.bf16.gmra.mxu0 %v441
        %v705 = vpop.f32.mrf.mxu0
        %v706 = vadd.f32 %v464, %v705
        %v707 = vpop.f32.mrf.mxu0
        %v708 = vadd.f32 %v464, %v707
        %709 = vmatmul.bf16.gmra.mxu0 %v442
        %v710 = vpop.f32.mrf.mxu0
        %v711 = vadd.f32 %v464, %v710
        %v712 = vpop.f32.mrf.mxu0
        %v713 = vadd.f32 %v464, %v712
        %714 = vmatmul.bf16.gmra.mxu0 %v443
        %v715 = vpop.f32.mrf.mxu0
        %v716 = vadd.f32 %v464, %v715
        %v717 = vpop.f32.mrf.mxu0
        %v718 = vadd.f32 %v464, %v717
        %719 = vmatmul.bf16.gmra.mxu0 %v444
        %v720 = vpop.f32.mrf.mxu0
        %v721 = vadd.f32 %v464, %v720
        %v722 = vpop.f32.mrf.mxu0
        %v723 = vadd.f32 %v464, %v722
        %724 = vdwg.mxu0
        %v725 = vpack.c.bf16 %v559, %v557
        %v726 = vpack.c.bf16 %v648, %v646
        %v727 = vpack.c.bf16 %v564, %v562
        %v728 = vpack.c.bf16 %v653, %v651
        %v729 = vpack.c.bf16 %v569, %v567
        %v730 = vpack.c.bf16 %v658, %v656
        %v731 = vpack.c.bf16 %v574, %v572
        %v732 = vpack.c.bf16 %v663, %v661
        %v733 = vpack.c.bf16 %v579, %v577
        %v734 = vpack.c.bf16 %v668, %v666
        %v735 = vpack.c.bf16 %v584, %v582
        %v736 = vpack.c.bf16 %v673, %v671
        %v737 = vpack.c.bf16 %v589, %v587
        %v738 = vpack.c.bf16 %v678, %v676
        %v739 = vpack.c.bf16 %v594, %v592
        %v740 = vpack.c.bf16 %v683, %v681
        %v741 = vpack.c.bf16 %v599, %v597
        %v742 = vpack.c.bf16 %v688, %v686
        %v743 = vpack.c.bf16 %v604, %v602
        %v744 = vpack.c.bf16 %v693, %v691
        %v745 = vpack.c.bf16 %v609, %v607
        %v746 = vpack.c.bf16 %v698, %v696
        %v747 = vpack.c.bf16 %v614, %v612
        %v748 = vpack.c.bf16 %v703, %v701
        %v749 = vpack.c.bf16 %v619, %v617
        %v750 = vpack.c.bf16 %v708, %v706
        %v751 = vpack.c.bf16 %v624, %v622
        %v752 = vpack.c.bf16 %v713, %v711
        %v753 = vpack.c.bf16 %v629, %v627
        %v754 = vpack.c.bf16 %v718, %v716
        %v755 = vpack.c.bf16 %v634, %v632
        %v756 = vpack.c.bf16 %v723, %v721
        %v757 = vld [vmem:[#allocation8] sm:$0xff]
        %v758 = vld [vmem:[#allocation8 + $0x8] sm:$0xff]
        %v759 = vld [vmem:[#allocation8 + $0x10] sm:$0xff]
        %v760 = vld [vmem:[#allocation8 + $0x18] sm:$0xff]
        %v761 = vld [vmem:[#allocation8 + $0x20] sm:$0xff]
        %v762 = vld [vmem:[#allocation8 + $0x28] sm:$0xff]
        %v763 = vld [vmem:[#allocation8 + $0x30] sm:$0xff]
        %v764 = vld [vmem:[#allocation8 + $0x38] sm:$0xff]
        %v765 = vld [vmem:[#allocation8 + $0x40] sm:$0xff]
        %v766 = vld [vmem:[#allocation8 + $0x48] sm:$0xff]
        %v767 = vld [vmem:[#allocation8 + $0x50] sm:$0xff]
        %v768 = vld [vmem:[#allocation8 + $0x58] sm:$0xff]
        %v769 = vld [vmem:[#allocation8 + $0x60] sm:$0xff]
        %v770 = vld [vmem:[#allocation8 + $0x68] sm:$0xff]
        %v771 = vld [vmem:[#allocation8 + $0x70] sm:$0xff]
        %v772 = vld [vmem:[#allocation8 + $0x78] sm:$0xff]
        %v773 = vld [vmem:[#allocation8 + $0x80] sm:$0xff]
        %v774 = vld [vmem:[#allocation8 + $0x88] sm:$0xff]
        %v775 = vld [vmem:[#allocation8 + $0x90] sm:$0xff]
        %v776 = vld [vmem:[#allocation8 + $0x98] sm:$0xff]
        %v777 = vld [vmem:[#allocation8 + $0xa0] sm:$0xff]
        %v778 = vld [vmem:[#allocation8 + $0xa8] sm:$0xff]
        %v779 = vld [vmem:[#allocation8 + $0xb0] sm:$0xff]
        %v780 = vld [vmem:[#allocation8 + $0xb8] sm:$0xff]
        %v781 = vld [vmem:[#allocation8 + $0xc0] sm:$0xff]
        %v782 = vld [vmem:[#allocation8 + $0xc8] sm:$0xff]
        %v783 = vld [vmem:[#allocation8 + $0xd0] sm:$0xff]
        %v784 = vld [vmem:[#allocation8 + $0xd8] sm:$0xff]
        %v785 = vld [vmem:[#allocation8 + $0xe0] sm:$0xff]
        %v786 = vld [vmem:[#allocation8 + $0xe8] sm:$0xff]
        %v787 = vld [vmem:[#allocation8 + $0xf0] sm:$0xff]
        %v788 = vld [vmem:[#allocation8 + $0xf8] sm:$0xff]
        %v789 = vld [vmem:[#allocation10] sm:$0x3]
        %v791 = vperm.slane %v789, 0
        %v792 = vperm.slane %v789, 1
        %v827 = vunpack.c.l.b16 %v757
        %v828 = vunpack.c.h.b16 %v757
        %v829 = vunpack.c.l.b16 %v758
        %v830 = vunpack.c.h.b16 %v758
        %v831 = vunpack.c.l.b16 %v759
        %v832 = vunpack.c.h.b16 %v759
        %v833 = vunpack.c.l.b16 %v760
        %v834 = vunpack.c.h.b16 %v760
        %v835 = vunpack.c.l.b16 %v761
        %v836 = vunpack.c.h.b16 %v761
        %v837 = vunpack.c.l.b16 %v762
        %v838 = vunpack.c.h.b16 %v762
        %v839 = vunpack.c.l.b16 %v763
        %v840 = vunpack.c.h.b16 %v763
        %v841 = vunpack.c.l.b16 %v764
        %v842 = vunpack.c.h.b16 %v764
        %v843 = vunpack.c.l.b16 %v765
        %v844 = vunpack.c.h.b16 %v765
        %v845 = vunpack.c.l.b16 %v766
        %v846 = vunpack.c.h.b16 %v766
        %v847 = vunpack.c.l.b16 %v767
        %v848 = vunpack.c.h.b16 %v767
        %v849 = vunpack.c.l.b16 %v768
        %v850 = vunpack.c.h.b16 %v768
        %v851 = vunpack.c.l.b16 %v769
        %v852 = vunpack.c.h.b16 %v769
        %v853 = vunpack.c.l.b16 %v770
        %v854 = vunpack.c.h.b16 %v770
        %v855 = vunpack.c.l.b16 %v771
        %v856 = vunpack.c.h.b16 %v771
        %v857 = vunpack.c.l.b16 %v772
        %v858 = vunpack.c.h.b16 %v772
        %v859 = vunpack.c.l.b16 %v773
        %v860 = vunpack.c.h.b16 %v773
        %v861 = vunpack.c.l.b16 %v774
        %v862 = vunpack.c.h.b16 %v774
        %v863 = vunpack.c.l.b16 %v775
        %v864 = vunpack.c.h.b16 %v775
        %v865 = vunpack.c.l.b16 %v776
        %v866 = vunpack.c.h.b16 %v776
        %v867 = vunpack.c.l.b16 %v777
        %v868 = vunpack.c.h.b16 %v777
        %v869 = vunpack.c.l.b16 %v778
        %v870 = vunpack.c.h.b16 %v778
        %v871 = vunpack.c.l.b16 %v779
        %v872 = vunpack.c.h.b16 %v779
        %v873 = vunpack.c.l.b16 %v780
        %v874 = vunpack.c.h.b16 %v780
        %v875 = vunpack.c.l.b16 %v781
        %v876 = vunpack.c.h.b16 %v781
        %v877 = vunpack.c.l.b16 %v782
        %v878 = vunpack.c.h.b16 %v782
        %v879 = vunpack.c.l.b16 %v783
        %v880 = vunpack.c.h.b16 %v783
        %v881 = vunpack.c.l.b16 %v784
        %v882 = vunpack.c.h.b16 %v784
        %v883 = vunpack.c.l.b16 %v785
        %v884 = vunpack.c.h.b16 %v785
        %v885 = vunpack.c.l.b16 %v786
        %v886 = vunpack.c.h.b16 %v786
        %v887 = vunpack.c.l.b16 %v787
        %v888 = vunpack.c.h.b16 %v787
        %v889 = vunpack.c.l.b16 %v788
        %v890 = vunpack.c.h.b16 %v788
        %v891 = vpack.c.b16 %v829, %v827
        %v892 = vpack.c.b16 %v830, %v828
        %v893 = vpack.c.b16 %v833, %v831
        %v894 = vpack.c.b16 %v834, %v832
        %v895 = vpack.c.b16 %v837, %v835
        %v896 = vpack.c.b16 %v838, %v836
        %v897 = vpack.c.b16 %v841, %v839
        %v898 = vpack.c.b16 %v842, %v840
        %v899 = vpack.c.b16 %v845, %v843
        %v900 = vpack.c.b16 %v846, %v844
        %v901 = vpack.c.b16 %v849, %v847
        %v902 = vpack.c.b16 %v850, %v848
        %v903 = vpack.c.b16 %v853, %v851
        %v904 = vpack.c.b16 %v854, %v852
        %v905 = vpack.c.b16 %v857, %v855
        %v906 = vpack.c.b16 %v858, %v856
        %v907 = vpack.c.b16 %v861, %v859
        %v908 = vpack.c.b16 %v862, %v860
        %v909 = vpack.c.b16 %v865, %v863
        %v910 = vpack.c.b16 %v866, %v864
        %v911 = vpack.c.b16 %v869, %v867
        %v912 = vpack.c.b16 %v870, %v868
        %v913 = vpack.c.b16 %v873, %v871
        %v914 = vpack.c.b16 %v874, %v872
        %v915 = vpack.c.b16 %v877, %v875
        %v916 = vpack.c.b16 %v878, %v876
        %v917 = vpack.c.b16 %v881, %v879
        %v918 = vpack.c.b16 %v882, %v880
        %v919 = vpack.c.b16 %v885, %v883
        %v920 = vpack.c.b16 %v886, %v884
        %v921 = vpack.c.b16 %v889, %v887
        %v922 = vpack.c.b16 %v890, %v888
        %955 = vmatpush.bf16.msra.mxu0 %v905
        %956 = vmatpush.bf16.msra.mxu0 %v903
        %957 = vmatpush.bf16.msra.mxu0 %v901
        %958 = vmatpush.bf16.msra.mxu0 %v899
        %959 = vmatpush.bf16.msra.mxu0 %v897
        %960 = vmatpush.bf16.msra.mxu0 %v895
        %961 = vmatpush.bf16.msra.mxu0 %v893
        %962 = vmatpush.bf16.msra.mxu0 %v891
        %963 = vmatmul.bf16.gmra.mxu0 %v725
        %v964 = vpop.f32.mrf.mxu0
        %v965 = vadd.f32 %v791, %v964
        %v966 = vpop.f32.mrf.mxu0
        %v967 = vadd.f32 %v791, %v966
        %968 = vmatmul.bf16.gmra.mxu0 %v727
        %v969 = vpop.f32.mrf.mxu0
        %v970 = vadd.f32 %v791, %v969
        %v971 = vpop.f32.mrf.mxu0
        %v972 = vadd.f32 %v791, %v971
        %973 = vmatmul.bf16.gmra.mxu0 %v729
        %v974 = vpop.f32.mrf.mxu0
        %v975 = vadd.f32 %v791, %v974
        %v976 = vpop.f32.mrf.mxu0
        %v977 = vadd.f32 %v791, %v976
        %978 = vmatmul.bf16.gmra.mxu0 %v731
        %v979 = vpop.f32.mrf.mxu0
        %v980 = vadd.f32 %v791, %v979
        %v981 = vpop.f32.mrf.mxu0
        %v982 = vadd.f32 %v791, %v981
        %983 = vmatmul.bf16.gmra.mxu0 %v733
        %v984 = vpop.f32.mrf.mxu0
        %v985 = vadd.f32 %v791, %v984
        %v986 = vpop.f32.mrf.mxu0
        %v987 = vadd.f32 %v791, %v986
        %988 = vmatmul.bf16.gmra.mxu0 %v735
        %v989 = vpop.f32.mrf.mxu0
        %v990 = vadd.f32 %v791, %v989
        %v991 = vpop.f32.mrf.mxu0
        %v992 = vadd.f32 %v791, %v991
        %993 = vmatmul.bf16.gmra.mxu0 %v737
        %v994 = vpop.f32.mrf.mxu0
        %v995 = vadd.f32 %v791, %v994
        %v996 = vpop.f32.mrf.mxu0
        %v997 = vadd.f32 %v791, %v996
        %998 = vmatmul.bf16.gmra.mxu0 %v739
        %v999 = vpop.f32.mrf.mxu0
        %v1000 = vadd.f32 %v791, %v999
        %v1001 = vpop.f32.mrf.mxu0
        %v1002 = vadd.f32 %v791, %v1001
        %1003 = vmatmul.bf16.gmra.mxu0 %v741
        %v1004 = vpop.f32.mrf.mxu0
        %v1005 = vadd.f32 %v791, %v1004
        %v1006 = vpop.f32.mrf.mxu0
        %v1007 = vadd.f32 %v791, %v1006
        %1008 = vmatmul.bf16.gmra.mxu0 %v743
        %v1009 = vpop.f32.mrf.mxu0
        %v1010 = vadd.f32 %v791, %v1009
        %v1011 = vpop.f32.mrf.mxu0
        %v1012 = vadd.f32 %v791, %v1011
        %1013 = vmatmul.bf16.gmra.mxu0 %v745
        %v1014 = vpop.f32.mrf.mxu0
        %v1015 = vadd.f32 %v791, %v1014
        %v1016 = vpop.f32.mrf.mxu0
        %v1017 = vadd.f32 %v791, %v1016
        %1018 = vmatmul.bf16.gmra.mxu0 %v747
        %v1019 = vpop.f32.mrf.mxu0
        %v1020 = vadd.f32 %v791, %v1019
        %v1021 = vpop.f32.mrf.mxu0
        %v1022 = vadd.f32 %v791, %v1021
        %1023 = vmatmul.bf16.gmra.mxu0 %v749
        %v1024 = vpop.f32.mrf.mxu0
        %v1025 = vadd.f32 %v791, %v1024
        %v1026 = vpop.f32.mrf.mxu0
        %v1027 = vadd.f32 %v791, %v1026
        %1028 = vmatmul.bf16.gmra.mxu0 %v751
        %v1029 = vpop.f32.mrf.mxu0
        %v1030 = vadd.f32 %v791, %v1029
        %v1031 = vpop.f32.mrf.mxu0
        %v1032 = vadd.f32 %v791, %v1031
        %1033 = vmatmul.bf16.gmra.mxu0 %v753
        %v1034 = vpop.f32.mrf.mxu0
        %v1035 = vadd.f32 %v791, %v1034
        %v1036 = vpop.f32.mrf.mxu0
        %v1037 = vadd.f32 %v791, %v1036
        %1038 = vmatmul.bf16.gmra.mxu0 %v755
        %v1039 = vpop.f32.mrf.mxu0
        %v1040 = vadd.f32 %v791, %v1039
        %v1041 = vpop.f32.mrf.mxu0
        %v1042 = vadd.f32 %v791, %v1041
        %1043 = vdwg.mxu0
        %1044 = vmatpush.bf16.msra.mxu0 %v921
        %1045 = vmatpush.bf16.msra.mxu0 %v919
        %1046 = vmatpush.bf16.msra.mxu0 %v917
        %1047 = vmatpush.bf16.msra.mxu0 %v915
        %1048 = vmatpush.bf16.msra.mxu0 %v913
        %1049 = vmatpush.bf16.msra.mxu0 %v911
        %1050 = vmatpush.bf16.msra.mxu0 %v909
        %1051 = vmatpush.bf16.msra.mxu0 %v907
        %1052 = vmatmul.bf16.gmra.mxu0 %v726
        %v1053 = vpop.f32.mrf.mxu0
        %v1054 = vadd.f32 %v965, %v1053
        %v1055 = vpop.f32.mrf.mxu0
        %v1056 = vadd.f32 %v967, %v1055
        %1057 = vmatmul.bf16.gmra.mxu0 %v728
        %v1058 = vpop.f32.mrf.mxu0
        %v1059 = vadd.f32 %v970, %v1058
        %v1060 = vpop.f32.mrf.mxu0
        %v1061 = vadd.f32 %v972, %v1060
        %1062 = vmatmul.bf16.gmra.mxu0 %v730
        %v1063 = vpop.f32.mrf.mxu0
        %v1064 = vadd.f32 %v975, %v1063
        %v1065 = vpop.f32.mrf.mxu0
        %v1066 = vadd.f32 %v977, %v1065
        %1067 = vmatmul.bf16.gmra.mxu0 %v732
        %v1068 = vpop.f32.mrf.mxu0
        %v1069 = vadd.f32 %v980, %v1068
        %v1070 = vpop.f32.mrf.mxu0
        %v1071 = vadd.f32 %v982, %v1070
        %1072 = vmatmul.bf16.gmra.mxu0 %v734
        %v1073 = vpop.f32.mrf.mxu0
        %v1074 = vadd.f32 %v985, %v1073
        %v1075 = vpop.f32.mrf.mxu0
        %v1076 = vadd.f32 %v987, %v1075
        %1077 = vmatmul.bf16.gmra.mxu0 %v736
        %v1078 = vpop.f32.mrf.mxu0
        %v1079 = vadd.f32 %v990, %v1078
        %v1080 = vpop.f32.mrf.mxu0
        %v1081 = vadd.f32 %v992, %v1080
        %1082 = vmatmul.bf16.gmra.mxu0 %v738
        %v1083 = vpop.f32.mrf.mxu0
        %v1084 = vadd.f32 %v995, %v1083
        %v1085 = vpop.f32.mrf.mxu0
        %v1086 = vadd.f32 %v997, %v1085
        %1087 = vmatmul.bf16.gmra.mxu0 %v740
        %v1088 = vpop.f32.mrf.mxu0
        %v1089 = vadd.f32 %v1000, %v1088
        %v1090 = vpop.f32.mrf.mxu0
        %v1091 = vadd.f32 %v1002, %v1090
        %1092 = vmatmul.bf16.gmra.mxu0 %v742
        %v1093 = vpop.f32.mrf.mxu0
        %v1094 = vadd.f32 %v1005, %v1093
        %v1095 = vpop.f32.mrf.mxu0
        %v1096 = vadd.f32 %v1007, %v1095
        %1097 = vmatmul.bf16.gmra.mxu0 %v744
        %v1098 = vpop.f32.mrf.mxu0
        %v1099 = vadd.f32 %v1010, %v1098
        %v1100 = vpop.f32.mrf.mxu0
        %v1101 = vadd.f32 %v1012, %v1100
        %1102 = vmatmul.bf16.gmra.mxu0 %v746
        %v1103 = vpop.f32.mrf.mxu0
        %v1104 = vadd.f32 %v1015, %v1103
        %v1105 = vpop.f32.mrf.mxu0
        %v1106 = vadd.f32 %v1017, %v1105
        %1107 = vmatmul.bf16.gmra.mxu0 %v748
        %v1108 = vpop.f32.mrf.mxu0
        %v1109 = vadd.f32 %v1020, %v1108
        %v1110 = vpop.f32.mrf.mxu0
        %v1111 = vadd.f32 %v1022, %v1110
        %1112 = vmatmul.bf16.gmra.mxu0 %v750
        %v1113 = vpop.f32.mrf.mxu0
        %v1114 = vadd.f32 %v1025, %v1113
        %v1115 = vpop.f32.mrf.mxu0
        %v1116 = vadd.f32 %v1027, %v1115
        %1117 = vmatmul.bf16.gmra.mxu0 %v752
        %v1118 = vpop.f32.mrf.mxu0
        %v1119 = vadd.f32 %v1030, %v1118
        %v1120 = vpop.f32.mrf.mxu0
        %v1121 = vadd.f32 %v1032, %v1120
        %1122 = vmatmul.bf16.gmra.mxu0 %v754
        %v1123 = vpop.f32.mrf.mxu0
        %v1124 = vadd.f32 %v1035, %v1123
        %v1125 = vpop.f32.mrf.mxu0
        %v1126 = vadd.f32 %v1037, %v1125
        %1127 = vmatmul.bf16.gmra.mxu0 %v756
        %v1128 = vpop.f32.mrf.mxu0
        %v1129 = vadd.f32 %v1040, %v1128
        %v1130 = vpop.f32.mrf.mxu0
        %v1131 = vadd.f32 %v1042, %v1130
        %1132 = vdwg.mxu0
        %1133 = vmatpush.bf16.msra.mxu0 %v906
        %1134 = vmatpush.bf16.msra.mxu0 %v904
        %1135 = vmatpush.bf16.msra.mxu0 %v902
        %1136 = vmatpush.bf16.msra.mxu0 %v900
        %1137 = vmatpush.bf16.msra.mxu0 %v898
        %1138 = vmatpush.bf16.msra.mxu0 %v896
        %1139 = vmatpush.bf16.msra.mxu0 %v894
        %1140 = vmatpush.bf16.msra.mxu0 %v892
        %1141 = vmatmul.bf16.gmra.mxu0 %v725
        %v1142 = vpop.f32.mrf.mxu0
        %v1143 = vadd.f32 %v792, %v1142
        %v1144 = vpop.f32.mrf.mxu0
        %v1145 = vadd.f32 %v792, %v1144
        %1146 = vmatmul.bf16.gmra.mxu0 %v727
        %v1147 = vpop.f32.mrf.mxu0
        %v1148 = vadd.f32 %v792, %v1147
        %v1149 = vpop.f32.mrf.mxu0
        %v1150 = vadd.f32 %v792, %v1149
        %1151 = vmatmul.bf16.gmra.mxu0 %v729
        %v1152 = vpop.f32.mrf.mxu0
        %v1153 = vadd.f32 %v792, %v1152
        %v1154 = vpop.f32.mrf.mxu0
        %v1155 = vadd.f32 %v792, %v1154
        %1156 = vmatmul.bf16.gmra.mxu0 %v731
        %v1157 = vpop.f32.mrf.mxu0
        %v1158 = vadd.f32 %v792, %v1157
        %v1159 = vpop.f32.mrf.mxu0
        %v1160 = vadd.f32 %v792, %v1159
        %1161 = vmatmul.bf16.gmra.mxu0 %v733
        %v1162 = vpop.f32.mrf.mxu0
        %v1163 = vadd.f32 %v792, %v1162
        %v1164 = vpop.f32.mrf.mxu0
        %v1165 = vadd.f32 %v792, %v1164
        %1166 = vmatmul.bf16.gmra.mxu0 %v735
        %v1167 = vpop.f32.mrf.mxu0
        %v1168 = vadd.f32 %v792, %v1167
        %v1169 = vpop.f32.mrf.mxu0
        %v1170 = vadd.f32 %v792, %v1169
        %1171 = vmatmul.bf16.gmra.mxu0 %v737
        %v1172 = vpop.f32.mrf.mxu0
        %v1173 = vadd.f32 %v792, %v1172
        %v1174 = vpop.f32.mrf.mxu0
        %v1175 = vadd.f32 %v792, %v1174
        %1176 = vmatmul.bf16.gmra.mxu0 %v739
        %v1177 = vpop.f32.mrf.mxu0
        %v1178 = vadd.f32 %v792, %v1177
        %v1179 = vpop.f32.mrf.mxu0
        %v1180 = vadd.f32 %v792, %v1179
        %1181 = vmatmul.bf16.gmra.mxu0 %v741
        %v1182 = vpop.f32.mrf.mxu0
        %v1183 = vadd.f32 %v792, %v1182
        %v1184 = vpop.f32.mrf.mxu0
        %v1185 = vadd.f32 %v792, %v1184
        %1186 = vmatmul.bf16.gmra.mxu0 %v743
        %v1187 = vpop.f32.mrf.mxu0
        %v1188 = vadd.f32 %v792, %v1187
        %v1189 = vpop.f32.mrf.mxu0
        %v1190 = vadd.f32 %v792, %v1189
        %1191 = vmatmul.bf16.gmra.mxu0 %v745
        %v1192 = vpop.f32.mrf.mxu0
        %v1193 = vadd.f32 %v792, %v1192
        %v1194 = vpop.f32.mrf.mxu0
        %v1195 = vadd.f32 %v792, %v1194
        %1196 = vmatmul.bf16.gmra.mxu0 %v747
        %v1197 = vpop.f32.mrf.mxu0
        %v1198 = vadd.f32 %v792, %v1197
        %v1199 = vpop.f32.mrf.mxu0
        %v1200 = vadd.f32 %v792, %v1199
        %1201 = vmatmul.bf16.gmra.mxu0 %v749
        %v1202 = vpop.f32.mrf.mxu0
        %v1203 = vadd.f32 %v792, %v1202
        %v1204 = vpop.f32.mrf.mxu0
        %v1205 = vadd.f32 %v792, %v1204
        %1206 = vmatmul.bf16.gmra.mxu0 %v751
        %v1207 = vpop.f32.mrf.mxu0
        %v1208 = vadd.f32 %v792, %v1207
        %v1209 = vpop.f32.mrf.mxu0
        %v1210 = vadd.f32 %v792, %v1209
        %1211 = vmatmul.bf16.gmra.mxu0 %v753
        %v1212 = vpop.f32.mrf.mxu0
        %v1213 = vadd.f32 %v792, %v1212
        %v1214 = vpop.f32.mrf.mxu0
        %v1215 = vadd.f32 %v792, %v1214
        %1216 = vmatmul.bf16.gmra.mxu0 %v755
        %v1217 = vpop.f32.mrf.mxu0
        %v1218 = vadd.f32 %v792, %v1217
        %v1219 = vpop.f32.mrf.mxu0
        %v1220 = vadd.f32 %v792, %v1219
        %1221 = vdwg.mxu0
        %1222 = vmatpush.bf16.msra.mxu0 %v922
        %1223 = vmatpush.bf16.msra.mxu0 %v920
        %1224 = vmatpush.bf16.msra.mxu0 %v918
        %1225 = vmatpush.bf16.msra.mxu0 %v916
        %1226 = vmatpush.bf16.msra.mxu0 %v914
        %1227 = vmatpush.bf16.msra.mxu0 %v912
        %1228 = vmatpush.bf16.msra.mxu0 %v910
        %1229 = vmatpush.bf16.msra.mxu0 %v908
        %1230 = vmatmul.bf16.gmra.mxu0 %v726
        %v1231 = vpop.f32.mrf.mxu0
        %v1232 = vadd.f32 %v1143, %v1231
        %v1233 = vpop.f32.mrf.mxu0
        %v1234 = vadd.f32 %v1145, %v1233
        %1235 = vmatmul.bf16.gmra.mxu0 %v728
        %v1236 = vpop.f32.mrf.mxu0
        %v1237 = vadd.f32 %v1148, %v1236
        %v1238 = vpop.f32.mrf.mxu0
        %v1239 = vadd.f32 %v1150, %v1238
        %1240 = vmatmul.bf16.gmra.mxu0 %v730
        %v1241 = vpop.f32.mrf.mxu0
        %v1242 = vadd.f32 %v1153, %v1241
        %v1243 = vpop.f32.mrf.mxu0
        %v1244 = vadd.f32 %v1155, %v1243
        %1245 = vmatmul.bf16.gmra.mxu0 %v732
        %v1246 = vpop.f32.mrf.mxu0
        %v1247 = vadd.f32 %v1158, %v1246
        %v1248 = vpop.f32.mrf.mxu0
        %v1249 = vadd.f32 %v1160, %v1248
        %1250 = vmatmul.bf16.gmra.mxu0 %v734
        %v1251 = vpop.f32.mrf.mxu0
        %v1252 = vadd.f32 %v1163, %v1251
        %v1253 = vpop.f32.mrf.mxu0
        %v1254 = vadd.f32 %v1165, %v1253
        %1255 = vmatmul.bf16.gmra.mxu0 %v736
        %v1256 = vpop.f32.mrf.mxu0
        %v1257 = vadd.f32 %v1168, %v1256
        %v1258 = vpop.f32.mrf.mxu0
        %v1259 = vadd.f32 %v1170, %v1258
        %1260 = vmatmul.bf16.gmra.mxu0 %v738
        %v1261 = vpop.f32.mrf.mxu0
        %v1262 = vadd.f32 %v1173, %v1261
        %v1263 = vpop.f32.mrf.mxu0
        %v1264 = vadd.f32 %v1175, %v1263
        %1265 = vmatmul.bf16.gmra.mxu0 %v740
        %v1266 = vpop.f32.mrf.mxu0
        %v1267 = vadd.f32 %v1178, %v1266
        %v1268 = vpop.f32.mrf.mxu0
        %v1269 = vadd.f32 %v1180, %v1268
        %1270 = vmatmul.bf16.gmra.mxu0 %v742
        %v1271 = vpop.f32.mrf.mxu0
        %v1272 = vadd.f32 %v1183, %v1271
        %v1273 = vpop.f32.mrf.mxu0
        %v1274 = vadd.f32 %v1185, %v1273
        %1275 = vmatmul.bf16.gmra.mxu0 %v744
        %v1276 = vpop.f32.mrf.mxu0
        %v1277 = vadd.f32 %v1188, %v1276
        %v1278 = vpop.f32.mrf.mxu0
        %v1279 = vadd.f32 %v1190, %v1278
        %1280 = vmatmul.bf16.gmra.mxu0 %v746
        %v1281 = vpop.f32.mrf.mxu0
        %v1282 = vadd.f32 %v1193, %v1281
        %v1283 = vpop.f32.mrf.mxu0
        %v1284 = vadd.f32 %v1195, %v1283
        %1285 = vmatmul.bf16.gmra.mxu0 %v748
        %v1286 = vpop.f32.mrf.mxu0
        %v1287 = vadd.f32 %v1198, %v1286
        %v1288 = vpop.f32.mrf.mxu0
        %v1289 = vadd.f32 %v1200, %v1288
        %1290 = vmatmul.bf16.gmra.mxu0 %v750
        %v1291 = vpop.f32.mrf.mxu0
        %v1292 = vadd.f32 %v1203, %v1291
        %v1293 = vpop.f32.mrf.mxu0
        %v1294 = vadd.f32 %v1205, %v1293
        %1295 = vmatmul.bf16.gmra.mxu0 %v752
        %v1296 = vpop.f32.mrf.mxu0
        %v1297 = vadd.f32 %v1208, %v1296
        %v1298 = vpop.f32.mrf.mxu0
        %v1299 = vadd.f32 %v1210, %v1298
        %1300 = vmatmul.bf16.gmra.mxu0 %v754
        %v1301 = vpop.f32.mrf.mxu0
        %v1302 = vadd.f32 %v1213, %v1301
        %v1303 = vpop.f32.mrf.mxu0
        %v1304 = vadd.f32 %v1215, %v1303
        %1305 = vmatmul.bf16.gmra.mxu0 %v756
        %v1306 = vpop.f32.mrf.mxu0
        %v1307 = vadd.f32 %v1218, %v1306
        %v1308 = vpop.f32.mrf.mxu0
        %v1309 = vadd.f32 %v1220, %v1308
        %1310 = vdwg.mxu0
        %v1311 = vmul.f32 %v1054, 0.01
        %v1312 = vmul.f32 %v1232, 0.01
        %v1313 = vmul.f32 %v1056, 0.01
        %v1314 = vmul.f32 %v1234, 0.01
        %v1315 = vmul.f32 %v1059, 0.01
        %v1316 = vmul.f32 %v1237, 0.01
        %v1317 = vmul.f32 %v1061, 0.01
        %v1318 = vmul.f32 %v1239, 0.01
        %v1319 = vmul.f32 %v1064, 0.01
        %v1320 = vmul.f32 %v1242, 0.01
        %v1321 = vmul.f32 %v1066, 0.01
        %v1322 = vmul.f32 %v1244, 0.01
        %v1323 = vmul.f32 %v1069, 0.01
        %v1324 = vmul.f32 %v1247, 0.01
        %v1325 = vmul.f32 %v1071, 0.01
        %v1326 = vmul.f32 %v1249, 0.01
        %v1327 = vmul.f32 %v1074, 0.01
        %v1328 = vmul.f32 %v1252, 0.01
        %v1329 = vmul.f32 %v1076, 0.01
        %v1330 = vmul.f32 %v1254, 0.01
        %v1331 = vmul.f32 %v1079, 0.01
        %v1332 = vmul.f32 %v1257, 0.01
        %v1333 = vmul.f32 %v1081, 0.01
        %v1334 = vmul.f32 %v1259, 0.01
        %v1335 = vmul.f32 %v1084, 0.01
        %v1336 = vmul.f32 %v1262, 0.01
        %v1337 = vmul.f32 %v1086, 0.01
        %v1338 = vmul.f32 %v1264, 0.01
        %v1339 = vmul.f32 %v1089, 0.01
        %v1340 = vmul.f32 %v1267, 0.01
        %v1341 = vmul.f32 %v1091, 0.01
        %v1342 = vmul.f32 %v1269, 0.01
        %v1343 = vmul.f32 %v1094, 0.01
        %v1344 = vmul.f32 %v1272, 0.01
        %v1345 = vmul.f32 %v1096, 0.01
        %v1346 = vmul.f32 %v1274, 0.01
        %v1347 = vmul.f32 %v1099, 0.01
        %v1348 = vmul.f32 %v1277, 0.01
        %v1349 = vmul.f32 %v1101, 0.01
        %v1350 = vmul.f32 %v1279, 0.01
        %v1351 = vmul.f32 %v1104, 0.01
        %v1352 = vmul.f32 %v1282, 0.01
        %v1353 = vmul.f32 %v1106, 0.01
        %v1354 = vmul.f32 %v1284, 0.01
        %v1355 = vmul.f32 %v1109, 0.01
        %v1356 = vmul.f32 %v1287, 0.01
        %v1357 = vmul.f32 %v1111, 0.01
        %v1358 = vmul.f32 %v1289, 0.01
        %v1359 = vmul.f32 %v1114, 0.01
        %v1360 = vmul.f32 %v1292, 0.01
        %v1361 = vmul.f32 %v1116, 0.01
        %v1362 = vmul.f32 %v1294, 0.01
        %v1363 = vmul.f32 %v1119, 0.01
        %v1364 = vmul.f32 %v1297, 0.01
        %v1365 = vmul.f32 %v1121, 0.01
        %v1366 = vmul.f32 %v1299, 0.01
        %v1367 = vmul.f32 %v1124, 0.01
        %v1368 = vmul.f32 %v1302, 0.01
        %v1369 = vmul.f32 %v1126, 0.01
        %v1370 = vmul.f32 %v1304, 0.01
        %v1371 = vmul.f32 %v1129, 0.01
        %v1372 = vmul.f32 %v1307, 0.01
        %v1373 = vmul.f32 %v1131, 0.01
        %v1374 = vmul.f32 %v1309, 0.01
        %v1375 = vmax.f32 %v1054, %v1311
        %v1376 = vmax.f32 %v1232, %v1312
        %v1377 = vmax.f32 %v1056, %v1313
        %v1378 = vmax.f32 %v1234, %v1314
        %v1379 = vmax.f32 %v1059, %v1315
        %v1380 = vmax.f32 %v1237, %v1316
        %v1381 = vmax.f32 %v1061, %v1317
        %v1382 = vmax.f32 %v1239, %v1318
        %v1383 = vmax.f32 %v1064, %v1319
        %v1384 = vmax.f32 %v1242, %v1320
        %v1385 = vmax.f32 %v1066, %v1321
        %v1386 = vmax.f32 %v1244, %v1322
        %v1387 = vmax.f32 %v1069, %v1323
        %v1388 = vmax.f32 %v1247, %v1324
        %v1389 = vmax.f32 %v1071, %v1325
        %v1390 = vmax.f32 %v1249, %v1326
        %v1391 = vmax.f32 %v1074, %v1327
        %v1392 = vmax.f32 %v1252, %v1328
        %v1393 = vmax.f32 %v1076, %v1329
        %v1394 = vmax.f32 %v1254, %v1330
        %v1395 = vmax.f32 %v1079, %v1331
        %v1396 = vmax.f32 %v1257, %v1332
        %v1397 = vmax.f32 %v1081, %v1333
        %v1398 = vmax.f32 %v1259, %v1334
        %v1399 = vmax.f32 %v1084, %v1335
        %v1400 = vmax.f32 %v1262, %v1336
        %v1401 = vmax.f32 %v1086, %v1337
        %v1402 = vmax.f32 %v1264, %v1338
        %v1403 = vmax.f32 %v1089, %v1339
        %v1404 = vmax.f32 %v1267, %v1340
        %v1405 = vmax.f32 %v1091, %v1341
        %v1406 = vmax.f32 %v1269, %v1342
        %v1407 = vmax.f32 %v1094, %v1343
        %v1408 = vmax.f32 %v1272, %v1344
        %v1409 = vmax.f32 %v1096, %v1345
        %v1410 = vmax.f32 %v1274, %v1346
        %v1411 = vmax.f32 %v1099, %v1347
        %v1412 = vmax.f32 %v1277, %v1348
        %v1413 = vmax.f32 %v1101, %v1349
        %v1414 = vmax.f32 %v1279, %v1350
        %v1415 = vmax.f32 %v1104, %v1351
        %v1416 = vmax.f32 %v1282, %v1352
        %v1417 = vmax.f32 %v1106, %v1353
        %v1418 = vmax.f32 %v1284, %v1354
        %v1419 = vmax.f32 %v1109, %v1355
        %v1420 = vmax.f32 %v1287, %v1356
        %v1421 = vmax.f32 %v1111, %v1357
        %v1422 = vmax.f32 %v1289, %v1358
        %v1423 = vmax.f32 %v1114, %v1359
        %v1424 = vmax.f32 %v1292, %v1360
        %v1425 = vmax.f32 %v1116, %v1361
        %v1426 = vmax.f32 %v1294, %v1362
        %v1427 = vmax.f32 %v1119, %v1363
        %v1428 = vmax.f32 %v1297, %v1364
        %v1429 = vmax.f32 %v1121, %v1365
        %v1430 = vmax.f32 %v1299, %v1366
        %v1431 = vmax.f32 %v1124, %v1367
        %v1432 = vmax.f32 %v1302, %v1368
        %v1433 = vmax.f32 %v1126, %v1369
        %v1434 = vmax.f32 %v1304, %v1370
        %v1435 = vmax.f32 %v1129, %v1371
        %v1436 = vmax.f32 %v1307, %v1372
        %v1437 = vmax.f32 %v1131, %v1373
        %v1438 = vmax.f32 %v1309, %v1374
        %v1439 = vadd.f32 %v557, %v1375
        %v1440 = vadd.f32 %v646, %v1376
        %v1441 = vadd.f32 %v559, %v1377
        %v1442 = vadd.f32 %v648, %v1378
        %v1443 = vadd.f32 %v562, %v1379
        %v1444 = vadd.f32 %v651, %v1380
        %v1445 = vadd.f32 %v564, %v1381
        %v1446 = vadd.f32 %v653, %v1382
        %v1447 = vadd.f32 %v567, %v1383
        %v1448 = vadd.f32 %v656, %v1384
        %v1449 = vadd.f32 %v569, %v1385
        %v1450 = vadd.f32 %v658, %v1386
        %v1451 = vadd.f32 %v572, %v1387
        %v1452 = vadd.f32 %v661, %v1388
        %v1453 = vadd.f32 %v574, %v1389
        %v1454 = vadd.f32 %v663, %v1390
        %v1455 = vadd.f32 %v577, %v1391
        %v1456 = vadd.f32 %v666, %v1392
        %v1457 = vadd.f32 %v579, %v1393
        %v1458 = vadd.f32 %v668, %v1394
        %v1459 = vadd.f32 %v582, %v1395
        %v1460 = vadd.f32 %v671, %v1396
        %v1461 = vadd.f32 %v584, %v1397
        %v1462 = vadd.f32 %v673, %v1398
        %v1463 = vadd.f32 %v587, %v1399
        %v1464 = vadd.f32 %v676, %v1400
        %v1465 = vadd.f32 %v589, %v1401
        %v1466 = vadd.f32 %v678, %v1402
        %v1467 = vadd.f32 %v592, %v1403
        %v1468 = vadd.f32 %v681, %v1404
        %v1469 = vadd.f32 %v594, %v1405
        %v1470 = vadd.f32 %v683, %v1406
        %v1471 = vadd.f32 %v597, %v1407
        %v1472 = vadd.f32 %v686, %v1408
        %v1473 = vadd.f32 %v599, %v1409
        %v1474 = vadd.f32 %v688, %v1410
        %v1475 = vadd.f32 %v602, %v1411
        %v1476 = vadd.f32 %v691, %v1412
        %v1477 = vadd.f32 %v604, %v1413
        %v1478 = vadd.f32 %v693, %v1414
        %v1479 = vadd.f32 %v607, %v1415
        %v1480 = vadd.f32 %v696, %v1416
        %v1481 = vadd.f32 %v609, %v1417
        %v1482 = vadd.f32 %v698, %v1418
        %v1483 = vadd.f32 %v612, %v1419
        %v1484 = vadd.f32 %v701, %v1420
        %v1485 = vadd.f32 %v614, %v1421
        %v1486 = vadd.f32 %v703, %v1422
        %v1487 = vadd.f32 %v617, %v1423
        %v1488 = vadd.f32 %v706, %v1424
        %v1489 = vadd.f32 %v619, %v1425
        %v1490 = vadd.f32 %v708, %v1426
        %v1491 = vadd.f32 %v622, %v1427
        %v1492 = vadd.f32 %v711, %v1428
        %v1493 = vadd.f32 %v624, %v1429
        %v1494 = vadd.f32 %v713, %v1430
        %v1495 = vadd.f32 %v627, %v1431
        %v1496 = vadd.f32 %v716, %v1432
        %v1497 = vadd.f32 %v629, %v1433
        %v1498 = vadd.f32 %v718, %v1434
        %v1499 = vadd.f32 %v632, %v1435
        %v1500 = vadd.f32 %v721, %v1436
        %v1501 = vadd.f32 %v634, %v1437
        %v1502 = vadd.f32 %v723, %v1438
        %v1503 = vpack.c.bf16 %v1441, %v1439
        %v1504 = vpack.c.bf16 %v1442, %v1440
        %v1505 = vpack.c.bf16 %v1445, %v1443
        %v1506 = vpack.c.bf16 %v1446, %v1444
        %v1507 = vpack.c.bf16 %v1449, %v1447
        %v1508 = vpack.c.bf16 %v1450, %v1448
        %v1509 = vpack.c.bf16 %v1453, %v1451
        %v1510 = vpack.c.bf16 %v1454, %v1452
        %v1511 = vpack.c.bf16 %v1457, %v1455
        %v1512 = vpack.c.bf16 %v1458, %v1456
        %v1513 = vpack.c.bf16 %v1461, %v1459
        %v1514 = vpack.c.bf16 %v1462, %v1460
        %v1515 = vpack.c.bf16 %v1465, %v1463
        %v1516 = vpack.c.bf16 %v1466, %v1464
        %v1517 = vpack.c.bf16 %v1469, %v1467
        %v1518 = vpack.c.bf16 %v1470, %v1468
        %v1519 = vpack.c.bf16 %v1473, %v1471
        %v1520 = vpack.c.bf16 %v1474, %v1472
        %v1521 = vpack.c.bf16 %v1477, %v1475
        %v1522 = vpack.c.bf16 %v1478, %v1476
        %v1523 = vpack.c.bf16 %v1481, %v1479
        %v1524 = vpack.c.bf16 %v1482, %v1480
        %v1525 = vpack.c.bf16 %v1485, %v1483
        %v1526 = vpack.c.bf16 %v1486, %v1484
        %v1527 = vpack.c.bf16 %v1489, %v1487
        %v1528 = vpack.c.bf16 %v1490, %v1488
        %v1529 = vpack.c.bf16 %v1493, %v1491
        %v1530 = vpack.c.bf16 %v1494, %v1492
        %v1531 = vpack.c.bf16 %v1497, %v1495
        %v1532 = vpack.c.bf16 %v1498, %v1496
        %v1533 = vpack.c.bf16 %v1501, %v1499
        %v1534 = vpack.c.bf16 %v1502, %v1500
        %s1535 = scalar_lea.vmem [#allocation8], 256
        %v1536 = vld [vmem:[%s1535] sm:$0xff]
        %v1537 = vld [vmem:[%s1535 + $0x8] sm:$0xff]
        %v1538 = vld [vmem:[%s1535 + $0x10] sm:$0xff]
        %v1539 = vld [vmem:[%s1535 + $0x18] sm:$0xff]
        %v1540 = vld [vmem:[%s1535 + $0x20] sm:$0xff]
        %v1541 = vld [vmem:[%s1535 + $0x28] sm:$0xff]
        %v1542 = vld [vmem:[%s1535 + $0x30] sm:$0xff]
        %v1543 = vld [vmem:[%s1535 + $0x38] sm:$0xff]
        %v1544 = vld [vmem:[%s1535 + $0x40] sm:$0xff]
        %v1545 = vld [vmem:[%s1535 + $0x48] sm:$0xff]
        %v1546 = vld [vmem:[%s1535 + $0x50] sm:$0xff]
        %v1547 = vld [vmem:[%s1535 + $0x58] sm:$0xff]
        %v1548 = vld [vmem:[%s1535 + $0x60] sm:$0xff]
        %v1549 = vld [vmem:[%s1535 + $0x68] sm:$0xff]
        %v1550 = vld [vmem:[%s1535 + $0x70] sm:$0xff]
        %v1551 = vld [vmem:[%s1535 + $0x78] sm:$0xff]
        %v1552 = vld [vmem:[%s1535 + $0x80] sm:$0xff]
        %v1553 = vld [vmem:[%s1535 + $0x88] sm:$0xff]
        %v1554 = vld [vmem:[%s1535 + $0x90] sm:$0xff]
        %v1555 = vld [vmem:[%s1535 + $0x98] sm:$0xff]
        %v1556 = vld [vmem:[%s1535 + $0xa0] sm:$0xff]
        %v1557 = vld [vmem:[%s1535 + $0xa8] sm:$0xff]
        %v1558 = vld [vmem:[%s1535 + $0xb0] sm:$0xff]
        %v1559 = vld [vmem:[%s1535 + $0xb8] sm:$0xff]
        %v1560 = vld [vmem:[%s1535 + $0xc0] sm:$0xff]
        %v1561 = vld [vmem:[%s1535 + $0xc8] sm:$0xff]
        %v1562 = vld [vmem:[%s1535 + $0xd0] sm:$0xff]
        %v1563 = vld [vmem:[%s1535 + $0xd8] sm:$0xff]
        %v1564 = vld [vmem:[%s1535 + $0xe0] sm:$0xff]
        %v1565 = vld [vmem:[%s1535 + $0xe8] sm:$0xff]
        %v1566 = vld [vmem:[%s1535 + $0xf0] sm:$0xff]
        %v1567 = vld [vmem:[%s1535 + $0xf8] sm:$0xff]
        %s1568 = scalar_lea.vmem [#allocation10], 2
        %v1569 = vld [vmem:[%s1568] sm:$0x3]
        %v1571 = vperm.slane %v1569, 0
        %v1572 = vperm.slane %v1569, 1
        %v1607 = vunpack.c.l.b16 %v1536
        %v1608 = vunpack.c.h.b16 %v1536
        %v1609 = vunpack.c.l.b16 %v1537
        %v1610 = vunpack.c.h.b16 %v1537
        %v1611 = vunpack.c.l.b16 %v1538
        %v1612 = vunpack.c.h.b16 %v1538
        %v1613 = vunpack.c.l.b16 %v1539
        %v1614 = vunpack.c.h.b16 %v1539
        %v1615 = vunpack.c.l.b16 %v1540
        %v1616 = vunpack.c.h.b16 %v1540
        %v1617 = vunpack.c.l.b16 %v1541
        %v1618 = vunpack.c.h.b16 %v1541
        %v1619 = vunpack.c.l.b16 %v1542
        %v1620 = vunpack.c.h.b16 %v1542
        %v1621 = vunpack.c.l.b16 %v1543
        %v1622 = vunpack.c.h.b16 %v1543
        %v1623 = vunpack.c.l.b16 %v1544
        %v1624 = vunpack.c.h.b16 %v1544
        %v1625 = vunpack.c.l.b16 %v1545
        %v1626 = vunpack.c.h.b16 %v1545
        %v1627 = vunpack.c.l.b16 %v1546
        %v1628 = vunpack.c.h.b16 %v1546
        %v1629 = vunpack.c.l.b16 %v1547
        %v1630 = vunpack.c.h.b16 %v1547
        %v1631 = vunpack.c.l.b16 %v1548
        %v1632 = vunpack.c.h.b16 %v1548
        %v1633 = vunpack.c.l.b16 %v1549
        %v1634 = vunpack.c.h.b16 %v1549
        %v1635 = vunpack.c.l.b16 %v1550
        %v1636 = vunpack.c.h.b16 %v1550
        %v1637 = vunpack.c.l.b16 %v1551
        %v1638 = vunpack.c.h.b16 %v1551
        %v1639 = vunpack.c.l.b16 %v1552
        %v1640 = vunpack.c.h.b16 %v1552
        %v1641 = vunpack.c.l.b16 %v1553
        %v1642 = vunpack.c.h.b16 %v1553
        %v1643 = vunpack.c.l.b16 %v1554
        %v1644 = vunpack.c.h.b16 %v1554
        %v1645 = vunpack.c.l.b16 %v1555
        %v1646 = vunpack.c.h.b16 %v1555
        %v1647 = vunpack.c.l.b16 %v1556
        %v1648 = vunpack.c.h.b16 %v1556
        %v1649 = vunpack.c.l.b16 %v1557
        %v1650 = vunpack.c.h.b16 %v1557
        %v1651 = vunpack.c.l.b16 %v1558
        %v1652 = vunpack.c.h.b16 %v1558
        %v1653 = vunpack.c.l.b16 %v1559
        %v1654 = vunpack.c.h.b16 %v1559
        %v1655 = vunpack.c.l.b16 %v1560
        %v1656 = vunpack.c.h.b16 %v1560
        %v1657 = vunpack.c.l.b16 %v1561
        %v1658 = vunpack.c.h.b16 %v1561
        %v1659 = vunpack.c.l.b16 %v1562
        %v1660 = vunpack.c.h.b16 %v1562
        %v1661 = vunpack.c.l.b16 %v1563
        %v1662 = vunpack.c.h.b16 %v1563
        %v1663 = vunpack.c.l.b16 %v1564
        %v1664 = vunpack.c.h.b16 %v1564
        %v1665 = vunpack.c.l.b16 %v1565
        %v1666 = vunpack.c.h.b16 %v1565
        %v1667 = vunpack.c.l.b16 %v1566
        %v1668 = vunpack.c.h.b16 %v1566
        %v1669 = vunpack.c.l.b16 %v1567
        %v1670 = vunpack.c.h.b16 %v1567
        %v1671 = vpack.c.b16 %v1609, %v1607
        %v1672 = vpack.c.b16 %v1610, %v1608
        %v1673 = vpack.c.b16 %v1613, %v1611
        %v1674 = vpack.c.b16 %v1614, %v1612
        %v1675 = vpack.c.b16 %v1617, %v1615
        %v1676 = vpack.c.b16 %v1618, %v1616
        %v1677 = vpack.c.b16 %v1621, %v1619
        %v1678 = vpack.c.b16 %v1622, %v1620
        %v1679 = vpack.c.b16 %v1625, %v1623
        %v1680 = vpack.c.b16 %v1626, %v1624
        %v1681 = vpack.c.b16 %v1629, %v1627
        %v1682 = vpack.c.b16 %v1630, %v1628
        %v1683 = vpack.c.b16 %v1633, %v1631
        %v1684 = vpack.c.b16 %v1634, %v1632
        %v1685 = vpack.c.b16 %v1637, %v1635
        %v1686 = vpack.c.b16 %v1638, %v1636
        %v1687 = vpack.c.b16 %v1641, %v1639
        %v1688 = vpack.c.b16 %v1642, %v1640
        %v1689 = vpack.c.b16 %v1645, %v1643
        %v1690 = vpack.c.b16 %v1646, %v1644
        %v1691 = vpack.c.b16 %v1649, %v1647
        %v1692 = vpack.c.b16 %v1650, %v1648
        %v1693 = vpack.c.b16 %v1653, %v1651
        %v1694 = vpack.c.b16 %v1654, %v1652
        %v1695 = vpack.c.b16 %v1657, %v1655
        %v1696 = vpack.c.b16 %v1658, %v1656
        %v1697 = vpack.c.b16 %v1661, %v1659
        %v1698 = vpack.c.b16 %v1662, %v1660
        %v1699 = vpack.c.b16 %v1665, %v1663
        %v1700 = vpack.c.b16 %v1666, %v1664
        %v1701 = vpack.c.b16 %v1669, %v1667
        %v1702 = vpack.c.b16 %v1670, %v1668
        %1735 = vmatpush.bf16.msra.mxu0 %v1685
        %1736 = vmatpush.bf16.msra.mxu0 %v1683
        %1737 = vmatpush.bf16.msra.mxu0 %v1681
        %1738 = vmatpush.bf16.msra.mxu0 %v1679
        %1739 = vmatpush.bf16.msra.mxu0 %v1677
        %1740 = vmatpush.bf16.msra.mxu0 %v1675
        %1741 = vmatpush.bf16.msra.mxu0 %v1673
        %1742 = vmatpush.bf16.msra.mxu0 %v1671
        %1743 = vmatmul.bf16.gmra.mxu0 %v1503
        %v1744 = vpop.f32.mrf.mxu0
        %v1745 = vadd.f32 %v1571, %v1744
        %v1746 = vpop.f32.mrf.mxu0
        %v1747 = vadd.f32 %v1571, %v1746
        %1748 = vmatmul.bf16.gmra.mxu0 %v1505
        %v1749 = vpop.f32.mrf.mxu0
        %v1750 = vadd.f32 %v1571, %v1749
        %v1751 = vpop.f32.mrf.mxu0
        %v1752 = vadd.f32 %v1571, %v1751
        %1753 = vmatmul.bf16.gmra.mxu0 %v1507
        %v1754 = vpop.f32.mrf.mxu0
        %v1755 = vadd.f32 %v1571, %v1754
        %v1756 = vpop.f32.mrf.mxu0
        %v1757 = vadd.f32 %v1571, %v1756
        %1758 = vmatmul.bf16.gmra.mxu0 %v1509
        %v1759 = vpop.f32.mrf.mxu0
        %v1760 = vadd.f32 %v1571, %v1759
        %v1761 = vpop.f32.mrf.mxu0
        %v1762 = vadd.f32 %v1571, %v1761
        %1763 = vmatmul.bf16.gmra.mxu0 %v1511
        %v1764 = vpop.f32.mrf.mxu0
        %v1765 = vadd.f32 %v1571, %v1764
        %v1766 = vpop.f32.mrf.mxu0
        %v1767 = vadd.f32 %v1571, %v1766
        %1768 = vmatmul.bf16.gmra.mxu0 %v1513
        %v1769 = vpop.f32.mrf.mxu0
        %v1770 = vadd.f32 %v1571, %v1769
        %v1771 = vpop.f32.mrf.mxu0
        %v1772 = vadd.f32 %v1571, %v1771
        %1773 = vmatmul.bf16.gmra.mxu0 %v1515
        %v1774 = vpop.f32.mrf.mxu0
        %v1775 = vadd.f32 %v1571, %v1774
        %v1776 = vpop.f32.mrf.mxu0
        %v1777 = vadd.f32 %v1571, %v1776
        %1778 = vmatmul.bf16.gmra.mxu0 %v1517
        %v1779 = vpop.f32.mrf.mxu0
        %v1780 = vadd.f32 %v1571, %v1779
        %v1781 = vpop.f32.mrf.mxu0
        %v1782 = vadd.f32 %v1571, %v1781
        %1783 = vmatmul.bf16.gmra.mxu0 %v1519
        %v1784 = vpop.f32.mrf.mxu0
        %v1785 = vadd.f32 %v1571, %v1784
        %v1786 = vpop.f32.mrf.mxu0
        %v1787 = vadd.f32 %v1571, %v1786
        %1788 = vmatmul.bf16.gmra.mxu0 %v1521
        %v1789 = vpop.f32.mrf.mxu0
        %v1790 = vadd.f32 %v1571, %v1789
        %v1791 = vpop.f32.mrf.mxu0
        %v1792 = vadd.f32 %v1571, %v1791
        %1793 = vmatmul.bf16.gmra.mxu0 %v1523
        %v1794 = vpop.f32.mrf.mxu0
        %v1795 = vadd.f32 %v1571, %v1794
        %v1796 = vpop.f32.mrf.mxu0
        %v1797 = vadd.f32 %v1571, %v1796
        %1798 = vmatmul.bf16.gmra.mxu0 %v1525
        %v1799 = vpop.f32.mrf.mxu0
        %v1800 = vadd.f32 %v1571, %v1799
        %v1801 = vpop.f32.mrf.mxu0
        %v1802 = vadd.f32 %v1571, %v1801
        %1803 = vmatmul.bf16.gmra.mxu0 %v1527
        %v1804 = vpop.f32.mrf.mxu0
        %v1805 = vadd.f32 %v1571, %v1804
        %v1806 = vpop.f32.mrf.mxu0
        %v1807 = vadd.f32 %v1571, %v1806
        %1808 = vmatmul.bf16.gmra.mxu0 %v1529
        %v1809 = vpop.f32.mrf.mxu0
        %v1810 = vadd.f32 %v1571, %v1809
        %v1811 = vpop.f32.mrf.mxu0
        %v1812 = vadd.f32 %v1571, %v1811
        %1813 = vmatmul.bf16.gmra.mxu0 %v1531
        %v1814 = vpop.f32.mrf.mxu0
        %v1815 = vadd.f32 %v1571, %v1814
        %v1816 = vpop.f32.mrf.mxu0
        %v1817 = vadd.f32 %v1571, %v1816
        %1818 = vmatmul.bf16.gmra.mxu0 %v1533
        %v1819 = vpop.f32.mrf.mxu0
        %v1820 = vadd.f32 %v1571, %v1819
        %v1821 = vpop.f32.mrf.mxu0
        %v1822 = vadd.f32 %v1571, %v1821
        %1823 = vdwg.mxu0
        %1824 = vmatpush.bf16.msra.mxu0 %v1701
        %1825 = vmatpush.bf16.msra.mxu0 %v1699
        %1826 = vmatpush.bf16.msra.mxu0 %v1697
        %1827 = vmatpush.bf16.msra.mxu0 %v1695
        %1828 = vmatpush.bf16.msra.mxu0 %v1693
        %1829 = vmatpush.bf16.msra.mxu0 %v1691
        %1830 = vmatpush.bf16.msra.mxu0 %v1689
        %1831 = vmatpush.bf16.msra.mxu0 %v1687
        %1832 = vmatmul.bf16.gmra.mxu0 %v1504
        %v1833 = vpop.f32.mrf.mxu0
        %v1834 = vadd.f32 %v1745, %v1833
        %v1835 = vpop.f32.mrf.mxu0
        %v1836 = vadd.f32 %v1747, %v1835
        %1837 = vmatmul.bf16.gmra.mxu0 %v1506
        %v1838 = vpop.f32.mrf.mxu0
        %v1839 = vadd.f32 %v1750, %v1838
        %v1840 = vpop.f32.mrf.mxu0
        %v1841 = vadd.f32 %v1752, %v1840
        %1842 = vmatmul.bf16.gmra.mxu0 %v1508
        %v1843 = vpop.f32.mrf.mxu0
        %v1844 = vadd.f32 %v1755, %v1843
        %v1845 = vpop.f32.mrf.mxu0
        %v1846 = vadd.f32 %v1757, %v1845
        %1847 = vmatmul.bf16.gmra.mxu0 %v1510
        %v1848 = vpop.f32.mrf.mxu0
        %v1849 = vadd.f32 %v1760, %v1848
        %v1850 = vpop.f32.mrf.mxu0
        %v1851 = vadd.f32 %v1762, %v1850
        %1852 = vmatmul.bf16.gmra.mxu0 %v1512
        %v1853 = vpop.f32.mrf.mxu0
        %v1854 = vadd.f32 %v1765, %v1853
        %v1855 = vpop.f32.mrf.mxu0
        %v1856 = vadd.f32 %v1767, %v1855
        %1857 = vmatmul.bf16.gmra.mxu0 %v1514
        %v1858 = vpop.f32.mrf.mxu0
        %v1859 = vadd.f32 %v1770, %v1858
        %v1860 = vpop.f32.mrf.mxu0
        %v1861 = vadd.f32 %v1772, %v1860
        %1862 = vmatmul.bf16.gmra.mxu0 %v1516
        %v1863 = vpop.f32.mrf.mxu0
        %v1864 = vadd.f32 %v1775, %v1863
        %v1865 = vpop.f32.mrf.mxu0
        %v1866 = vadd.f32 %v1777, %v1865
        %1867 = vmatmul.bf16.gmra.mxu0 %v1518
        %v1868 = vpop.f32.mrf.mxu0
        %v1869 = vadd.f32 %v1780, %v1868
        %v1870 = vpop.f32.mrf.mxu0
        %v1871 = vadd.f32 %v1782, %v1870
        %1872 = vmatmul.bf16.gmra.mxu0 %v1520
        %v1873 = vpop.f32.mrf.mxu0
        %v1874 = vadd.f32 %v1785, %v1873
        %v1875 = vpop.f32.mrf.mxu0
        %v1876 = vadd.f32 %v1787, %v1875
        %1877 = vmatmul.bf16.gmra.mxu0 %v1522
        %v1878 = vpop.f32.mrf.mxu0
        %v1879 = vadd.f32 %v1790, %v1878
        %v1880 = vpop.f32.mrf.mxu0
        %v1881 = vadd.f32 %v1792, %v1880
        %1882 = vmatmul.bf16.gmra.mxu0 %v1524
        %v1883 = vpop.f32.mrf.mxu0
        %v1884 = vadd.f32 %v1795, %v1883
        %v1885 = vpop.f32.mrf.mxu0
        %v1886 = vadd.f32 %v1797, %v1885
        %1887 = vmatmul.bf16.gmra.mxu0 %v1526
        %v1888 = vpop.f32.mrf.mxu0
        %v1889 = vadd.f32 %v1800, %v1888
        %v1890 = vpop.f32.mrf.mxu0
        %v1891 = vadd.f32 %v1802, %v1890
        %1892 = vmatmul.bf16.gmra.mxu0 %v1528
        %v1893 = vpop.f32.mrf.mxu0
        %v1894 = vadd.f32 %v1805, %v1893
        %v1895 = vpop.f32.mrf.mxu0
        %v1896 = vadd.f32 %v1807, %v1895
        %1897 = vmatmul.bf16.gmra.mxu0 %v1530
        %v1898 = vpop.f32.mrf.mxu0
        %v1899 = vadd.f32 %v1810, %v1898
        %v1900 = vpop.f32.mrf.mxu0
        %v1901 = vadd.f32 %v1812, %v1900
        %1902 = vmatmul.bf16.gmra.mxu0 %v1532
        %v1903 = vpop.f32.mrf.mxu0
        %v1904 = vadd.f32 %v1815, %v1903
        %v1905 = vpop.f32.mrf.mxu0
        %v1906 = vadd.f32 %v1817, %v1905
        %1907 = vmatmul.bf16.gmra.mxu0 %v1534
        %v1908 = vpop.f32.mrf.mxu0
        %v1909 = vadd.f32 %v1820, %v1908
        %v1910 = vpop.f32.mrf.mxu0
        %v1911 = vadd.f32 %v1822, %v1910
        %1912 = vdwg.mxu0
        %1913 = vmatpush.bf16.msra.mxu0 %v1686
        %1914 = vmatpush.bf16.msra.mxu0 %v1684
        %1915 = vmatpush.bf16.msra.mxu0 %v1682
        %1916 = vmatpush.bf16.msra.mxu0 %v1680
        %1917 = vmatpush.bf16.msra.mxu0 %v1678
        %1918 = vmatpush.bf16.msra.mxu0 %v1676
        %1919 = vmatpush.bf16.msra.mxu0 %v1674
        %1920 = vmatpush.bf16.msra.mxu0 %v1672
        %1921 = vmatmul.bf16.gmra.mxu0 %v1503
        %v1922 = vpop.f32.mrf.mxu0
        %v1923 = vadd.f32 %v1572, %v1922
        %v1924 = vpop.f32.mrf.mxu0
        %v1925 = vadd.f32 %v1572, %v1924
        %1926 = vmatmul.bf16.gmra.mxu0 %v1505
        %v1927 = vpop.f32.mrf.mxu0
        %v1928 = vadd.f32 %v1572, %v1927
        %v1929 = vpop.f32.mrf.mxu0
        %v1930 = vadd.f32 %v1572, %v1929
        %1931 = vmatmul.bf16.gmra.mxu0 %v1507
        %v1932 = vpop.f32.mrf.mxu0
        %v1933 = vadd.f32 %v1572, %v1932
        %v1934 = vpop.f32.mrf.mxu0
        %v1935 = vadd.f32 %v1572, %v1934
        %1936 = vmatmul.bf16.gmra.mxu0 %v1509
        %v1937 = vpop.f32.mrf.mxu0
        %v1938 = vadd.f32 %v1572, %v1937
        %v1939 = vpop.f32.mrf.mxu0
        %v1940 = vadd.f32 %v1572, %v1939
        %1941 = vmatmul.bf16.gmra.mxu0 %v1511
        %v1942 = vpop.f32.mrf.mxu0
        %v1943 = vadd.f32 %v1572, %v1942
        %v1944 = vpop.f32.mrf.mxu0
        %v1945 = vadd.f32 %v1572, %v1944
        %1946 = vmatmul.bf16.gmra.mxu0 %v1513
        %v1947 = vpop.f32.mrf.mxu0
        %v1948 = vadd.f32 %v1572, %v1947
        %v1949 = vpop.f32.mrf.mxu0
        %v1950 = vadd.f32 %v1572, %v1949
        %1951 = vmatmul.bf16.gmra.mxu0 %v1515
        %v1952 = vpop.f32.mrf.mxu0
        %v1953 = vadd.f32 %v1572, %v1952
        %v1954 = vpop.f32.mrf.mxu0
        %v1955 = vadd.f32 %v1572, %v1954
        %1956 = vmatmul.bf16.gmra.mxu0 %v1517
        %v1957 = vpop.f32.mrf.mxu0
        %v1958 = vadd.f32 %v1572, %v1957
        %v1959 = vpop.f32.mrf.mxu0
        %v1960 = vadd.f32 %v1572, %v1959
        %1961 = vmatmul.bf16.gmra.mxu0 %v1519
        %v1962 = vpop.f32.mrf.mxu0
        %v1963 = vadd.f32 %v1572, %v1962
        %v1964 = vpop.f32.mrf.mxu0
        %v1965 = vadd.f32 %v1572, %v1964
        %1966 = vmatmul.bf16.gmra.mxu0 %v1521
        %v1967 = vpop.f32.mrf.mxu0
        %v1968 = vadd.f32 %v1572, %v1967
        %v1969 = vpop.f32.mrf.mxu0
        %v1970 = vadd.f32 %v1572, %v1969
        %1971 = vmatmul.bf16.gmra.mxu0 %v1523
        %v1972 = vpop.f32.mrf.mxu0
        %v1973 = vadd.f32 %v1572, %v1972
        %v1974 = vpop.f32.mrf.mxu0
        %v1975 = vadd.f32 %v1572, %v1974
        %1976 = vmatmul.bf16.gmra.mxu0 %v1525
        %v1977 = vpop.f32.mrf.mxu0
        %v1978 = vadd.f32 %v1572, %v1977
        %v1979 = vpop.f32.mrf.mxu0
        %v1980 = vadd.f32 %v1572, %v1979
        %1981 = vmatmul.bf16.gmra.mxu0 %v1527
        %v1982 = vpop.f32.mrf.mxu0
        %v1983 = vadd.f32 %v1572, %v1982
        %v1984 = vpop.f32.mrf.mxu0
        %v1985 = vadd.f32 %v1572, %v1984
        %1986 = vmatmul.bf16.gmra.mxu0 %v1529
        %v1987 = vpop.f32.mrf.mxu0
        %v1988 = vadd.f32 %v1572, %v1987
        %v1989 = vpop.f32.mrf.mxu0
        %v1990 = vadd.f32 %v1572, %v1989
        %1991 = vmatmul.bf16.gmra.mxu0 %v1531
        %v1992 = vpop.f32.mrf.mxu0
        %v1993 = vadd.f32 %v1572, %v1992
        %v1994 = vpop.f32.mrf.mxu0
        %v1995 = vadd.f32 %v1572, %v1994
        %1996 = vmatmul.bf16.gmra.mxu0 %v1533
        %v1997 = vpop.f32.mrf.mxu0
        %v1998 = vadd.f32 %v1572, %v1997
        %v1999 = vpop.f32.mrf.mxu0
        %v2000 = vadd.f32 %v1572, %v1999
        %2001 = vdwg.mxu0
        %2002 = vmatpush.bf16.msra.mxu0 %v1702
        %2003 = vmatpush.bf16.msra.mxu0 %v1700
        %2004 = vmatpush.bf16.msra.mxu0 %v1698
        %2005 = vmatpush.bf16.msra.mxu0 %v1696
        %2006 = vmatpush.bf16.msra.mxu0 %v1694
        %2007 = vmatpush.bf16.msra.mxu0 %v1692
        %2008 = vmatpush.bf16.msra.mxu0 %v1690
        %2009 = vmatpush.bf16.msra.mxu0 %v1688
        %2010 = vmatmul.bf16.gmra.mxu0 %v1504
        %v2011 = vpop.f32.mrf.mxu0
        %v2012 = vadd.f32 %v1923, %v2011
        %v2013 = vpop.f32.mrf.mxu0
        %v2014 = vadd.f32 %v1925, %v2013
        %2015 = vmatmul.bf16.gmra.mxu0 %v1506
        %v2016 = vpop.f32.mrf.mxu0
        %v2017 = vadd.f32 %v1928, %v2016
        %v2018 = vpop.f32.mrf.mxu0
        %v2019 = vadd.f32 %v1930, %v2018
        %2020 = vmatmul.bf16.gmra.mxu0 %v1508
        %v2021 = vpop.f32.mrf.mxu0
        %v2022 = vadd.f32 %v1933, %v2021
        %v2023 = vpop.f32.mrf.mxu0
        %v2024 = vadd.f32 %v1935, %v2023
        %2025 = vmatmul.bf16.gmra.mxu0 %v1510
        %v2026 = vpop.f32.mrf.mxu0
        %v2027 = vadd.f32 %v1938, %v2026
        %v2028 = vpop.f32.mrf.mxu0
        %v2029 = vadd.f32 %v1940, %v2028
        %2030 = vmatmul.bf16.gmra.mxu0 %v1512
        %v2031 = vpop.f32.mrf.mxu0
        %v2032 = vadd.f32 %v1943, %v2031
        %v2033 = vpop.f32.mrf.mxu0
        %v2034 = vadd.f32 %v1945, %v2033
        %2035 = vmatmul.bf16.gmra.mxu0 %v1514
        %v2036 = vpop.f32.mrf.mxu0
        %v2037 = vadd.f32 %v1948, %v2036
        %v2038 = vpop.f32.mrf.mxu0
        %v2039 = vadd.f32 %v1950, %v2038
        %2040 = vmatmul.bf16.gmra.mxu0 %v1516
        %v2041 = vpop.f32.mrf.mxu0
        %v2042 = vadd.f32 %v1953, %v2041
        %v2043 = vpop.f32.mrf.mxu0
        %v2044 = vadd.f32 %v1955, %v2043
        %2045 = vmatmul.bf16.gmra.mxu0 %v1518
        %v2046 = vpop.f32.mrf.mxu0
        %v2047 = vadd.f32 %v1958, %v2046
        %v2048 = vpop.f32.mrf.mxu0
        %v2049 = vadd.f32 %v1960, %v2048
        %2050 = vmatmul.bf16.gmra.mxu0 %v1520
        %v2051 = vpop.f32.mrf.mxu0
        %v2052 = vadd.f32 %v1963, %v2051
        %v2053 = vpop.f32.mrf.mxu0
        %v2054 = vadd.f32 %v1965, %v2053
        %2055 = vmatmul.bf16.gmra.mxu0 %v1522
        %v2056 = vpop.f32.mrf.mxu0
        %v2057 = vadd.f32 %v1968, %v2056
        %v2058 = vpop.f32.mrf.mxu0
        %v2059 = vadd.f32 %v1970, %v2058
        %2060 = vmatmul.bf16.gmra.mxu0 %v1524
        %v2061 = vpop.f32.mrf.mxu0
        %v2062 = vadd.f32 %v1973, %v2061
        %v2063 = vpop.f32.mrf.mxu0
        %v2064 = vadd.f32 %v1975, %v2063
        %2065 = vmatmul.bf16.gmra.mxu0 %v1526
        %v2066 = vpop.f32.mrf.mxu0
        %v2067 = vadd.f32 %v1978, %v2066
        %v2068 = vpop.f32.mrf.mxu0
        %v2069 = vadd.f32 %v1980, %v2068
        %2070 = vmatmul.bf16.gmra.mxu0 %v1528
        %v2071 = vpop.f32.mrf.mxu0
        %v2072 = vadd.f32 %v1983, %v2071
        %v2073 = vpop.f32.mrf.mxu0
        %v2074 = vadd.f32 %v1985, %v2073
        %2075 = vmatmul.bf16.gmra.mxu0 %v1530
        %v2076 = vpop.f32.mrf.mxu0
        %v2077 = vadd.f32 %v1988, %v2076
        %v2078 = vpop.f32.mrf.mxu0
        %v2079 = vadd.f32 %v1990, %v2078
        %2080 = vmatmul.bf16.gmra.mxu0 %v1532
        %v2081 = vpop.f32.mrf.mxu0
        %v2082 = vadd.f32 %v1993, %v2081
        %v2083 = vpop.f32.mrf.mxu0
        %v2084 = vadd.f32 %v1995, %v2083
        %2085 = vmatmul.bf16.gmra.mxu0 %v1534
        %v2086 = vpop.f32.mrf.mxu0
        %v2087 = vadd.f32 %v1998, %v2086
        %v2088 = vpop.f32.mrf.mxu0
        %v2089 = vadd.f32 %v2000, %v2088
        %2090 = vdwg.mxu0
        %v2091 = vmul.f32 %v1834, 0.01
        %v2092 = vmul.f32 %v2012, 0.01
        %v2093 = vmul.f32 %v1836, 0.01
        %v2094 = vmul.f32 %v2014, 0.01
        %v2095 = vmul.f32 %v1839, 0.01
        %v2096 = vmul.f32 %v2017, 0.01
        %v2097 = vmul.f32 %v1841, 0.01
        %v2098 = vmul.f32 %v2019, 0.01
        %v2099 = vmul.f32 %v1844, 0.01
        %v2100 = vmul.f32 %v2022, 0.01
        %v2101 = vmul.f32 %v1846, 0.01
        %v2102 = vmul.f32 %v2024, 0.01
        %v2103 = vmul.f32 %v1849, 0.01
        %v2104 = vmul.f32 %v2027, 0.01
        %v2105 = vmul.f32 %v1851, 0.01
        %v2106 = vmul.f32 %v2029, 0.01
        %v2107 = vmul.f32 %v1854, 0.01
        %v2108 = vmul.f32 %v2032, 0.01
        %v2109 = vmul.f32 %v1856, 0.01
        %v2110 = vmul.f32 %v2034, 0.01
        %v2111 = vmul.f32 %v1859, 0.01
        %v2112 = vmul.f32 %v2037, 0.01
        %v2113 = vmul.f32 %v1861, 0.01
        %v2114 = vmul.f32 %v2039, 0.01
        %v2115 = vmul.f32 %v1864, 0.01
        %v2116 = vmul.f32 %v2042, 0.01
        %v2117 = vmul.f32 %v1866, 0.01
        %v2118 = vmul.f32 %v2044, 0.01
        %v2119 = vmul.f32 %v1869, 0.01
        %v2120 = vmul.f32 %v2047, 0.01
        %v2121 = vmul.f32 %v1871, 0.01
        %v2122 = vmul.f32 %v2049, 0.01
        %v2123 = vmul.f32 %v1874, 0.01
        %v2124 = vmul.f32 %v2052, 0.01
        %v2125 = vmul.f32 %v1876, 0.01
        %v2126 = vmul.f32 %v2054, 0.01
        %v2127 = vmul.f32 %v1879, 0.01
        %v2128 = vmul.f32 %v2057, 0.01
        %v2129 = vmul.f32 %v1881, 0.01
        %v2130 = vmul.f32 %v2059, 0.01
        %v2131 = vmul.f32 %v1884, 0.01
        %v2132 = vmul.f32 %v2062, 0.01
        %v2133 = vmul.f32 %v1886, 0.01
        %v2134 = vmul.f32 %v2064, 0.01
        %v2135 = vmul.f32 %v1889, 0.01
        %v2136 = vmul.f32 %v2067, 0.01
        %v2137 = vmul.f32 %v1891, 0.01
        %v2138 = vmul.f32 %v2069, 0.01
        %v2139 = vmul.f32 %v1894, 0.01
        %v2140 = vmul.f32 %v2072, 0.01
        %v2141 = vmul.f32 %v1896, 0.01
        %v2142 = vmul.f32 %v2074, 0.01
        %v2143 = vmul.f32 %v1899, 0.01
        %v2144 = vmul.f32 %v2077, 0.01
        %v2145 = vmul.f32 %v1901, 0.01
        %v2146 = vmul.f32 %v2079, 0.01
        %v2147 = vmul.f32 %v1904, 0.01
        %v2148 = vmul.f32 %v2082, 0.01
        %v2149 = vmul.f32 %v1906, 0.01
        %v2150 = vmul.f32 %v2084, 0.01
        %v2151 = vmul.f32 %v1909, 0.01
        %v2152 = vmul.f32 %v2087, 0.01
        %v2153 = vmul.f32 %v1911, 0.01
        %v2154 = vmul.f32 %v2089, 0.01
        %v2155 = vmax.f32 %v1834, %v2091
        %v2156 = vmax.f32 %v2012, %v2092
        %v2157 = vmax.f32 %v1836, %v2093
        %v2158 = vmax.f32 %v2014, %v2094
        %v2159 = vmax.f32 %v1839, %v2095
        %v2160 = vmax.f32 %v2017, %v2096
        %v2161 = vmax.f32 %v1841, %v2097
        %v2162 = vmax.f32 %v2019, %v2098
        %v2163 = vmax.f32 %v1844, %v2099
        %v2164 = vmax.f32 %v2022, %v2100
        %v2165 = vmax.f32 %v1846, %v2101
        %v2166 = vmax.f32 %v2024, %v2102
        %v2167 = vmax.f32 %v1849, %v2103
        %v2168 = vmax.f32 %v2027, %v2104
        %v2169 = vmax.f32 %v1851, %v2105
        %v2170 = vmax.f32 %v2029, %v2106
        %v2171 = vmax.f32 %v1854, %v2107
        %v2172 = vmax.f32 %v2032, %v2108
        %v2173 = vmax.f32 %v1856, %v2109
        %v2174 = vmax.f32 %v2034, %v2110
        %v2175 = vmax.f32 %v1859, %v2111
        %v2176 = vmax.f32 %v2037, %v2112
        %v2177 = vmax.f32 %v1861, %v2113
        %v2178 = vmax.f32 %v2039, %v2114
        %v2179 = vmax.f32 %v1864, %v2115
        %v2180 = vmax.f32 %v2042, %v2116
        %v2181 = vmax.f32 %v1866, %v2117
        %v2182 = vmax.f32 %v2044, %v2118
        %v2183 = vmax.f32 %v1869, %v2119
        %v2184 = vmax.f32 %v2047, %v2120
        %v2185 = vmax.f32 %v1871, %v2121
        %v2186 = vmax.f32 %v2049, %v2122
        %v2187 = vmax.f32 %v1874, %v2123
        %v2188 = vmax.f32 %v2052, %v2124
        %v2189 = vmax.f32 %v1876, %v2125
        %v2190 = vmax.f32 %v2054, %v2126
        %v2191 = vmax.f32 %v1879, %v2127
        %v2192 = vmax.f32 %v2057, %v2128
        %v2193 = vmax.f32 %v1881, %v2129
        %v2194 = vmax.f32 %v2059, %v2130
        %v2195 = vmax.f32 %v1884, %v2131
        %v2196 = vmax.f32 %v2062, %v2132
        %v2197 = vmax.f32 %v1886, %v2133
        %v2198 = vmax.f32 %v2064, %v2134
        %v2199 = vmax.f32 %v1889, %v2135
        %v2200 = vmax.f32 %v2067, %v2136
        %v2201 = vmax.f32 %v1891, %v2137
        %v2202 = vmax.f32 %v2069, %v2138
        %v2203 = vmax.f32 %v1894, %v2139
        %v2204 = vmax.f32 %v2072, %v2140
        %v2205 = vmax.f32 %v1896, %v2141
        %v2206 = vmax.f32 %v2074, %v2142
        %v2207 = vmax.f32 %v1899, %v2143
        %v2208 = vmax.f32 %v2077, %v2144
        %v2209 = vmax.f32 %v1901, %v2145
        %v2210 = vmax.f32 %v2079, %v2146
        %v2211 = vmax.f32 %v1904, %v2147
        %v2212 = vmax.f32 %v2082, %v2148
        %v2213 = vmax.f32 %v1906, %v2149
        %v2214 = vmax.f32 %v2084, %v2150
        %v2215 = vmax.f32 %v1909, %v2151
        %v2216 = vmax.f32 %v2087, %v2152
        %v2217 = vmax.f32 %v1911, %v2153
        %v2218 = vmax.f32 %v2089, %v2154
        %v2219 = vadd.f32 %v1439, %v2155
        %v2220 = vadd.f32 %v1440, %v2156
        %v2221 = vadd.f32 %v1441, %v2157
        %v2222 = vadd.f32 %v1442, %v2158
        %v2223 = vadd.f32 %v1443, %v2159
        %v2224 = vadd.f32 %v1444, %v2160
        %v2225 = vadd.f32 %v1445, %v2161
        %v2226 = vadd.f32 %v1446, %v2162
        %v2227 = vadd.f32 %v1447, %v2163
        %v2228 = vadd.f32 %v1448, %v2164
        %v2229 = vadd.f32 %v1449, %v2165
        %v2230 = vadd.f32 %v1450, %v2166
        %v2231 = vadd.f32 %v1451, %v2167
        %v2232 = vadd.f32 %v1452, %v2168
        %v2233 = vadd.f32 %v1453, %v2169
        %v2234 = vadd.f32 %v1454, %v2170
        %v2235 = vadd.f32 %v1455, %v2171
        %v2236 = vadd.f32 %v1456, %v2172
        %v2237 = vadd.f32 %v1457, %v2173
        %v2238 = vadd.f32 %v1458, %v2174
        %v2239 = vadd.f32 %v1459, %v2175
        %v2240 = vadd.f32 %v1460, %v2176
        %v2241 = vadd.f32 %v1461, %v2177
        %v2242 = vadd.f32 %v1462, %v2178
        %v2243 = vadd.f32 %v1463, %v2179
        %v2244 = vadd.f32 %v1464, %v2180
        %v2245 = vadd.f32 %v1465, %v2181
        %v2246 = vadd.f32 %v1466, %v2182
        %v2247 = vadd.f32 %v1467, %v2183
        %v2248 = vadd.f32 %v1468, %v2184
        %v2249 = vadd.f32 %v1469, %v2185
        %v2250 = vadd.f32 %v1470, %v2186
        %v2251 = vadd.f32 %v1471, %v2187
        %v2252 = vadd.f32 %v1472, %v2188
        %v2253 = vadd.f32 %v1473, %v2189
        %v2254 = vadd.f32 %v1474, %v2190
        %v2255 = vadd.f32 %v1475, %v2191
        %v2256 = vadd.f32 %v1476, %v2192
        %v2257 = vadd.f32 %v1477, %v2193
        %v2258 = vadd.f32 %v1478, %v2194
        %v2259 = vadd.f32 %v1479, %v2195
        %v2260 = vadd.f32 %v1480, %v2196
        %v2261 = vadd.f32 %v1481, %v2197
        %v2262 = vadd.f32 %v1482, %v2198
        %v2263 = vadd.f32 %v1483, %v2199
        %v2264 = vadd.f32 %v1484, %v2200
        %v2265 = vadd.f32 %v1485, %v2201
        %v2266 = vadd.f32 %v1486, %v2202
        %v2267 = vadd.f32 %v1487, %v2203
        %v2268 = vadd.f32 %v1488, %v2204
        %v2269 = vadd.f32 %v1489, %v2205
        %v2270 = vadd.f32 %v1490, %v2206
        %v2271 = vadd.f32 %v1491, %v2207
        %v2272 = vadd.f32 %v1492, %v2208
        %v2273 = vadd.f32 %v1493, %v2209
        %v2274 = vadd.f32 %v1494, %v2210
        %v2275 = vadd.f32 %v1495, %v2211
        %v2276 = vadd.f32 %v1496, %v2212
        %v2277 = vadd.f32 %v1497, %v2213
        %v2278 = vadd.f32 %v1498, %v2214
        %v2279 = vadd.f32 %v1499, %v2215
        %v2280 = vadd.f32 %v1500, %v2216
        %v2281 = vadd.f32 %v1501, %v2217
        %v2282 = vadd.f32 %v1502, %v2218
        %v2283 = vpack.c.bf16 %v2221, %v2219
        %v2284 = vpack.c.bf16 %v2222, %v2220
        %v2285 = vpack.c.bf16 %v2225, %v2223
        %v2286 = vpack.c.bf16 %v2226, %v2224
        %v2287 = vpack.c.bf16 %v2229, %v2227
        %v2288 = vpack.c.bf16 %v2230, %v2228
        %v2289 = vpack.c.bf16 %v2233, %v2231
        %v2290 = vpack.c.bf16 %v2234, %v2232
        %v2291 = vpack.c.bf16 %v2237, %v2235
        %v2292 = vpack.c.bf16 %v2238, %v2236
        %v2293 = vpack.c.bf16 %v2241, %v2239
        %v2294 = vpack.c.bf16 %v2242, %v2240
        %v2295 = vpack.c.bf16 %v2245, %v2243
        %v2296 = vpack.c.bf16 %v2246, %v2244
        %v2297 = vpack.c.bf16 %v2249, %v2247
        %v2298 = vpack.c.bf16 %v2250, %v2248
        %v2299 = vpack.c.bf16 %v2253, %v2251
        %v2300 = vpack.c.bf16 %v2254, %v2252
        %v2301 = vpack.c.bf16 %v2257, %v2255
        %v2302 = vpack.c.bf16 %v2258, %v2256
        %v2303 = vpack.c.bf16 %v2261, %v2259
        %v2304 = vpack.c.bf16 %v2262, %v2260
        %v2305 = vpack.c.bf16 %v2265, %v2263
        %v2306 = vpack.c.bf16 %v2266, %v2264
        %v2307 = vpack.c.bf16 %v2269, %v2267
        %v2308 = vpack.c.bf16 %v2270, %v2268
        %v2309 = vpack.c.bf16 %v2273, %v2271
        %v2310 = vpack.c.bf16 %v2274, %v2272
        %v2311 = vpack.c.bf16 %v2277, %v2275
        %v2312 = vpack.c.bf16 %v2278, %v2276
        %v2313 = vpack.c.bf16 %v2281, %v2279
        %v2314 = vpack.c.bf16 %v2282, %v2280
        %s2315 = scalar_lea.vmem [#allocation8], 512
        %v2316 = vld [vmem:[%s2315] sm:$0xff]
        %v2317 = vld [vmem:[%s2315 + $0x8] sm:$0xff]
        %v2318 = vld [vmem:[%s2315 + $0x10] sm:$0xff]
        %v2319 = vld [vmem:[%s2315 + $0x18] sm:$0xff]
        %v2320 = vld [vmem:[%s2315 + $0x20] sm:$0xff]
        %v2321 = vld [vmem:[%s2315 + $0x28] sm:$0xff]
        %v2322 = vld [vmem:[%s2315 + $0x30] sm:$0xff]
        %v2323 = vld [vmem:[%s2315 + $0x38] sm:$0xff]
        %v2324 = vld [vmem:[%s2315 + $0x40] sm:$0xff]
        %v2325 = vld [vmem:[%s2315 + $0x48] sm:$0xff]
        %v2326 = vld [vmem:[%s2315 + $0x50] sm:$0xff]
        %v2327 = vld [vmem:[%s2315 + $0x58] sm:$0xff]
        %v2328 = vld [vmem:[%s2315 + $0x60] sm:$0xff]
        %v2329 = vld [vmem:[%s2315 + $0x68] sm:$0xff]
        %v2330 = vld [vmem:[%s2315 + $0x70] sm:$0xff]
        %v2331 = vld [vmem:[%s2315 + $0x78] sm:$0xff]
        %v2332 = vld [vmem:[%s2315 + $0x80] sm:$0xff]
        %v2333 = vld [vmem:[%s2315 + $0x88] sm:$0xff]
        %v2334 = vld [vmem:[%s2315 + $0x90] sm:$0xff]
        %v2335 = vld [vmem:[%s2315 + $0x98] sm:$0xff]
        %v2336 = vld [vmem:[%s2315 + $0xa0] sm:$0xff]
        %v2337 = vld [vmem:[%s2315 + $0xa8] sm:$0xff]
        %v2338 = vld [vmem:[%s2315 + $0xb0] sm:$0xff]
        %v2339 = vld [vmem:[%s2315 + $0xb8] sm:$0xff]
        %v2340 = vld [vmem:[%s2315 + $0xc0] sm:$0xff]
        %v2341 = vld [vmem:[%s2315 + $0xc8] sm:$0xff]
        %v2342 = vld [vmem:[%s2315 + $0xd0] sm:$0xff]
        %v2343 = vld [vmem:[%s2315 + $0xd8] sm:$0xff]
        %v2344 = vld [vmem:[%s2315 + $0xe0] sm:$0xff]
        %v2345 = vld [vmem:[%s2315 + $0xe8] sm:$0xff]
        %v2346 = vld [vmem:[%s2315 + $0xf0] sm:$0xff]
        %v2347 = vld [vmem:[%s2315 + $0xf8] sm:$0xff]
        %s2348 = scalar_lea.vmem [#allocation10], 4
        %v2349 = vld [vmem:[%s2348] sm:$0x3]
        %v2351 = vperm.slane %v2349, 0
        %v2352 = vperm.slane %v2349, 1
        %v2387 = vunpack.c.l.b16 %v2316
        %v2388 = vunpack.c.h.b16 %v2316
        %v2389 = vunpack.c.l.b16 %v2317
        %v2390 = vunpack.c.h.b16 %v2317
        %v2391 = vunpack.c.l.b16 %v2318
        %v2392 = vunpack.c.h.b16 %v2318
        %v2393 = vunpack.c.l.b16 %v2319
        %v2394 = vunpack.c.h.b16 %v2319
        %v2395 = vunpack.c.l.b16 %v2320
        %v2396 = vunpack.c.h.b16 %v2320
        %v2397 = vunpack.c.l.b16 %v2321
        %v2398 = vunpack.c.h.b16 %v2321
        %v2399 = vunpack.c.l.b16 %v2322
        %v2400 = vunpack.c.h.b16 %v2322
        %v2401 = vunpack.c.l.b16 %v2323
        %v2402 = vunpack.c.h.b16 %v2323
        %v2403 = vunpack.c.l.b16 %v2324
        %v2404 = vunpack.c.h.b16 %v2324
        %v2405 = vunpack.c.l.b16 %v2325
        %v2406 = vunpack.c.h.b16 %v2325
        %v2407 = vunpack.c.l.b16 %v2326
        %v2408 = vunpack.c.h.b16 %v2326
        %v2409 = vunpack.c.l.b16 %v2327
        %v2410 = vunpack.c.h.b16 %v2327
        %v2411 = vunpack.c.l.b16 %v2328
        %v2412 = vunpack.c.h.b16 %v2328
        %v2413 = vunpack.c.l.b16 %v2329
        %v2414 = vunpack.c.h.b16 %v2329
        %v2415 = vunpack.c.l.b16 %v2330
        %v2416 = vunpack.c.h.b16 %v2330
        %v2417 = vunpack.c.l.b16 %v2331
        %v2418 = vunpack.c.h.b16 %v2331
        %v2419 = vunpack.c.l.b16 %v2332
        %v2420 = vunpack.c.h.b16 %v2332
        %v2421 = vunpack.c.l.b16 %v2333
        %v2422 = vunpack.c.h.b16 %v2333
        %v2423 = vunpack.c.l.b16 %v2334
        %v2424 = vunpack.c.h.b16 %v2334
        %v2425 = vunpack.c.l.b16 %v2335
        %v2426 = vunpack.c.h.b16 %v2335
        %v2427 = vunpack.c.l.b16 %v2336
        %v2428 = vunpack.c.h.b16 %v2336
        %v2429 = vunpack.c.l.b16 %v2337
        %v2430 = vunpack.c.h.b16 %v2337
        %v2431 = vunpack.c.l.b16 %v2338
        %v2432 = vunpack.c.h.b16 %v2338
        %v2433 = vunpack.c.l.b16 %v2339
        %v2434 = vunpack.c.h.b16 %v2339
        %v2435 = vunpack.c.l.b16 %v2340
        %v2436 = vunpack.c.h.b16 %v2340
        %v2437 = vunpack.c.l.b16 %v2341
        %v2438 = vunpack.c.h.b16 %v2341
        %v2439 = vunpack.c.l.b16 %v2342
        %v2440 = vunpack.c.h.b16 %v2342
        %v2441 = vunpack.c.l.b16 %v2343
        %v2442 = vunpack.c.h.b16 %v2343
        %v2443 = vunpack.c.l.b16 %v2344
        %v2444 = vunpack.c.h.b16 %v2344
        %v2445 = vunpack.c.l.b16 %v2345
        %v2446 = vunpack.c.h.b16 %v2345
        %v2447 = vunpack.c.l.b16 %v2346
        %v2448 = vunpack.c.h.b16 %v2346
        %v2449 = vunpack.c.l.b16 %v2347
        %v2450 = vunpack.c.h.b16 %v2347
        %v2451 = vpack.c.b16 %v2389, %v2387
        %v2452 = vpack.c.b16 %v2390, %v2388
        %v2453 = vpack.c.b16 %v2393, %v2391
        %v2454 = vpack.c.b16 %v2394, %v2392
        %v2455 = vpack.c.b16 %v2397, %v2395
        %v2456 = vpack.c.b16 %v2398, %v2396
        %v2457 = vpack.c.b16 %v2401, %v2399
        %v2458 = vpack.c.b16 %v2402, %v2400
        %v2459 = vpack.c.b16 %v2405, %v2403
        %v2460 = vpack.c.b16 %v2406, %v2404
        %v2461 = vpack.c.b16 %v2409, %v2407
        %v2462 = vpack.c.b16 %v2410, %v2408
        %v2463 = vpack.c.b16 %v2413, %v2411
        %v2464 = vpack.c.b16 %v2414, %v2412
        %v2465 = vpack.c.b16 %v2417, %v2415
        %v2466 = vpack.c.b16 %v2418, %v2416
        %v2467 = vpack.c.b16 %v2421, %v2419
        %v2468 = vpack.c.b16 %v2422, %v2420
        %v2469 = vpack.c.b16 %v2425, %v2423
        %v2470 = vpack.c.b16 %v2426, %v2424
        %v2471 = vpack.c.b16 %v2429, %v2427
        %v2472 = vpack.c.b16 %v2430, %v2428
        %v2473 = vpack.c.b16 %v2433, %v2431
        %v2474 = vpack.c.b16 %v2434, %v2432
        %v2475 = vpack.c.b16 %v2437, %v2435
        %v2476 = vpack.c.b16 %v2438, %v2436
        %v2477 = vpack.c.b16 %v2441, %v2439
        %v2478 = vpack.c.b16 %v2442, %v2440
        %v2479 = vpack.c.b16 %v2445, %v2443
        %v2480 = vpack.c.b16 %v2446, %v2444
        %v2481 = vpack.c.b16 %v2449, %v2447
        %v2482 = vpack.c.b16 %v2450, %v2448
        %2515 = vmatpush.bf16.msra.mxu0 %v2465
        %2516 = vmatpush.bf16.msra.mxu0 %v2463
        %2517 = vmatpush.bf16.msra.mxu0 %v2461
        %2518 = vmatpush.bf16.msra.mxu0 %v2459
        %2519 = vmatpush.bf16.msra.mxu0 %v2457
        %2520 = vmatpush.bf16.msra.mxu0 %v2455
        %2521 = vmatpush.bf16.msra.mxu0 %v2453
        %2522 = vmatpush.bf16.msra.mxu0 %v2451
        %2523 = vmatmul.bf16.gmra.mxu0 %v2283
        %v2524 = vpop.f32.mrf.mxu0
        %v2525 = vadd.f32 %v2351, %v2524
        %v2526 = vpop.f32.mrf.mxu0
        %v2527 = vadd.f32 %v2351, %v2526
        %2528 = vmatmul.bf16.gmra.mxu0 %v2285
        %v2529 = vpop.f32.mrf.mxu0
        %v2530 = vadd.f32 %v2351, %v2529
        %v2531 = vpop.f32.mrf.mxu0
        %v2532 = vadd.f32 %v2351, %v2531
        %2533 = vmatmul.bf16.gmra.mxu0 %v2287
        %v2534 = vpop.f32.mrf.mxu0
        %v2535 = vadd.f32 %v2351, %v2534
        %v2536 = vpop.f32.mrf.mxu0
        %v2537 = vadd.f32 %v2351, %v2536
        %2538 = vmatmul.bf16.gmra.mxu0 %v2289
        %v2539 = vpop.f32.mrf.mxu0
        %v2540 = vadd.f32 %v2351, %v2539
        %v2541 = vpop.f32.mrf.mxu0
        %v2542 = vadd.f32 %v2351, %v2541
        %2543 = vmatmul.bf16.gmra.mxu0 %v2291
        %v2544 = vpop.f32.mrf.mxu0
        %v2545 = vadd.f32 %v2351, %v2544
        %v2546 = vpop.f32.mrf.mxu0
        %v2547 = vadd.f32 %v2351, %v2546
        %2548 = vmatmul.bf16.gmra.mxu0 %v2293
        %v2549 = vpop.f32.mrf.mxu0
        %v2550 = vadd.f32 %v2351, %v2549
        %v2551 = vpop.f32.mrf.mxu0
        %v2552 = vadd.f32 %v2351, %v2551
        %2553 = vmatmul.bf16.gmra.mxu0 %v2295
        %v2554 = vpop.f32.mrf.mxu0
        %v2555 = vadd.f32 %v2351, %v2554
        %v2556 = vpop.f32.mrf.mxu0
        %v2557 = vadd.f32 %v2351, %v2556
        %2558 = vmatmul.bf16.gmra.mxu0 %v2297
        %v2559 = vpop.f32.mrf.mxu0
        %v2560 = vadd.f32 %v2351, %v2559
        %v2561 = vpop.f32.mrf.mxu0
        %v2562 = vadd.f32 %v2351, %v2561
        %2563 = vmatmul.bf16.gmra.mxu0 %v2299
        %v2564 = vpop.f32.mrf.mxu0
        %v2565 = vadd.f32 %v2351, %v2564
        %v2566 = vpop.f32.mrf.mxu0
        %v2567 = vadd.f32 %v2351, %v2566
        %2568 = vmatmul.bf16.gmra.mxu0 %v2301
        %v2569 = vpop.f32.mrf.mxu0
        %v2570 = vadd.f32 %v2351, %v2569
        %v2571 = vpop.f32.mrf.mxu0
        %v2572 = vadd.f32 %v2351, %v2571
        %2573 = vmatmul.bf16.gmra.mxu0 %v2303
        %v2574 = vpop.f32.mrf.mxu0
        %v2575 = vadd.f32 %v2351, %v2574
        %v2576 = vpop.f32.mrf.mxu0
        %v2577 = vadd.f32 %v2351, %v2576
        %2578 = vmatmul.bf16.gmra.mxu0 %v2305
        %v2579 = vpop.f32.mrf.mxu0
        %v2580 = vadd.f32 %v2351, %v2579
        %v2581 = vpop.f32.mrf.mxu0
        %v2582 = vadd.f32 %v2351, %v2581
        %2583 = vmatmul.bf16.gmra.mxu0 %v2307
        %v2584 = vpop.f32.mrf.mxu0
        %v2585 = vadd.f32 %v2351, %v2584
        %v2586 = vpop.f32.mrf.mxu0
        %v2587 = vadd.f32 %v2351, %v2586
        %2588 = vmatmul.bf16.gmra.mxu0 %v2309
        %v2589 = vpop.f32.mrf.mxu0
        %v2590 = vadd.f32 %v2351, %v2589
        %v2591 = vpop.f32.mrf.mxu0
        %v2592 = vadd.f32 %v2351, %v2591
        %2593 = vmatmul.bf16.gmra.mxu0 %v2311
        %v2594 = vpop.f32.mrf.mxu0
        %v2595 = vadd.f32 %v2351, %v2594
        %v2596 = vpop.f32.mrf.mxu0
        %v2597 = vadd.f32 %v2351, %v2596
        %2598 = vmatmul.bf16.gmra.mxu0 %v2313
        %v2599 = vpop.f32.mrf.mxu0
        %v2600 = vadd.f32 %v2351, %v2599
        %v2601 = vpop.f32.mrf.mxu0
        %v2602 = vadd.f32 %v2351, %v2601
        %2603 = vdwg.mxu0
        %2604 = vmatpush.bf16.msra.mxu0 %v2481
        %2605 = vmatpush.bf16.msra.mxu0 %v2479
        %2606 = vmatpush.bf16.msra.mxu0 %v2477
        %2607 = vmatpush.bf16.msra.mxu0 %v2475
        %2608 = vmatpush.bf16.msra.mxu0 %v2473
        %2609 = vmatpush.bf16.msra.mxu0 %v2471
        %2610 = vmatpush.bf16.msra.mxu0 %v2469
        %2611 = vmatpush.bf16.msra.mxu0 %v2467
        %2612 = vmatmul.bf16.gmra.mxu0 %v2284
        %v2613 = vpop.f32.mrf.mxu0
        %v2614 = vadd.f32 %v2525, %v2613
        %v2615 = vpop.f32.mrf.mxu0
        %v2616 = vadd.f32 %v2527, %v2615
        %2617 = vmatmul.bf16.gmra.mxu0 %v2286
        %v2618 = vpop.f32.mrf.mxu0
        %v2619 = vadd.f32 %v2530, %v2618
        %v2620 = vpop.f32.mrf.mxu0
        %v2621 = vadd.f32 %v2532, %v2620
        %2622 = vmatmul.bf16.gmra.mxu0 %v2288
        %v2623 = vpop.f32.mrf.mxu0
        %v2624 = vadd.f32 %v2535, %v2623
        %v2625 = vpop.f32.mrf.mxu0
        %v2626 = vadd.f32 %v2537, %v2625
        %2627 = vmatmul.bf16.gmra.mxu0 %v2290
        %v2628 = vpop.f32.mrf.mxu0
        %v2629 = vadd.f32 %v2540, %v2628
        %v2630 = vpop.f32.mrf.mxu0
        %v2631 = vadd.f32 %v2542, %v2630
        %2632 = vmatmul.bf16.gmra.mxu0 %v2292
        %v2633 = vpop.f32.mrf.mxu0
        %v2634 = vadd.f32 %v2545, %v2633
        %v2635 = vpop.f32.mrf.mxu0
        %v2636 = vadd.f32 %v2547, %v2635
        %2637 = vmatmul.bf16.gmra.mxu0 %v2294
        %v2638 = vpop.f32.mrf.mxu0
        %v2639 = vadd.f32 %v2550, %v2638
        %v2640 = vpop.f32.mrf.mxu0
        %v2641 = vadd.f32 %v2552, %v2640
        %2642 = vmatmul.bf16.gmra.mxu0 %v2296
        %v2643 = vpop.f32.mrf.mxu0
        %v2644 = vadd.f32 %v2555, %v2643
        %v2645 = vpop.f32.mrf.mxu0
        %v2646 = vadd.f32 %v2557, %v2645
        %2647 = vmatmul.bf16.gmra.mxu0 %v2298
        %v2648 = vpop.f32.mrf.mxu0
        %v2649 = vadd.f32 %v2560, %v2648
        %v2650 = vpop.f32.mrf.mxu0
        %v2651 = vadd.f32 %v2562, %v2650
        %2652 = vmatmul.bf16.gmra.mxu0 %v2300
        %v2653 = vpop.f32.mrf.mxu0
        %v2654 = vadd.f32 %v2565, %v2653
        %v2655 = vpop.f32.mrf.mxu0
        %v2656 = vadd.f32 %v2567, %v2655
        %2657 = vmatmul.bf16.gmra.mxu0 %v2302
        %v2658 = vpop.f32.mrf.mxu0
        %v2659 = vadd.f32 %v2570, %v2658
        %v2660 = vpop.f32.mrf.mxu0
        %v2661 = vadd.f32 %v2572, %v2660
        %2662 = vmatmul.bf16.gmra.mxu0 %v2304
        %v2663 = vpop.f32.mrf.mxu0
        %v2664 = vadd.f32 %v2575, %v2663
        %v2665 = vpop.f32.mrf.mxu0
        %v2666 = vadd.f32 %v2577, %v2665
        %2667 = vmatmul.bf16.gmra.mxu0 %v2306
        %v2668 = vpop.f32.mrf.mxu0
        %v2669 = vadd.f32 %v2580, %v2668
        %v2670 = vpop.f32.mrf.mxu0
        %v2671 = vadd.f32 %v2582, %v2670
        %2672 = vmatmul.bf16.gmra.mxu0 %v2308
        %v2673 = vpop.f32.mrf.mxu0
        %v2674 = vadd.f32 %v2585, %v2673
        %v2675 = vpop.f32.mrf.mxu0
        %v2676 = vadd.f32 %v2587, %v2675
        %2677 = vmatmul.bf16.gmra.mxu0 %v2310
        %v2678 = vpop.f32.mrf.mxu0
        %v2679 = vadd.f32 %v2590, %v2678
        %v2680 = vpop.f32.mrf.mxu0
        %v2681 = vadd.f32 %v2592, %v2680
        %2682 = vmatmul.bf16.gmra.mxu0 %v2312
        %v2683 = vpop.f32.mrf.mxu0
        %v2684 = vadd.f32 %v2595, %v2683
        %v2685 = vpop.f32.mrf.mxu0
        %v2686 = vadd.f32 %v2597, %v2685
        %2687 = vmatmul.bf16.gmra.mxu0 %v2314
        %v2688 = vpop.f32.mrf.mxu0
        %v2689 = vadd.f32 %v2600, %v2688
        %v2690 = vpop.f32.mrf.mxu0
        %v2691 = vadd.f32 %v2602, %v2690
        %2692 = vdwg.mxu0
        %2693 = vmatpush.bf16.msra.mxu0 %v2466
        %2694 = vmatpush.bf16.msra.mxu0 %v2464
        %2695 = vmatpush.bf16.msra.mxu0 %v2462
        %2696 = vmatpush.bf16.msra.mxu0 %v2460
        %2697 = vmatpush.bf16.msra.mxu0 %v2458
        %2698 = vmatpush.bf16.msra.mxu0 %v2456
        %2699 = vmatpush.bf16.msra.mxu0 %v2454
        %2700 = vmatpush.bf16.msra.mxu0 %v2452
        %2701 = vmatmul.bf16.gmra.mxu0 %v2283
        %v2702 = vpop.f32.mrf.mxu0
        %v2703 = vadd.f32 %v2352, %v2702
        %v2704 = vpop.f32.mrf.mxu0
        %v2705 = vadd.f32 %v2352, %v2704
        %2706 = vmatmul.bf16.gmra.mxu0 %v2285
        %v2707 = vpop.f32.mrf.mxu0
        %v2708 = vadd.f32 %v2352, %v2707
        %v2709 = vpop.f32.mrf.mxu0
        %v2710 = vadd.f32 %v2352, %v2709
        %2711 = vmatmul.bf16.gmra.mxu0 %v2287
        %v2712 = vpop.f32.mrf.mxu0
        %v2713 = vadd.f32 %v2352, %v2712
        %v2714 = vpop.f32.mrf.mxu0
        %v2715 = vadd.f32 %v2352, %v2714
        %2716 = vmatmul.bf16.gmra.mxu0 %v2289
        %v2717 = vpop.f32.mrf.mxu0
        %v2718 = vadd.f32 %v2352, %v2717
        %v2719 = vpop.f32.mrf.mxu0
        %v2720 = vadd.f32 %v2352, %v2719
        %2721 = vmatmul.bf16.gmra.mxu0 %v2291
        %v2722 = vpop.f32.mrf.mxu0
        %v2723 = vadd.f32 %v2352, %v2722
        %v2724 = vpop.f32.mrf.mxu0
        %v2725 = vadd.f32 %v2352, %v2724
        %2726 = vmatmul.bf16.gmra.mxu0 %v2293
        %v2727 = vpop.f32.mrf.mxu0
        %v2728 = vadd.f32 %v2352, %v2727
        %v2729 = vpop.f32.mrf.mxu0
        %v2730 = vadd.f32 %v2352, %v2729
        %2731 = vmatmul.bf16.gmra.mxu0 %v2295
        %v2732 = vpop.f32.mrf.mxu0
        %v2733 = vadd.f32 %v2352, %v2732
        %v2734 = vpop.f32.mrf.mxu0
        %v2735 = vadd.f32 %v2352, %v2734
        %2736 = vmatmul.bf16.gmra.mxu0 %v2297
        %v2737 = vpop.f32.mrf.mxu0
        %v2738 = vadd.f32 %v2352, %v2737
        %v2739 = vpop.f32.mrf.mxu0
        %v2740 = vadd.f32 %v2352, %v2739
        %2741 = vmatmul.bf16.gmra.mxu0 %v2299
        %v2742 = vpop.f32.mrf.mxu0
        %v2743 = vadd.f32 %v2352, %v2742
        %v2744 = vpop.f32.mrf.mxu0
        %v2745 = vadd.f32 %v2352, %v2744
        %2746 = vmatmul.bf16.gmra.mxu0 %v2301
        %v2747 = vpop.f32.mrf.mxu0
        %v2748 = vadd.f32 %v2352, %v2747
        %v2749 = vpop.f32.mrf.mxu0
        %v2750 = vadd.f32 %v2352, %v2749
        %2751 = vmatmul.bf16.gmra.mxu0 %v2303
        %v2752 = vpop.f32.mrf.mxu0
        %v2753 = vadd.f32 %v2352, %v2752
        %v2754 = vpop.f32.mrf.mxu0
        %v2755 = vadd.f32 %v2352, %v2754
        %2756 = vmatmul.bf16.gmra.mxu0 %v2305
        %v2757 = vpop.f32.mrf.mxu0
        %v2758 = vadd.f32 %v2352, %v2757
        %v2759 = vpop.f32.mrf.mxu0
        %v2760 = vadd.f32 %v2352, %v2759
        %2761 = vmatmul.bf16.gmra.mxu0 %v2307
        %v2762 = vpop.f32.mrf.mxu0
        %v2763 = vadd.f32 %v2352, %v2762
        %v2764 = vpop.f32.mrf.mxu0
        %v2765 = vadd.f32 %v2352, %v2764
        %2766 = vmatmul.bf16.gmra.mxu0 %v2309
        %v2767 = vpop.f32.mrf.mxu0
        %v2768 = vadd.f32 %v2352, %v2767
        %v2769 = vpop.f32.mrf.mxu0
        %v2770 = vadd.f32 %v2352, %v2769
        %2771 = vmatmul.bf16.gmra.mxu0 %v2311
        %v2772 = vpop.f32.mrf.mxu0
        %v2773 = vadd.f32 %v2352, %v2772
        %v2774 = vpop.f32.mrf.mxu0
        %v2775 = vadd.f32 %v2352, %v2774
        %2776 = vmatmul.bf16.gmra.mxu0 %v2313
        %v2777 = vpop.f32.mrf.mxu0
        %v2778 = vadd.f32 %v2352, %v2777
        %v2779 = vpop.f32.mrf.mxu0
        %v2780 = vadd.f32 %v2352, %v2779
        %2781 = vdwg.mxu0
        %2782 = vmatpush.bf16.msra.mxu0 %v2482
        %2783 = vmatpush.bf16.msra.mxu0 %v2480
        %2784 = vmatpush.bf16.msra.mxu0 %v2478
        %2785 = vmatpush.bf16.msra.mxu0 %v2476
        %2786 = vmatpush.bf16.msra.mxu0 %v2474
        %2787 = vmatpush.bf16.msra.mxu0 %v2472
        %2788 = vmatpush.bf16.msra.mxu0 %v2470
        %2789 = vmatpush.bf16.msra.mxu0 %v2468
        %2790 = vmatmul.bf16.gmra.mxu0 %v2284
        %v2791 = vpop.f32.mrf.mxu0
        %v2792 = vadd.f32 %v2703, %v2791
        %v2793 = vpop.f32.mrf.mxu0
        %v2794 = vadd.f32 %v2705, %v2793
        %2795 = vmatmul.bf16.gmra.mxu0 %v2286
        %v2796 = vpop.f32.mrf.mxu0
        %v2797 = vadd.f32 %v2708, %v2796
        %v2798 = vpop.f32.mrf.mxu0
        %v2799 = vadd.f32 %v2710, %v2798
        %2800 = vmatmul.bf16.gmra.mxu0 %v2288
        %v2801 = vpop.f32.mrf.mxu0
        %v2802 = vadd.f32 %v2713, %v2801
        %v2803 = vpop.f32.mrf.mxu0
        %v2804 = vadd.f32 %v2715, %v2803
        %2805 = vmatmul.bf16.gmra.mxu0 %v2290
        %v2806 = vpop.f32.mrf.mxu0
        %v2807 = vadd.f32 %v2718, %v2806
        %v2808 = vpop.f32.mrf.mxu0
        %v2809 = vadd.f32 %v2720, %v2808
        %2810 = vmatmul.bf16.gmra.mxu0 %v2292
        %v2811 = vpop.f32.mrf.mxu0
        %v2812 = vadd.f32 %v2723, %v2811
        %v2813 = vpop.f32.mrf.mxu0
        %v2814 = vadd.f32 %v2725, %v2813
        %2815 = vmatmul.bf16.gmra.mxu0 %v2294
        %v2816 = vpop.f32.mrf.mxu0
        %v2817 = vadd.f32 %v2728, %v2816
        %v2818 = vpop.f32.mrf.mxu0
        %v2819 = vadd.f32 %v2730, %v2818
        %2820 = vmatmul.bf16.gmra.mxu0 %v2296
        %v2821 = vpop.f32.mrf.mxu0
        %v2822 = vadd.f32 %v2733, %v2821
        %v2823 = vpop.f32.mrf.mxu0
        %v2824 = vadd.f32 %v2735, %v2823
        %2825 = vmatmul.bf16.gmra.mxu0 %v2298
        %v2826 = vpop.f32.mrf.mxu0
        %v2827 = vadd.f32 %v2738, %v2826
        %v2828 = vpop.f32.mrf.mxu0
        %v2829 = vadd.f32 %v2740, %v2828
        %2830 = vmatmul.bf16.gmra.mxu0 %v2300
        %v2831 = vpop.f32.mrf.mxu0
        %v2832 = vadd.f32 %v2743, %v2831
        %v2833 = vpop.f32.mrf.mxu0
        %v2834 = vadd.f32 %v2745, %v2833
        %2835 = vmatmul.bf16.gmra.mxu0 %v2302
        %v2836 = vpop.f32.mrf.mxu0
        %v2837 = vadd.f32 %v2748, %v2836
        %v2838 = vpop.f32.mrf.mxu0
        %v2839 = vadd.f32 %v2750, %v2838
        %2840 = vmatmul.bf16.gmra.mxu0 %v2304
        %v2841 = vpop.f32.mrf.mxu0
        %v2842 = vadd.f32 %v2753, %v2841
        %v2843 = vpop.f32.mrf.mxu0
        %v2844 = vadd.f32 %v2755, %v2843
        %2845 = vmatmul.bf16.gmra.mxu0 %v2306
        %v2846 = vpop.f32.mrf.mxu0
        %v2847 = vadd.f32 %v2758, %v2846
        %v2848 = vpop.f32.mrf.mxu0
        %v2849 = vadd.f32 %v2760, %v2848
        %2850 = vmatmul.bf16.gmra.mxu0 %v2308
        %v2851 = vpop.f32.mrf.mxu0
        %v2852 = vadd.f32 %v2763, %v2851
        %v2853 = vpop.f32.mrf.mxu0
        %v2854 = vadd.f32 %v2765, %v2853
        %2855 = vmatmul.bf16.gmra.mxu0 %v2310
        %v2856 = vpop.f32.mrf.mxu0
        %v2857 = vadd.f32 %v2768, %v2856
        %v2858 = vpop.f32.mrf.mxu0
        %v2859 = vadd.f32 %v2770, %v2858
        %2860 = vmatmul.bf16.gmra.mxu0 %v2312
        %v2861 = vpop.f32.mrf.mxu0
        %v2862 = vadd.f32 %v2773, %v2861
        %v2863 = vpop.f32.mrf.mxu0
        %v2864 = vadd.f32 %v2775, %v2863
        %2865 = vmatmul.bf16.gmra.mxu0 %v2314
        %v2866 = vpop.f32.mrf.mxu0
        %v2867 = vadd.f32 %v2778, %v2866
        %v2868 = vpop.f32.mrf.mxu0
        %v2869 = vadd.f32 %v2780, %v2868
        %2870 = vdwg.mxu0
        %v2871 = vmul.f32 %v2614, 0.01
        %v2872 = vmul.f32 %v2792, 0.01
        %v2873 = vmul.f32 %v2616, 0.01
        %v2874 = vmul.f32 %v2794, 0.01
        %v2875 = vmul.f32 %v2619, 0.01
        %v2876 = vmul.f32 %v2797, 0.01
        %v2877 = vmul.f32 %v2621, 0.01
        %v2878 = vmul.f32 %v2799, 0.01
        %v2879 = vmul.f32 %v2624, 0.01
        %v2880 = vmul.f32 %v2802, 0.01
        %v2881 = vmul.f32 %v2626, 0.01
        %v2882 = vmul.f32 %v2804, 0.01
        %v2883 = vmul.f32 %v2629, 0.01
        %v2884 = vmul.f32 %v2807, 0.01
        %v2885 = vmul.f32 %v2631, 0.01
        %v2886 = vmul.f32 %v2809, 0.01
        %v2887 = vmul.f32 %v2634, 0.01
        %v2888 = vmul.f32 %v2812, 0.01
        %v2889 = vmul.f32 %v2636, 0.01
        %v2890 = vmul.f32 %v2814, 0.01
        %v2891 = vmul.f32 %v2639, 0.01
        %v2892 = vmul.f32 %v2817, 0.01
        %v2893 = vmul.f32 %v2641, 0.01
        %v2894 = vmul.f32 %v2819, 0.01
        %v2895 = vmul.f32 %v2644, 0.01
        %v2896 = vmul.f32 %v2822, 0.01
        %v2897 = vmul.f32 %v2646, 0.01
        %v2898 = vmul.f32 %v2824, 0.01
        %v2899 = vmul.f32 %v2649, 0.01
        %v2900 = vmul.f32 %v2827, 0.01
        %v2901 = vmul.f32 %v2651, 0.01
        %v2902 = vmul.f32 %v2829, 0.01
        %v2903 = vmul.f32 %v2654, 0.01
        %v2904 = vmul.f32 %v2832, 0.01
        %v2905 = vmul.f32 %v2656, 0.01
        %v2906 = vmul.f32 %v2834, 0.01
        %v2907 = vmul.f32 %v2659, 0.01
        %v2908 = vmul.f32 %v2837, 0.01
        %v2909 = vmul.f32 %v2661, 0.01
        %v2910 = vmul.f32 %v2839, 0.01
        %v2911 = vmul.f32 %v2664, 0.01
        %v2912 = vmul.f32 %v2842, 0.01
        %v2913 = vmul.f32 %v2666, 0.01
        %v2914 = vmul.f32 %v2844, 0.01
        %v2915 = vmul.f32 %v2669, 0.01
        %v2916 = vmul.f32 %v2847, 0.01
        %v2917 = vmul.f32 %v2671, 0.01
        %v2918 = vmul.f32 %v2849, 0.01
        %v2919 = vmul.f32 %v2674, 0.01
        %v2920 = vmul.f32 %v2852, 0.01
        %v2921 = vmul.f32 %v2676, 0.01
        %v2922 = vmul.f32 %v2854, 0.01
        %v2923 = vmul.f32 %v2679, 0.01
        %v2924 = vmul.f32 %v2857, 0.01
        %v2925 = vmul.f32 %v2681, 0.01
        %v2926 = vmul.f32 %v2859, 0.01
        %v2927 = vmul.f32 %v2684, 0.01
        %v2928 = vmul.f32 %v2862, 0.01
        %v2929 = vmul.f32 %v2686, 0.01
        %v2930 = vmul.f32 %v2864, 0.01
        %v2931 = vmul.f32 %v2689, 0.01
        %v2932 = vmul.f32 %v2867, 0.01
        %v2933 = vmul.f32 %v2691, 0.01
        %v2934 = vmul.f32 %v2869, 0.01
        %v2935 = vmax.f32 %v2614, %v2871
        %v2936 = vmax.f32 %v2792, %v2872
        %v2937 = vmax.f32 %v2616, %v2873
        %v2938 = vmax.f32 %v2794, %v2874
        %v2939 = vmax.f32 %v2619, %v2875
        %v2940 = vmax.f32 %v2797, %v2876
        %v2941 = vmax.f32 %v2621, %v2877
        %v2942 = vmax.f32 %v2799, %v2878
        %v2943 = vmax.f32 %v2624, %v2879
        %v2944 = vmax.f32 %v2802, %v2880
        %v2945 = vmax.f32 %v2626, %v2881
        %v2946 = vmax.f32 %v2804, %v2882
        %v2947 = vmax.f32 %v2629, %v2883
        %v2948 = vmax.f32 %v2807, %v2884
        %v2949 = vmax.f32 %v2631, %v2885
        %v2950 = vmax.f32 %v2809, %v2886
        %v2951 = vmax.f32 %v2634, %v2887
        %v2952 = vmax.f32 %v2812, %v2888
        %v2953 = vmax.f32 %v2636, %v2889
        %v2954 = vmax.f32 %v2814, %v2890
        %v2955 = vmax.f32 %v2639, %v2891
        %v2956 = vmax.f32 %v2817, %v2892
        %v2957 = vmax.f32 %v2641, %v2893
        %v2958 = vmax.f32 %v2819, %v2894
        %v2959 = vmax.f32 %v2644, %v2895
        %v2960 = vmax.f32 %v2822, %v2896
        %v2961 = vmax.f32 %v2646, %v2897
        %v2962 = vmax.f32 %v2824, %v2898
        %v2963 = vmax.f32 %v2649, %v2899
        %v2964 = vmax.f32 %v2827, %v2900
        %v2965 = vmax.f32 %v2651, %v2901
        %v2966 = vmax.f32 %v2829, %v2902
        %v2967 = vmax.f32 %v2654, %v2903
        %v2968 = vmax.f32 %v2832, %v2904
        %v2969 = vmax.f32 %v2656, %v2905
        %v2970 = vmax.f32 %v2834, %v2906
        %v2971 = vmax.f32 %v2659, %v2907
        %v2972 = vmax.f32 %v2837, %v2908
        %v2973 = vmax.f32 %v2661, %v2909
        %v2974 = vmax.f32 %v2839, %v2910
        %v2975 = vmax.f32 %v2664, %v2911
        %v2976 = vmax.f32 %v2842, %v2912
        %v2977 = vmax.f32 %v2666, %v2913
        %v2978 = vmax.f32 %v2844, %v2914
        %v2979 = vmax.f32 %v2669, %v2915
        %v2980 = vmax.f32 %v2847, %v2916
        %v2981 = vmax.f32 %v2671, %v2917
        %v2982 = vmax.f32 %v2849, %v2918
        %v2983 = vmax.f32 %v2674, %v2919
        %v2984 = vmax.f32 %v2852, %v2920
        %v2985 = vmax.f32 %v2676, %v2921
        %v2986 = vmax.f32 %v2854, %v2922
        %v2987 = vmax.f32 %v2679, %v2923
        %v2988 = vmax.f32 %v2857, %v2924
        %v2989 = vmax.f32 %v2681, %v2925
        %v2990 = vmax.f32 %v2859, %v2926
        %v2991 = vmax.f32 %v2684, %v2927
        %v2992 = vmax.f32 %v2862, %v2928
        %v2993 = vmax.f32 %v2686, %v2929
        %v2994 = vmax.f32 %v2864, %v2930
        %v2995 = vmax.f32 %v2689, %v2931
        %v2996 = vmax.f32 %v2867, %v2932
        %v2997 = vmax.f32 %v2691, %v2933
        %v2998 = vmax.f32 %v2869, %v2934
        %v2999 = vadd.f32 %v2219, %v2935
        %v3000 = vadd.f32 %v2220, %v2936
        %v3001 = vadd.f32 %v2221, %v2937
        %v3002 = vadd.f32 %v2222, %v2938
        %v3003 = vadd.f32 %v2223, %v2939
        %v3004 = vadd.f32 %v2224, %v2940
        %v3005 = vadd.f32 %v2225, %v2941
        %v3006 = vadd.f32 %v2226, %v2942
        %v3007 = vadd.f32 %v2227, %v2943
        %v3008 = vadd.f32 %v2228, %v2944
        %v3009 = vadd.f32 %v2229, %v2945
        %v3010 = vadd.f32 %v2230, %v2946
        %v3011 = vadd.f32 %v2231, %v2947
        %v3012 = vadd.f32 %v2232, %v2948
        %v3013 = vadd.f32 %v2233, %v2949
        %v3014 = vadd.f32 %v2234, %v2950
        %v3015 = vadd.f32 %v2235, %v2951
        %v3016 = vadd.f32 %v2236, %v2952
        %v3017 = vadd.f32 %v2237, %v2953
        %v3018 = vadd.f32 %v2238, %v2954
        %v3019 = vadd.f32 %v2239, %v2955
        %v3020 = vadd.f32 %v2240, %v2956
        %v3021 = vadd.f32 %v2241, %v2957
        %v3022 = vadd.f32 %v2242, %v2958
        %v3023 = vadd.f32 %v2243, %v2959
        %v3024 = vadd.f32 %v2244, %v2960
        %v3025 = vadd.f32 %v2245, %v2961
        %v3026 = vadd.f32 %v2246, %v2962
        %v3027 = vadd.f32 %v2247, %v2963
        %v3028 = vadd.f32 %v2248, %v2964
        %v3029 = vadd.f32 %v2249, %v2965
        %v3030 = vadd.f32 %v2250, %v2966
        %v3031 = vadd.f32 %v2251, %v2967
        %v3032 = vadd.f32 %v2252, %v2968
        %v3033 = vadd.f32 %v2253, %v2969
        %v3034 = vadd.f32 %v2254, %v2970
        %v3035 = vadd.f32 %v2255, %v2971
        %v3036 = vadd.f32 %v2256, %v2972
        %v3037 = vadd.f32 %v2257, %v2973
        %v3038 = vadd.f32 %v2258, %v2974
        %v3039 = vadd.f32 %v2259, %v2975
        %v3040 = vadd.f32 %v2260, %v2976
        %v3041 = vadd.f32 %v2261, %v2977
        %v3042 = vadd.f32 %v2262, %v2978
        %v3043 = vadd.f32 %v2263, %v2979
        %v3044 = vadd.f32 %v2264, %v2980
        %v3045 = vadd.f32 %v2265, %v2981
        %v3046 = vadd.f32 %v2266, %v2982
        %v3047 = vadd.f32 %v2267, %v2983
        %v3048 = vadd.f32 %v2268, %v2984
        %v3049 = vadd.f32 %v2269, %v2985
        %v3050 = vadd.f32 %v2270, %v2986
        %v3051 = vadd.f32 %v2271, %v2987
        %v3052 = vadd.f32 %v2272, %v2988
        %v3053 = vadd.f32 %v2273, %v2989
        %v3054 = vadd.f32 %v2274, %v2990
        %v3055 = vadd.f32 %v2275, %v2991
        %v3056 = vadd.f32 %v2276, %v2992
        %v3057 = vadd.f32 %v2277, %v2993
        %v3058 = vadd.f32 %v2278, %v2994
        %v3059 = vadd.f32 %v2279, %v2995
        %v3060 = vadd.f32 %v2280, %v2996
        %v3061 = vadd.f32 %v2281, %v2997
        %v3062 = vadd.f32 %v2282, %v2998
        %v3063 = vpack.c.bf16 %v3001, %v2999
        %v3064 = vpack.c.bf16 %v3002, %v3000
        %v3065 = vpack.c.bf16 %v3005, %v3003
        %v3066 = vpack.c.bf16 %v3006, %v3004
        %v3067 = vpack.c.bf16 %v3009, %v3007
        %v3068 = vpack.c.bf16 %v3010, %v3008
        %v3069 = vpack.c.bf16 %v3013, %v3011
        %v3070 = vpack.c.bf16 %v3014, %v3012
        %v3071 = vpack.c.bf16 %v3017, %v3015
        %v3072 = vpack.c.bf16 %v3018, %v3016
        %v3073 = vpack.c.bf16 %v3021, %v3019
        %v3074 = vpack.c.bf16 %v3022, %v3020
        %v3075 = vpack.c.bf16 %v3025, %v3023
        %v3076 = vpack.c.bf16 %v3026, %v3024
        %v3077 = vpack.c.bf16 %v3029, %v3027
        %v3078 = vpack.c.bf16 %v3030, %v3028
        %v3079 = vpack.c.bf16 %v3033, %v3031
        %v3080 = vpack.c.bf16 %v3034, %v3032
        %v3081 = vpack.c.bf16 %v3037, %v3035
        %v3082 = vpack.c.bf16 %v3038, %v3036
        %v3083 = vpack.c.bf16 %v3041, %v3039
        %v3084 = vpack.c.bf16 %v3042, %v3040
        %v3085 = vpack.c.bf16 %v3045, %v3043
        %v3086 = vpack.c.bf16 %v3046, %v3044
        %v3087 = vpack.c.bf16 %v3049, %v3047
        %v3088 = vpack.c.bf16 %v3050, %v3048
        %v3089 = vpack.c.bf16 %v3053, %v3051
        %v3090 = vpack.c.bf16 %v3054, %v3052
        %v3091 = vpack.c.bf16 %v3057, %v3055
        %v3092 = vpack.c.bf16 %v3058, %v3056
        %v3093 = vpack.c.bf16 %v3061, %v3059
        %v3094 = vpack.c.bf16 %v3062, %v3060
        %v3095 = vld [vmem:[#allocation11] sm:$0xf]
        %v3096 = vld [vmem:[#allocation11 + $0x4] sm:$0xf]
        %v3097 = vld [vmem:[#allocation11 + $0x8] sm:$0xf]
        %v3098 = vld [vmem:[#allocation11 + $0xc] sm:$0xf]
        %v3099 = vld [vmem:[#allocation11 + $0x10] sm:$0xf]
        %v3100 = vld [vmem:[#allocation11 + $0x14] sm:$0xf]
        %v3101 = vld [vmem:[#allocation11 + $0x18] sm:$0xf]
        %v3102 = vld [vmem:[#allocation11 + $0x1c] sm:$0xf]
        %v3103 = vld [vmem:[#allocation11 + $0x20] sm:$0xf]
        %v3104 = vld [vmem:[#allocation11 + $0x24] sm:$0xf]
        %v3105 = vld [vmem:[#allocation11 + $0x28] sm:$0xf]
        %v3106 = vld [vmem:[#allocation11 + $0x2c] sm:$0xf]
        %v3107 = vld [vmem:[#allocation11 + $0x30] sm:$0xf]
        %v3108 = vld [vmem:[#allocation11 + $0x34] sm:$0xf]
        %v3109 = vld [vmem:[#allocation11 + $0x38] sm:$0xf]
        %v3110 = vld [vmem:[#allocation11 + $0x3c] sm:$0xf]
        %v3111 = vld [vmem:[#allocation11 + $0x40] sm:$0xf]
        %v3112 = vld [vmem:[#allocation11 + $0x44] sm:$0xf]
        %v3113 = vld [vmem:[#allocation11 + $0x48] sm:$0xf]
        %v3114 = vld [vmem:[#allocation11 + $0x4c] sm:$0xf]
        %v3115 = vld [vmem:[#allocation11 + $0x50] sm:$0xf]
        %v3116 = vld [vmem:[#allocation11 + $0x54] sm:$0xf]
        %v3117 = vld [vmem:[#allocation11 + $0x58] sm:$0xf]
        %v3118 = vld [vmem:[#allocation11 + $0x5c] sm:$0xf]
        %v3119 = vld [vmem:[#allocation11 + $0x60] sm:$0xf]
        %v3120 = vld [vmem:[#allocation11 + $0x64] sm:$0xf]
        %v3121 = vld [vmem:[#allocation11 + $0x68] sm:$0xf]
        %v3122 = vld [vmem:[#allocation11 + $0x6c] sm:$0xf]
        %v3123 = vld [vmem:[#allocation11 + $0x70] sm:$0xf]
        %v3124 = vld [vmem:[#allocation11 + $0x74] sm:$0xf]
        %v3125 = vld [vmem:[#allocation11 + $0x78] sm:$0xf]
        %v3126 = vld [vmem:[#allocation11 + $0x7c] sm:$0xf]
        %v3127 = vld [vmem:[%s6] sm:$0x1]
        %v3129 = vperm.slane %v3127, 0
        %v3163 = vunpack.c.l.b16 %v3095
        %v3164 = vunpack.c.l.b16 %v3096
        %v3165 = vunpack.c.l.b16 %v3097
        %v3166 = vunpack.c.l.b16 %v3098
        %v3167 = vunpack.c.l.b16 %v3099
        %v3168 = vunpack.c.l.b16 %v3100
        %v3169 = vunpack.c.l.b16 %v3101
        %v3170 = vunpack.c.l.b16 %v3102
        %v3171 = vunpack.c.l.b16 %v3103
        %v3172 = vunpack.c.l.b16 %v3104
        %v3173 = vunpack.c.l.b16 %v3105
        %v3174 = vunpack.c.l.b16 %v3106
        %v3175 = vunpack.c.l.b16 %v3107
        %v3176 = vunpack.c.l.b16 %v3108
        %v3177 = vunpack.c.l.b16 %v3109
        %v3178 = vunpack.c.l.b16 %v3110
        %v3179 = vunpack.c.l.b16 %v3111
        %v3180 = vunpack.c.l.b16 %v3112
        %v3181 = vunpack.c.l.b16 %v3113
        %v3182 = vunpack.c.l.b16 %v3114
        %v3183 = vunpack.c.l.b16 %v3115
        %v3184 = vunpack.c.l.b16 %v3116
        %v3185 = vunpack.c.l.b16 %v3117
        %v3186 = vunpack.c.l.b16 %v3118
        %v3187 = vunpack.c.l.b16 %v3119
        %v3188 = vunpack.c.l.b16 %v3120
        %v3189 = vunpack.c.l.b16 %v3121
        %v3190 = vunpack.c.l.b16 %v3122
        %v3191 = vunpack.c.l.b16 %v3123
        %v3192 = vunpack.c.l.b16 %v3124
        %v3193 = vunpack.c.l.b16 %v3125
        %v3194 = vunpack.c.l.b16 %v3126
        %v3195 = vpack.c.b16 %v3164, %v3163
        %v3196 = vpack.c.b16 %v3166, %v3165
        %v3197 = vpack.c.b16 %v3168, %v3167
        %v3198 = vpack.c.b16 %v3170, %v3169
        %v3199 = vpack.c.b16 %v3172, %v3171
        %v3200 = vpack.c.b16 %v3174, %v3173
        %v3201 = vpack.c.b16 %v3176, %v3175
        %v3202 = vpack.c.b16 %v3178, %v3177
        %v3203 = vpack.c.b16 %v3180, %v3179
        %v3204 = vpack.c.b16 %v3182, %v3181
        %v3205 = vpack.c.b16 %v3184, %v3183
        %v3206 = vpack.c.b16 %v3186, %v3185
        %v3207 = vpack.c.b16 %v3188, %v3187
        %v3208 = vpack.c.b16 %v3190, %v3189
        %v3209 = vpack.c.b16 %v3192, %v3191
        %v3210 = vpack.c.b16 %v3194, %v3193
        %3227 = vmatpush.bf16.msra.mxu0 %v3202
        %3228 = vmatpush.bf16.msra.mxu0 %v3201
        %3229 = vmatpush.bf16.msra.mxu0 %v3200
        %3230 = vmatpush.bf16.msra.mxu0 %v3199
        %3231 = vmatpush.bf16.msra.mxu0 %v3198
        %3232 = vmatpush.bf16.msra.mxu0 %v3197
        %3233 = vmatpush.bf16.msra.mxu0 %v3196
        %3234 = vmatpush.bf16.msra.mxu0 %v3195
        %3235 = vmatmul.bf16.gmra.mxu0 %v3063
        %v3236 = vpop.f32.mrf.mxu0
        %v3237 = vadd.f32 %v3129, %v3236
        %v3238 = vpop.f32.mrf.mxu0
        %v3239 = vadd.f32 %v3129, %v3238
        %3240 = vmatmul.bf16.gmra.mxu0 %v3065
        %v3241 = vpop.f32.mrf.mxu0
        %v3242 = vadd.f32 %v3129, %v3241
        %v3243 = vpop.f32.mrf.mxu0
        %v3244 = vadd.f32 %v3129, %v3243
        %3245 = vmatmul.bf16.gmra.mxu0 %v3067
        %v3246 = vpop.f32.mrf.mxu0
        %v3247 = vadd.f32 %v3129, %v3246
        %v3248 = vpop.f32.mrf.mxu0
        %v3249 = vadd.f32 %v3129, %v3248
        %3250 = vmatmul.bf16.gmra.mxu0 %v3069
        %v3251 = vpop.f32.mrf.mxu0
        %v3252 = vadd.f32 %v3129, %v3251
        %v3253 = vpop.f32.mrf.mxu0
        %v3254 = vadd.f32 %v3129, %v3253
        %3255 = vmatmul.bf16.gmra.mxu0 %v3071
        %v3256 = vpop.f32.mrf.mxu0
        %v3257 = vadd.f32 %v3129, %v3256
        %v3258 = vpop.f32.mrf.mxu0
        %v3259 = vadd.f32 %v3129, %v3258
        %3260 = vmatmul.bf16.gmra.mxu0 %v3073
        %v3261 = vpop.f32.mrf.mxu0
        %v3262 = vadd.f32 %v3129, %v3261
        %v3263 = vpop.f32.mrf.mxu0
        %v3264 = vadd.f32 %v3129, %v3263
        %3265 = vmatmul.bf16.gmra.mxu0 %v3075
        %v3266 = vpop.f32.mrf.mxu0
        %v3267 = vadd.f32 %v3129, %v3266
        %v3268 = vpop.f32.mrf.mxu0
        %v3269 = vadd.f32 %v3129, %v3268
        %3270 = vmatmul.bf16.gmra.mxu0 %v3077
        %v3271 = vpop.f32.mrf.mxu0
        %v3272 = vadd.f32 %v3129, %v3271
        %v3273 = vpop.f32.mrf.mxu0
        %v3274 = vadd.f32 %v3129, %v3273
        %3275 = vmatmul.bf16.gmra.mxu0 %v3079
        %v3276 = vpop.f32.mrf.mxu0
        %v3277 = vadd.f32 %v3129, %v3276
        %v3278 = vpop.f32.mrf.mxu0
        %v3279 = vadd.f32 %v3129, %v3278
        %3280 = vmatmul.bf16.gmra.mxu0 %v3081
        %v3281 = vpop.f32.mrf.mxu0
        %v3282 = vadd.f32 %v3129, %v3281
        %v3283 = vpop.f32.mrf.mxu0
        %v3284 = vadd.f32 %v3129, %v3283
        %3285 = vmatmul.bf16.gmra.mxu0 %v3083
        %v3286 = vpop.f32.mrf.mxu0
        %v3287 = vadd.f32 %v3129, %v3286
        %v3288 = vpop.f32.mrf.mxu0
        %v3289 = vadd.f32 %v3129, %v3288
        %3290 = vmatmul.bf16.gmra.mxu0 %v3085
        %v3291 = vpop.f32.mrf.mxu0
        %v3292 = vadd.f32 %v3129, %v3291
        %v3293 = vpop.f32.mrf.mxu0
        %v3294 = vadd.f32 %v3129, %v3293
        %3295 = vmatmul.bf16.gmra.mxu0 %v3087
        %v3296 = vpop.f32.mrf.mxu0
        %v3297 = vadd.f32 %v3129, %v3296
        %v3298 = vpop.f32.mrf.mxu0
        %v3299 = vadd.f32 %v3129, %v3298
        %3300 = vmatmul.bf16.gmra.mxu0 %v3089
        %v3301 = vpop.f32.mrf.mxu0
        %v3302 = vadd.f32 %v3129, %v3301
        %v3303 = vpop.f32.mrf.mxu0
        %v3304 = vadd.f32 %v3129, %v3303
        %3305 = vmatmul.bf16.gmra.mxu0 %v3091
        %v3306 = vpop.f32.mrf.mxu0
        %v3307 = vadd.f32 %v3129, %v3306
        %v3308 = vpop.f32.mrf.mxu0
        %v3309 = vadd.f32 %v3129, %v3308
        %3310 = vmatmul.bf16.gmra.mxu0 %v3093
        %v3311 = vpop.f32.mrf.mxu0
        %v3312 = vadd.f32 %v3129, %v3311
        %v3313 = vpop.f32.mrf.mxu0
        %v3314 = vadd.f32 %v3129, %v3313
        %3315 = vdwg.mxu0
        %3316 = vmatpush.bf16.msra.mxu0 %v3210
        %3317 = vmatpush.bf16.msra.mxu0 %v3209
        %3318 = vmatpush.bf16.msra.mxu0 %v3208
        %3319 = vmatpush.bf16.msra.mxu0 %v3207
        %3320 = vmatpush.bf16.msra.mxu0 %v3206
        %3321 = vmatpush.bf16.msra.mxu0 %v3205
        %3322 = vmatpush.bf16.msra.mxu0 %v3204
        %3323 = vmatpush.bf16.msra.mxu0 %v3203
        %3324 = vmatmul.bf16.gmra.mxu0 %v3064
        %v3325 = vpop.f32.mrf.mxu0
        %v3326 = vadd.f32 %v3237, %v3325
        %v3327 = vpop.f32.mrf.mxu0
        %v3328 = vadd.f32 %v3239, %v3327
        %3329 = vmatmul.bf16.gmra.mxu0 %v3066
        %v3330 = vpop.f32.mrf.mxu0
        %v3331 = vadd.f32 %v3242, %v3330
        %v3332 = vpop.f32.mrf.mxu0
        %v3333 = vadd.f32 %v3244, %v3332
        %3334 = vmatmul.bf16.gmra.mxu0 %v3068
        %v3335 = vpop.f32.mrf.mxu0
        %v3336 = vadd.f32 %v3247, %v3335
        %v3337 = vpop.f32.mrf.mxu0
        %v3338 = vadd.f32 %v3249, %v3337
        %3339 = vmatmul.bf16.gmra.mxu0 %v3070
        %v3340 = vpop.f32.mrf.mxu0
        %v3341 = vadd.f32 %v3252, %v3340
        %v3342 = vpop.f32.mrf.mxu0
        %v3343 = vadd.f32 %v3254, %v3342
        %3344 = vmatmul.bf16.gmra.mxu0 %v3072
        %v3345 = vpop.f32.mrf.mxu0
        %v3346 = vadd.f32 %v3257, %v3345
        %v3347 = vpop.f32.mrf.mxu0
        %v3348 = vadd.f32 %v3259, %v3347
        %3349 = vmatmul.bf16.gmra.mxu0 %v3074
        %v3350 = vpop.f32.mrf.mxu0
        %v3351 = vadd.f32 %v3262, %v3350
        %v3352 = vpop.f32.mrf.mxu0
        %v3353 = vadd.f32 %v3264, %v3352
        %3354 = vmatmul.bf16.gmra.mxu0 %v3076
        %v3355 = vpop.f32.mrf.mxu0
        %v3356 = vadd.f32 %v3267, %v3355
        %v3357 = vpop.f32.mrf.mxu0
        %v3358 = vadd.f32 %v3269, %v3357
        %3359 = vmatmul.bf16.gmra.mxu0 %v3078
        %v3360 = vpop.f32.mrf.mxu0
        %v3361 = vadd.f32 %v3272, %v3360
        %v3362 = vpop.f32.mrf.mxu0
        %v3363 = vadd.f32 %v3274, %v3362
        %3364 = vmatmul.bf16.gmra.mxu0 %v3080
        %v3365 = vpop.f32.mrf.mxu0
        %v3366 = vadd.f32 %v3277, %v3365
        %v3367 = vpop.f32.mrf.mxu0
        %v3368 = vadd.f32 %v3279, %v3367
        %3369 = vmatmul.bf16.gmra.mxu0 %v3082
        %v3370 = vpop.f32.mrf.mxu0
        %v3371 = vadd.f32 %v3282, %v3370
        %v3372 = vpop.f32.mrf.mxu0
        %v3373 = vadd.f32 %v3284, %v3372
        %3374 = vmatmul.bf16.gmra.mxu0 %v3084
        %v3375 = vpop.f32.mrf.mxu0
        %v3376 = vadd.f32 %v3287, %v3375
        %v3377 = vpop.f32.mrf.mxu0
        %v3378 = vadd.f32 %v3289, %v3377
        %3379 = vmatmul.bf16.gmra.mxu0 %v3086
        %v3380 = vpop.f32.mrf.mxu0
        %v3381 = vadd.f32 %v3292, %v3380
        %v3382 = vpop.f32.mrf.mxu0
        %v3383 = vadd.f32 %v3294, %v3382
        %3384 = vmatmul.bf16.gmra.mxu0 %v3088
        %v3385 = vpop.f32.mrf.mxu0
        %v3386 = vadd.f32 %v3297, %v3385
        %v3387 = vpop.f32.mrf.mxu0
        %v3388 = vadd.f32 %v3299, %v3387
        %3389 = vmatmul.bf16.gmra.mxu0 %v3090
        %v3390 = vpop.f32.mrf.mxu0
        %v3391 = vadd.f32 %v3302, %v3390
        %v3392 = vpop.f32.mrf.mxu0
        %v3393 = vadd.f32 %v3304, %v3392
        %3394 = vmatmul.bf16.gmra.mxu0 %v3092
        %v3395 = vpop.f32.mrf.mxu0
        %v3396 = vadd.f32 %v3307, %v3395
        %v3397 = vpop.f32.mrf.mxu0
        %v3398 = vadd.f32 %v3309, %v3397
        %3399 = vmatmul.bf16.gmra.mxu0 %v3094
        %v3400 = vpop.f32.mrf.mxu0
        %v3401 = vadd.f32 %v3312, %v3400
        %v3402 = vpop.f32.mrf.mxu0
        %v3403 = vadd.f32 %v3314, %v3402
        %3404 = vdwg.mxu0
        %3405 = vst [vmem:[%s386] sm:$0xff] %v3326
        %3406 = vst [vmem:[%s386 + $0x8] sm:$0xff] %v3328
        %3407 = vst [vmem:[%s386 + $0x10] sm:$0xff] %v3331
        %3408 = vst [vmem:[%s386 + $0x18] sm:$0xff] %v3333
        %3409 = vst [vmem:[%s386 + $0x20] sm:$0xff] %v3336
        %3410 = vst [vmem:[%s386 + $0x28] sm:$0xff] %v3338
        %3411 = vst [vmem:[%s386 + $0x30] sm:$0xff] %v3341
        %3412 = vst [vmem:[%s386 + $0x38] sm:$0xff] %v3343
        %3413 = vst [vmem:[%s386 + $0x40] sm:$0xff] %v3346
        %3414 = vst [vmem:[%s386 + $0x48] sm:$0xff] %v3348
        %3415 = vst [vmem:[%s386 + $0x50] sm:$0xff] %v3351
        %3416 = vst [vmem:[%s386 + $0x58] sm:$0xff] %v3353
        %3417 = vst [vmem:[%s386 + $0x60] sm:$0xff] %v3356
        %3418 = vst [vmem:[%s386 + $0x68] sm:$0xff] %v3358
        %3419 = vst [vmem:[%s386 + $0x70] sm:$0xff] %v3361
        %3420 = vst [vmem:[%s386 + $0x78] sm:$0xff] %v3363
        %3421 = vst [vmem:[%s386 + $0x80] sm:$0xff] %v3366
        %3422 = vst [vmem:[%s386 + $0x88] sm:$0xff] %v3368
        %3423 = vst [vmem:[%s386 + $0x90] sm:$0xff] %v3371
        %3424 = vst [vmem:[%s386 + $0x98] sm:$0xff] %v3373
        %3425 = vst [vmem:[%s386 + $0xa0] sm:$0xff] %v3376
        %3426 = vst [vmem:[%s386 + $0xa8] sm:$0xff] %v3378
        %3427 = vst [vmem:[%s386 + $0xb0] sm:$0xff] %v3381
        %3428 = vst [vmem:[%s386 + $0xb8] sm:$0xff] %v3383
        %3429 = vst [vmem:[%s386 + $0xc0] sm:$0xff] %v3386
        %3430 = vst [vmem:[%s386 + $0xc8] sm:$0xff] %v3388
        %3431 = vst [vmem:[%s386 + $0xd0] sm:$0xff] %v3391
        %3432 = vst [vmem:[%s386 + $0xd8] sm:$0xff] %v3393
        %3433 = vst [vmem:[%s386 + $0xe0] sm:$0xff] %v3396
        %3434 = vst [vmem:[%s386 + $0xe8] sm:$0xff] %v3398
        %3435 = vst [vmem:[%s386 + $0xf0] sm:$0xff] %v3401
        %3436 = vst [vmem:[%s386 + $0xf8] sm:$0xff] %v3403
        %s3437 = sand.u32 %s187, 1
        %s3438 = scalar_lea.sflag [#allocation4], %s3437
        %s3439 = sand.u32 %s187, 1
        %s3440 = smul.addr %s3439, 256
        %s3441 = scalar_lea.vmem [#allocation13], %s3440
        // Predicated region
        $region73: #{tpu_custom_call.1} parent=47 // pred_check
          %p3442 = pneg %p197
        $region74: #{tpu_custom_call.1} parent=47 // pred_check_branch
          %3444 = sbr.rel (%p3442) target = $region76
        $region75: #{tpu_custom_call.1} parent=47 // pred_region
          %s3445 = smul.u32 32, %s27
          %s3446 = ssub.s32 48, %s3445
          %p3447 = scmp.lt.s32.totalorder %s3446, 32
          %s3448 = scalar_select %p3447, %s3446, 32
          %s3449 = smul.u32 8, %s3448
          %s3450 = ssub.s32 256, %s3449
          %s3451 = sshll.u32 %s3450, 4
          %3452 = vsyncadd %s3438, %s3451
          %p3453 = scmp.ne.s32.totalorder 0, %s3449
          %s3454 = smul.addr %s3445, 8
          %s3455 = scalar_lea.hbm %s7, %s3454
          %s3456 = smul.u32 8, %s3448
          %s3457 = sshll.u32 %s3441, 4
          %s3458 = int_to_ptr.vmem [resolvable:$true] %s3457
          %s3459 = sshll.u32 %s3455, 4
          %s3460 = int_to_ptr.hbm [resolvable:$true] %s3459
          %s3461 = sshll.u32 %s3456, 4
          %3465 = dma.vmem_to_hbm [thread:$0]  (%p3453), %s3458, %s3461, %s3460, %s3438, 128, 128, 8
        $region76: #{tpu_custom_call.1} parent=47 // pred_fallthru
          _
      $region48: #{tpu_custom_call.1} parent=5 // pred_fallthru
        _
      %p3466 = scmp.le.s32.totalorder 2, %s22
      // Predicated region
      $region77: #{tpu_custom_call.1} parent=5 // pred_check
        %p3467 = pneg %p3466
      $region78: #{tpu_custom_call.1} parent=5 // pred_check_branch
        %3469 = sbr.rel (%p3467) target = $region80
      $region79: #{tpu_custom_call.1} parent=5 // pred_region
        %s3470 = ssub.s32 %s22, 2
        // Predicated region
        $region81: #{tpu_custom_call.1} parent=79 // pred_check
          %p3471 = pneg %p203
        $region82: #{tpu_custom_call.1} parent=79 // pred_check_branch
          %3473 = sbr.rel (%p3471) target = $region84
        $region83: #{tpu_custom_call.1} parent=79 // pred_region
          %s3474 = sand.u32 %s188, 1
          %s3475 = scalar_lea.sflag [#allocation4], %s3474
          %s3476 = sand.u32 %s188, 1
          %s3477 = smul.addr %s3476, 256
          %s3478 = scalar_lea.vmem [#allocation13], %s3477
          %3480 = dma.done %s3475, 4096
        $region84: #{tpu_custom_call.1} parent=79 // pred_fallthru
          _
      $region80: #{tpu_custom_call.1} parent=5 // pred_fallthru
        _
    $region6: #{tpu_custom_call.1} parent=1 // loop_footer
      %s26 = sadd.s32 1, %s22
    $region7: #{tpu_custom_call.1} parent=1 // loop_footer_branch
      %21 = sbr.rel target = $region3
    $region8: #{tpu_custom_call.1} parent=1 // loop_exit
      _
    %3481 = vsyncpa [#allocation3], 1
    %s3482 = scalar_lea.sflag [#allocation3], 1
    %3483 = vsyncpa %s3482, 1
    %3484 = vsyncpa [#allocation6], 1
    %3485 = vsyncpa [#allocation9], 1
    %3486 = vsyncpa [#allocation12], 1
    %3487 = vsyncpa [#allocation4], 1
    %s3488 = scalar_lea.sflag [#allocation4], 1
    %3489 = vsyncpa %s3488, 1

</llo_original>
